<compile_context>
chip_gen: v5e
topology: v5e:2x2
jax: 0.10.0
libtpu: 0.0.40
codegen_flags: <defaults>
</compile_context>

<pallas_src>
import jax
import jax.numpy as jnp
from jax.experimental import pallas as pl
from jax.experimental.pallas import tpu as pltpu


LATENT = 20          # true latent width (fc21/fc22/fc3 of the module)
LAT32 = 32           # latent padded to 32 for bf16 sublane packing (decode K)
LAT_PAD = 128        # mu/logvar each occupy one full 128-lane slot in `ml`
HIDDEN = 400
IN_DIM = 784


# ----------------------------- Pallas kernel ------------------------------


def _vae_kernel(x_ref, eps_ref,
                w1_ref, b1_ref, wlat_ref, blat_ref,
                w3_ref, b3_ref, w4_ref, b4_ref,
                recon_ref, ml_ref):
    # ---- encode: h1 = relu(x @ W1 + b1) ----
    h1 = jnp.dot(x_ref[...].astype(jnp.bfloat16), w1_ref[...],
                 preferred_element_type=jnp.float32)
    h1 = jnp.maximum(h1 + b1_ref[...], 0.0)

    # ---- fused mu/logvar projection (single MXU pass, N = 256) ----
    # lane layout: [0,20) = mu, [20,128) = 0, [128,148) = logvar, rest = 0
    ml = jnp.dot(h1.astype(jnp.bfloat16), wlat_ref[...],
                 preferred_element_type=jnp.float32) + blat_ref[...]
    ml_ref[...] = ml                      # lane-dense (tb, 256) store

    # ---- reparameterize on the 32-lane latent ----
    # pad lanes [20,32): mu = 0, logvar = 0 -> std = 1, so z_pad = eps_pad;
    # harmless because fc3 rows >= 20 are exactly zero.
    mu32 = ml[:, :LAT32]
    logvar32 = ml[:, LAT_PAD:LAT_PAD + LAT32]
    std32 = jnp.exp(0.5 * logvar32)
    z32 = mu32 + eps_ref[...] * std32

    # ---- decode: h3 = relu(z @ W3 + b3); recon = sigmoid(h3 @ W4 + b4) ----
    h3 = jnp.dot(z32.astype(jnp.bfloat16), w3_ref[...],
                 preferred_element_type=jnp.float32)
    h3 = jnp.maximum(h3 + b3_ref[...], 0.0)
    logits = jnp.dot(h3.astype(jnp.bfloat16), w4_ref[...],
                     preferred_element_type=jnp.float32) + b4_ref[...]
    recon_ref[...] = jax.nn.sigmoid(logits)


# --------------------- one-time parameter repacking ------------------------


def prepack_params(params):
    """Repack raw (in,out)-layout f32 params into the fused / padded bf16 form
    consumed by the kernel.  Call ONCE; keep the result device-resident.
    Weights -> bf16 (MXU operands); biases stay f32.

    Invariants the kernel relies on: wlat columns [20,128) and [148,256),
    blat lanes outside mu/logvar, and w3p rows >= 20 are exactly zero."""
    w1, b1, w21, b21, w22, b22, w3, b3, w4, b4 = params
    f32, bf16 = jnp.float32, jnp.bfloat16

    wlat = jnp.zeros((HIDDEN, 2 * LAT_PAD), f32)
    wlat = wlat.at[:, :LATENT].set(w21)
    wlat = wlat.at[:, LAT_PAD:LAT_PAD + LATENT].set(w22)
    blat = jnp.zeros((1, 2 * LAT_PAD), f32)
    blat = blat.at[:, :LATENT].set(b21.reshape(1, -1))
    blat = blat.at[:, LAT_PAD:LAT_PAD + LATENT].set(b22.reshape(1, -1))

    # fc3 consumes the 32-lane padded latent: rows >= LATENT are zero.
    w3p = jnp.zeros((LAT32, HIDDEN), f32).at[:LATENT, :].set(w3)

    return (w1.astype(bf16), b1.reshape(1, -1).astype(f32),
            wlat.astype(bf16), blat.astype(f32),
            w3p.astype(bf16), b3.reshape(1, -1).astype(f32),
            w4.astype(bf16), b4.reshape(1, -1).astype(f32))


# ------------------------------ JAX wrapper -------------------------------


def vae_forward(x, packed, eps, *, tile_b=128):
    """Forward pass. `packed` comes from prepack_params (call once).
    `eps` is (B, LATENT) or (B, LAT32); pad lanes are don't-care.
    Returns (recon, mu, logvar)."""
    x_flat = x.reshape(-1, IN_DIM).astype(jnp.float32)
    B = x_flat.shape[0]

    eps = eps.astype(jnp.float32)
    if eps.shape[-1] != LAT32:
        eps = jnp.pad(eps, ((0, 0), (0, LAT32 - eps.shape[-1])))

    # Batch tiling: one tile at small B; 128-row tiles + parallel grid at
    # large B so the fixed ~1.5 MB weight DMA is amortized and the batch axis
    # can shard across TensorCores (v7x megacore).
    tb = min(tile_b, B)
    num_tiles = pl.cdiv(B, tb)
    Bp = num_tiles * tb
    if Bp != B:
        x_flat = jnp.pad(x_flat, ((0, Bp - B), (0, 0)))
        eps = jnp.pad(eps, ((0, Bp - B), (0, 0)))

    w1, b1, wlat, blat, w3p, b3, w4, b4 = packed

    # Weight BlockSpecs use constant index_maps -> DMA'd once, VMEM-resident
    # across all batch tiles.
    w_spec = lambda shape: pl.BlockSpec(shape, lambda i: (0, 0))
    grid_spec = pltpu.PrefetchScalarGridSpec(
        num_scalar_prefetch=0,
        grid=(num_tiles,),
        in_specs=[
            pl.BlockSpec((tb, IN_DIM), lambda i: (i, 0)),        # x
            pl.BlockSpec((tb, LAT32), lambda i: (i, 0)),         # eps
            w_spec((IN_DIM, HIDDEN)),                            # w1
            w_spec((1, HIDDEN)),                                 # b1
            w_spec((HIDDEN, 2 * LAT_PAD)),                       # wlat
            w_spec((1, 2 * LAT_PAD)),                            # blat
            w_spec((LAT32, HIDDEN)),                             # w3
            w_spec((1, HIDDEN)),                                 # b3
            w_spec((HIDDEN, IN_DIM)),                            # w4
            w_spec((1, IN_DIM)),                                 # b4
        ],
        out_specs=(
            pl.BlockSpec((tb, IN_DIM), lambda i: (i, 0)),        # recon
            pl.BlockSpec((tb, 2 * LAT_PAD), lambda i: (i, 0)),   # [mu|logvar]
        ),
    )

    flops = 2 * Bp * (IN_DIM * HIDDEN + HIDDEN * 2 * LAT_PAD
                      + LAT32 * HIDDEN + HIDDEN * IN_DIM)
    transcendentals = Bp * (LAT32 + IN_DIM)          # exp(reparam) + sigmoid
    bytes_accessed = (
        2 * (IN_DIM * HIDDEN + HIDDEN * 2 * LAT_PAD
             + LAT32 * HIDDEN + HIDDEN * IN_DIM)      # bf16 weights (once)
        + 4 * (HIDDEN + 2 * LAT_PAD + HIDDEN + IN_DIM)  # f32 biases
        + 4 * Bp * (IN_DIM + LAT32)                   # x, eps in
        + 4 * Bp * (IN_DIM + 2 * LAT_PAD)             # recon, ml out
    )

    recon, ml = pl.pallas_call(
        _vae_kernel,
        out_shape=(
            jax.ShapeDtypeStruct((Bp, IN_DIM), jnp.float32),
            jax.ShapeDtypeStruct((Bp, 2 * LAT_PAD), jnp.float32),
        ),
        grid_spec=grid_spec,
        compiler_params=pltpu.CompilerParams(
            dimension_semantics=("parallel",),
            vmem_limit_bytes=32 * 1024 * 1024),
        cost_estimate=pl.CostEstimate(
            flops=flops,
            transcendentals=transcendentals,
            bytes_accessed=bytes_accessed),
    )(x_flat, eps, w1, b1, wlat, blat, w3p, b3, w4, b4)

    recon = recon[:B]
    mu = ml[:B, :LATENT]
    logvar = ml[:B, LAT_PAD:LAT_PAD + LATENT]
    return recon, mu, logvar


# -------------------------- reference & param init -------------------------


def _reference(x, params, eps):
    """Pure-JAX f32 reference matching the PyTorch module (eps is (B, LATENT))."""
    w1, b1, w21, b21, w22, b22, w3, b3, w4, b4 = params
    xf = x.reshape(-1, IN_DIM)
    h1 = jax.nn.relu(xf @ w1 + b1)
    mu = h1 @ w21 + b21
    logvar = h1 @ w22 + b22
    z = mu + eps * jnp.exp(0.5 * logvar)
    h3 = jax.nn.relu(z @ w3 + b3)
    recon = jax.nn.sigmoid(h3 @ w4 + b4)
    return recon, mu, logvar


def _linear_params(key, fan_in, fan_out):
    """PyTorch-style nn.Linear init: U(-1/sqrt(fan_in), 1/sqrt(fan_in)).
    Weight stored transposed as (fan_in, fan_out); bias as (1, fan_out)."""
    kw, kb = jax.random.split(key)
    bound = 1.0 / (fan_in ** 0.5)
    w = jax.random.uniform(kw, (fan_in, fan_out), jnp.float32, -bound, bound)
    b = jax.random.uniform(kb, (1, fan_out), jnp.float32, -bound, bound)
    return w, b


if __name__ == "__main__":
    key = jax.random.PRNGKey(0)
    kx, keps, k1, k21, k22, k3, k4, kxb, kepsb = jax.random.split(key, 9)

    w1, b1 = _linear_params(k1, IN_DIM, HIDDEN)
    w21, b21 = _linear_params(k21, HIDDEN, LATENT)
    w22, b22 = _linear_params(k22, HIDDEN, LATENT)
    w3, b3 = _linear_params(k3, LATENT, HIDDEN)
    w4, b4 = _linear_params(k4, HIDDEN, IN_DIM)
    params = (w1, b1, w21, b21, w22, b22, w3, b3, w4, b4)

    # One-time repack (hoisted out of the per-call path); result stays on device.
    packed = jax.block_until_ready(prepack_params(params))

    fwd = jax.jit(vae_forward)

    # ---- small-batch case (matches torch.rand(B, 1, 28, 28) convention) ----
    B = 2
    x = jax.random.uniform(kx, (B, 1, 28, 28), dtype=jnp.float32)
    # eps generated directly at the padded width; only lanes [0,20) are used.
    eps = jax.random.normal(keps, (B, LAT32), dtype=jnp.float32)

    recon, mu, logvar = fwd(x, packed, eps)
    jax.block_until_ready((recon, mu, logvar))

    assert recon.shape == (B, IN_DIM)
    assert mu.shape == (B, LATENT)
    assert logvar.shape == (B, LATENT)

    # Loose tolerance: kernel uses bf16 weights on the MXU, reference is f32.
    recon_r, mu_r, logvar_r = _reference(x, params, eps[:, :LATENT])
    assert jnp.allclose(recon, recon_r, atol=5e-2), "recon mismatch"
    assert jnp.allclose(mu, mu_r, atol=5e-2), "mu mismatch"
    assert jnp.allclose(logvar, logvar_r, atol=5e-2), "logvar mismatch"

    # ---- larger batch: exercises the 1-D parallel batch grid (2 x 128 tiles,
    # weights DMA'd once via constant index_maps) ----
    Bb = 256
    xb = jax.random.uniform(kxb, (Bb, 1, 28, 28), dtype=jnp.float32)
    epsb = jax.random.normal(kepsb, (Bb, LAT32), dtype=jnp.float32)
    recon_b, mu_b, logvar_b = fwd(xb, packed, epsb)
    jax.block_until_ready((recon_b, mu_b, logvar_b))

    recon_br, mu_br, logvar_br = _reference(xb, params, epsb[:, :LATENT])
    assert jnp.allclose(recon_b, recon_br, atol=5e-2), "batched recon mismatch"
    assert jnp.allclose(mu_b, mu_br, atol=5e-2), "batched mu mismatch"
    assert jnp.allclose(logvar_b, logvar_br, atol=5e-2), "batched logvar mismatch"

    print("KERNEL_OK")
</pallas_src>

<mosaic_0001>
module attributes {stable_mosaic.version = 11 : i64} {
  func.func @_vae_kernel(%arg0: i32, %arg1: memref<2x784xf32, #tpu.memory_space<vmem>>, %arg2: memref<2x32xf32, #tpu.memory_space<vmem>>, %arg3: memref<784x400xbf16, #tpu.memory_space<vmem>>, %arg4: memref<1x400xf32, #tpu.memory_space<vmem>>, %arg5: memref<400x256xbf16, #tpu.memory_space<vmem>>, %arg6: memref<1x256xf32, #tpu.memory_space<vmem>>, %arg7: memref<32x400xbf16, #tpu.memory_space<vmem>>, %arg8: memref<1x400xf32, #tpu.memory_space<vmem>>, %arg9: memref<400x784xbf16, #tpu.memory_space<vmem>>, %arg10: memref<1x784xf32, #tpu.memory_space<vmem>>, %arg11: memref<2x784xf32, #tpu.memory_space<vmem>>, %arg12: memref<2x256xf32, #tpu.memory_space<vmem>>) attributes {dimension_semantics = [#tpu.dimension_semantics<parallel>], iteration_bounds = array<i64: 1>, scalar_prefetch = 0 : i64, scratch_operands = 0 : i64, tpu.core_type = #tpu.core_type<tc>, window_params = [{transform_indices = @transform_0, window_bounds = array<i64: 2, 784>}, {transform_indices = @transform_1, window_bounds = array<i64: 2, 32>}, {pipeline_mode = #tpu.pipeline_mode<synchronous>, transform_indices = @transform_2, window_bounds = array<i64: 784, 400>}, {pipeline_mode = #tpu.pipeline_mode<synchronous>, transform_indices = @transform_3, window_bounds = array<i64: 1, 400>}, {pipeline_mode = #tpu.pipeline_mode<synchronous>, transform_indices = @transform_4, window_bounds = array<i64: 400, 256>}, {pipeline_mode = #tpu.pipeline_mode<synchronous>, transform_indices = @transform_5, window_bounds = array<i64: 1, 256>}, {pipeline_mode = #tpu.pipeline_mode<synchronous>, transform_indices = @transform_6, window_bounds = array<i64: 32, 400>}, {pipeline_mode = #tpu.pipeline_mode<synchronous>, transform_indices = @transform_7, window_bounds = array<i64: 1, 400>}, {pipeline_mode = #tpu.pipeline_mode<synchronous>, transform_indices = @transform_8, window_bounds = array<i64: 400, 784>}, {pipeline_mode = #tpu.pipeline_mode<synchronous>, transform_indices = @transform_9, window_bounds = array<i64: 1, 784>}, {transform_indices = @transform_10, window_bounds = array<i64: 2, 784>}, {transform_indices = @transform_11, window_bounds = array<i64: 2, 256>}]} {
    %c0 = arith.constant 0 : index
    %c0_0 = arith.constant 0 : index
    %0 = vector.load %arg1[%c0, %c0_0] : memref<2x784xf32, #tpu.memory_space<vmem>>, vector<2x784xf32>
    %1 = arith.truncf %0 : vector<2x784xf32> to vector<2x784xbf16>
    %c0_1 = arith.constant 0 : index
    %c0_2 = arith.constant 0 : index
    %2 = vector.load %arg3[%c0_1, %c0_2] : memref<784x400xbf16, #tpu.memory_space<vmem>>, vector<784x400xbf16>
    %cst = arith.constant dense<0.000000e+00> : vector<2x400xf32>
    %3 = tpu.matmul %1, %2, %cst {dimension_numbers = #tpu.dot_dimension_numbers<[1], [0], [0], [1], [0, 0, 1, 1], [], []>} : vector<2x784xbf16>, vector<784x400xbf16>, vector<2x400xf32> -> vector<2x400xf32>
    %c0_3 = arith.constant 0 : index
    %c0_4 = arith.constant 0 : index
    %4 = vector.load %arg4[%c0_3, %c0_4] : memref<1x400xf32, #tpu.memory_space<vmem>>, vector<1x400xf32>
    %5 = vector.broadcast %4 : vector<1x400xf32> to vector<2x400xf32>
    %6 = arith.addf %3, %5 : vector<2x400xf32>
    %cst_5 = arith.constant 0.000000e+00 : f32
    %7 = vector.broadcast %cst_5 : f32 to vector<2x400xf32>
    %8 = arith.maximumf %6, %7 : vector<2x400xf32>
    %9 = arith.truncf %8 : vector<2x400xf32> to vector<2x400xbf16>
    %c0_6 = arith.constant 0 : index
    %c0_7 = arith.constant 0 : index
    %10 = vector.load %arg5[%c0_6, %c0_7] : memref<400x256xbf16, #tpu.memory_space<vmem>>, vector<400x256xbf16>
    %cst_8 = arith.constant dense<0.000000e+00> : vector<2x256xf32>
    %11 = tpu.matmul %9, %10, %cst_8 {dimension_numbers = #tpu.dot_dimension_numbers<[1], [0], [0], [1], [0, 0, 1, 1], [], []>} : vector<2x400xbf16>, vector<400x256xbf16>, vector<2x256xf32> -> vector<2x256xf32>
    %c0_9 = arith.constant 0 : index
    %c0_10 = arith.constant 0 : index
    %12 = vector.load %arg6[%c0_9, %c0_10] : memref<1x256xf32, #tpu.memory_space<vmem>>, vector<1x256xf32>
    %13 = vector.broadcast %12 : vector<1x256xf32> to vector<2x256xf32>
    %14 = arith.addf %11, %13 : vector<2x256xf32>
    %c0_11 = arith.constant 0 : index
    %c0_12 = arith.constant 0 : index
    %15 = vector.load %arg12[%c0_11, %c0_12] : memref<2x256xf32, #tpu.memory_space<vmem>>, vector<2x256xf32>
    tpu.vector_store %arg12[%c0_11, %c0_12], %14 {strides = array<i32>} : memref<2x256xf32, #tpu.memory_space<vmem>>, vector<2x256xf32>,
    %16 = vector.extract_strided_slice %14 {offsets = [0, 0], sizes = [2, 32], strides = [1, 1]} : vector<2x256xf32> to vector<2x32xf32>
    %17 = vector.extract_strided_slice %14 {offsets = [0, 128], sizes = [2, 32], strides = [1, 1]} : vector<2x256xf32> to vector<2x32xf32>
    %cst_13 = arith.constant 5.000000e-01 : f32
    %18 = vector.broadcast %cst_13 : f32 to vector<2x32xf32>
    %19 = arith.mulf %18, %17 : vector<2x32xf32>
    %20 = math.exp %19 : vector<2x32xf32>
    %c0_14 = arith.constant 0 : index
    %c0_15 = arith.constant 0 : index
    %21 = vector.load %arg2[%c0_14, %c0_15] : memref<2x32xf32, #tpu.memory_space<vmem>>, vector<2x32xf32>
    %22 = arith.mulf %21, %20 : vector<2x32xf32>
    %23 = arith.addf %16, %22 : vector<2x32xf32>
    %24 = arith.truncf %23 : vector<2x32xf32> to vector<2x32xbf16>
    %c0_16 = arith.constant 0 : index
    %c0_17 = arith.constant 0 : index
    %25 = vector.load %arg7[%c0_16, %c0_17] : memref<32x400xbf16, #tpu.memory_space<vmem>>, vector<32x400xbf16>
    %cst_18 = arith.constant dense<0.000000e+00> : vector<2x400xf32>
    %26 = tpu.matmul %24, %25, %cst_18 {dimension_numbers = #tpu.dot_dimension_numbers<[1], [0], [0], [1], [0, 0, 1, 1], [], []>} : vector<2x32xbf16>, vector<32x400xbf16>, vector<2x400xf32> -> vector<2x400xf32>
    %c0_19 = arith.constant 0 : index
    %c0_20 = arith.constant 0 : index
    %27 = vector.load %arg8[%c0_19, %c0_20] : memref<1x400xf32, #tpu.memory_space<vmem>>, vector<1x400xf32>
    %28 = vector.broadcast %27 : vector<1x400xf32> to vector<2x400xf32>
    %29 = arith.addf %26, %28 : vector<2x400xf32>
    %cst_21 = arith.constant 0.000000e+00 : f32
    %30 = vector.broadcast %cst_21 : f32 to vector<2x400xf32>
    %31 = arith.maximumf %29, %30 : vector<2x400xf32>
    %32 = arith.truncf %31 : vector<2x400xf32> to vector<2x400xbf16>
    %c0_22 = arith.constant 0 : index
    %c0_23 = arith.constant 0 : index
    %33 = vector.load %arg9[%c0_22, %c0_23] : memref<400x784xbf16, #tpu.memory_space<vmem>>, vector<400x784xbf16>
    %cst_24 = arith.constant dense<0.000000e+00> : vector<2x784xf32>
    %34 = tpu.matmul %32, %33, %cst_24 {dimension_numbers = #tpu.dot_dimension_numbers<[1], [0], [0], [1], [0, 0, 1, 1], [], []>} : vector<2x400xbf16>, vector<400x784xbf16>, vector<2x784xf32> -> vector<2x784xf32>
    %c0_25 = arith.constant 0 : index
    %c0_26 = arith.constant 0 : index
    %35 = vector.load %arg10[%c0_25, %c0_26] : memref<1x784xf32, #tpu.memory_space<vmem>>, vector<1x784xf32>
    %36 = vector.broadcast %35 : vector<1x784xf32> to vector<2x784xf32>
    %37 = arith.addf %34, %36 : vector<2x784xf32>
    %38 = arith.negf %37 : vector<2x784xf32>
    %39 = math.exp %38 : vector<2x784xf32>
    %cst_27 = arith.constant 1.000000e+00 : f32
    %40 = vector.broadcast %cst_27 : f32 to vector<2x784xf32>
    %41 = arith.addf %40, %39 : vector<2x784xf32>
    %42 = arith.divf %40, %41 : vector<2x784xf32>
    %c0_28 = arith.constant 0 : index
    %c0_29 = arith.constant 0 : index
    %43 = vector.load %arg11[%c0_28, %c0_29] : memref<2x784xf32, #tpu.memory_space<vmem>>, vector<2x784xf32>
    tpu.vector_store %arg11[%c0_28, %c0_29], %42 {strides = array<i32>} : memref<2x784xf32, #tpu.memory_space<vmem>>, vector<2x784xf32>,
    return
  }
  func.func @transform_0(%arg0: i32) -> (i32, i32) {
    %c0_i32 = arith.constant 0 : i32
    %c0_i32_0 = arith.constant 0 : i32
    return %arg0, %c0_i32 : i32, i32
  }
  func.func @transform_1(%arg0: i32) -> (i32, i32) {
    %c0_i32 = arith.constant 0 : i32
    %c0_i32_0 = arith.constant 0 : i32
    return %arg0, %c0_i32 : i32, i32
  }
  func.func @transform_2(%arg0: i32) -> (i32, i32) {
    %c0_i32 = arith.constant 0 : i32
    %c0_i32_0 = arith.constant 0 : i32
    %c0_i32_1 = arith.constant 0 : i32
    return %c0_i32, %c0_i32_0 : i32, i32
  }
  func.func @transform_3(%arg0: i32) -> (i32, i32) {
    %c0_i32 = arith.constant 0 : i32
    %c0_i32_0 = arith.constant 0 : i32
    %c0_i32_1 = arith.constant 0 : i32
    return %c0_i32, %c0_i32_0 : i32, i32
  }
  func.func @transform_4(%arg0: i32) -> (i32, i32) {
    %c0_i32 = arith.constant 0 : i32
    %c0_i32_0 = arith.constant 0 : i32
    %c0_i32_1 = arith.constant 0 : i32
    return %c0_i32, %c0_i32_0 : i32, i32
  }
  func.func @transform_5(%arg0: i32) -> (i32, i32) {
    %c0_i32 = arith.constant 0 : i32
    %c0_i32_0 = arith.constant 0 : i32
    %c0_i32_1 = arith.constant 0 : i32
    return %c0_i32, %c0_i32_0 : i32, i32
  }
  func.func @transform_6(%arg0: i32) -> (i32, i32) {
    %c0_i32 = arith.constant 0 : i32
    %c0_i32_0 = arith.constant 0 : i32
    %c0_i32_1 = arith.constant 0 : i32
    return %c0_i32, %c0_i32_0 : i32, i32
  }
  func.func @transform_7(%arg0: i32) -> (i32, i32) {
    %c0_i32 = arith.constant 0 : i32
    %c0_i32_0 = arith.constant 0 : i32
    %c0_i32_1 = arith.constant 0 : i32
    return %c0_i32, %c0_i32_0 : i32, i32
  }
  func.func @transform_8(%arg0: i32) -> (i32, i32) {
    %c0_i32 = arith.constant 0 : i32
    %c0_i32_0 = arith.constant 0 : i32
    %c0_i32_1 = arith.constant 0 : i32
    return %c0_i32, %c0_i32_0 : i32, i32
  }
  func.func @transform_9(%arg0: i32) -> (i32, i32) {
    %c0_i32 = arith.constant 0 : i32
    %c0_i32_0 = arith.constant 0 : i32
    %c0_i32_1 = arith.constant 0 : i32
    return %c0_i32, %c0_i32_0 : i32, i32
  }
  func.func @transform_10(%arg0: i32) -> (i32, i32) {
    %c0_i32 = arith.constant 0 : i32
    %c0_i32_0 = arith.constant 0 : i32
    return %arg0, %c0_i32 : i32, i32
  }
  func.func @transform_11(%arg0: i32) -> (i32, i32) {
    %c0_i32 = arith.constant 0 : i32
    %c0_i32_0 = arith.constant 0 : i32
    return %arg0, %c0_i32 : i32, i32
  }
}

</mosaic_0001>

<llo_original>
// kernel: vae_forward.1
$region0: #{vae_forward.1}
  #allocation0 [shape = 'u32[]', space=smem, size = 0x4, offset = 0x4, fixed_abs, tag = 'smem constant byte address 0x4 - core index']
  #allocation1 [shape = 'u32[72,128]{1,0:T(1,128)}', space=vmem, size = 0x9000, scoped, tag = 'internal scratch']
  %s0 = inlined_call_operand.vmem [shape: f32[2,784], index: 0, kind: input, shape index: {}]
  %s1 = inlined_call_operand.vmem [shape: f32[2,32], index: 1, kind: input, shape index: {}]
  %s2 = inlined_call_operand.vmem [shape: bf16[784,400], index: 2, kind: input, shape index: {}]
  %s3 = inlined_call_operand.vmem [shape: f32[1,400], index: 3, kind: input, shape index: {}]
  %s4 = inlined_call_operand.vmem [shape: bf16[400,256], index: 4, kind: input, shape index: {}]
  %s5 = inlined_call_operand.vmem [shape: f32[1,256], index: 5, kind: input, shape index: {}]
  %s6 = inlined_call_operand.vmem [shape: bf16[32,400], index: 6, kind: input, shape index: {}]
  %s7 = inlined_call_operand.vmem [shape: f32[1,400], index: 7, kind: input, shape index: {}]
  %s8 = inlined_call_operand.vmem [shape: bf16[400,784], index: 8, kind: input, shape index: {}]
  %s9 = inlined_call_operand.vmem [shape: f32[1,784], index: 9, kind: input, shape index: {}]
  %s10 = inlined_call_operand.hbm [shape: f32[2,784], index: 10, kind: output, shape index: {0}]
  %s11 = inlined_call_operand.vmem [shape: f32[2,256], index: 11, kind: output, shape index: {1}]
  %12 = xla_tuple %s10, %s11
  %s13 = sld [smem:[#allocation0]]
  $region58: #{vae_forward.1} parent=0
    _
  %s15 = ssub.s32 1, %s13
  %s16 = scalar_select 0, %s15, %s13
  $region1: #{vae_forward.1} parent=0
    #allocation2 [shape = 'u8[7168]{0}', space=vmem, size = 0x1c00, scoped, tag = 'output window, operand 0, single buffered']
    #allocation3 [shape = 's32[1]{0}', space=sflag, size = 0x4, scoped, tag = 'scoped memory for vae_forward.1']
    %17 = vsyncpa [#allocation3], 0
    // Predicated region
    $region2: #{vae_forward.1} parent=1 // pred_check
      _
    $region3: #{vae_forward.1} parent=1 // pred_check_branch
      %19 = sbr.rel (0) target = $region5
    $region4: #{vae_forward.1} parent=1 // pred_region
      _
    $region5: #{vae_forward.1} parent=1 // pred_fallthru
      _
    // Predicated region
    $region6: #{vae_forward.1} parent=1 // pred_check
      _
    $region7: #{vae_forward.1} parent=1 // pred_check_branch
      %21 = sbr.rel (0) target = $region9
    $region8: #{vae_forward.1} parent=1 // pred_region
      _
    $region9: #{vae_forward.1} parent=1 // pred_fallthru
      _
    // Predicated region
    $region10: #{vae_forward.1} parent=1 // pred_check
      _
    $region11: #{vae_forward.1} parent=1 // pred_check_branch
      %23 = sbr.rel (0) target = $region13
    $region12: #{vae_forward.1} parent=1 // pred_region
      _
    $region13: #{vae_forward.1} parent=1 // pred_fallthru
      _
    // Predicated region
    $region14: #{vae_forward.1} parent=1 // pred_check
      _
    $region15: #{vae_forward.1} parent=1 // pred_check_branch
      %25 = sbr.rel (0) target = $region17
    $region16: #{vae_forward.1} parent=1 // pred_region
      _
    $region17: #{vae_forward.1} parent=1 // pred_fallthru
      _
    // Predicated region
    $region18: #{vae_forward.1} parent=1 // pred_check
      _
    $region19: #{vae_forward.1} parent=1 // pred_check_branch
      %27 = sbr.rel (0) target = $region21
    $region20: #{vae_forward.1} parent=1 // pred_region
      _
    $region21: #{vae_forward.1} parent=1 // pred_fallthru
      _
    // Predicated region
    $region22: #{vae_forward.1} parent=1 // pred_check
      _
    $region23: #{vae_forward.1} parent=1 // pred_check_branch
      %29 = sbr.rel (0) target = $region25
    $region24: #{vae_forward.1} parent=1 // pred_region
      _
    $region25: #{vae_forward.1} parent=1 // pred_fallthru
      _
    // Predicated region
    $region26: #{vae_forward.1} parent=1 // pred_check
      _
    $region27: #{vae_forward.1} parent=1 // pred_check_branch
      %31 = sbr.rel (0) target = $region29
    $region28: #{vae_forward.1} parent=1 // pred_region
      _
    $region29: #{vae_forward.1} parent=1 // pred_fallthru
      _
    // Predicated region
    $region30: #{vae_forward.1} parent=1 // pred_check
      _
    $region31: #{vae_forward.1} parent=1 // pred_check_branch
      %33 = sbr.rel (0) target = $region33
    $region32: #{vae_forward.1} parent=1 // pred_region
      _
    $region33: #{vae_forward.1} parent=1 // pred_fallthru
      _
    // Predicated region
    $region34: #{vae_forward.1} parent=1 // pred_check
      _
    $region35: #{vae_forward.1} parent=1 // pred_check_branch
      %35 = sbr.rel (0) target = $region37
    $region36: #{vae_forward.1} parent=1 // pred_region
      _
    $region37: #{vae_forward.1} parent=1 // pred_fallthru
      _
    // Predicated region
    $region38: #{vae_forward.1} parent=1 // pred_check
      _
    $region39: #{vae_forward.1} parent=1 // pred_check_branch
      %37 = sbr.rel (0) target = $region41
    $region40: #{vae_forward.1} parent=1 // pred_region
      _
    $region41: #{vae_forward.1} parent=1 // pred_fallthru
      _
    %v39 = vld [vmem:[%s0] sm:$0xff]
    %v40 = vld [vmem:[%s0 + $0x8] sm:$0x3f]
    %43 = vst [vmem:[#allocation1] ss:$4 sm:$0xff] %v39
    %s44 = scalar_lea.vmem [#allocation1], 32
    %45 = vst [vmem:[%s44] ss:$4 sm:$0xff] %v40
    %v46 = vld.sshfl [vmem:[#allocation1] sm:$0xff pattern:$0x73625140]
    %v47 = vld.sshfl [vmem:[#allocation1 + $0x8] sm:$0xff pattern:$0x73625140]
    %v48 = vld.sshfl [vmem:[#allocation1 + $0x10] sm:$0xff pattern:$0x73625140]
    %v49 = vld.sshfl [vmem:[#allocation1 + $0x18] sm:$0xff pattern:$0x73625140]
    %v50 = vld.sshfl [vmem:[#allocation1 + $0x20] sm:$0xff pattern:$0x73625140]
    %v51 = vld.sshfl [vmem:[#allocation1 + $0x28] sm:$0xff pattern:$0x73625140]
    %v52 = vld.sshfl [vmem:[#allocation1 + $0x30] sm:$0xff pattern:$0x73625140]
    %v60 = vpack.c.bf16 %v46, %v46
    %v61 = vpack.c.bf16 %v47, %v47
    %v62 = vpack.c.bf16 %v48, %v48
    %v63 = vpack.c.bf16 %v49, %v49
    %v64 = vpack.c.bf16 %v50, %v50
    %v65 = vpack.c.bf16 %v51, %v51
    %v66 = vpack.c.bf16 %v52, %v52
    %v67 = vld [vmem:[%s2] sm:$0xff]
    %v68 = vld [vmem:[%s2 + $0x8] sm:$0xff]
    %v69 = vld [vmem:[%s2 + $0x10] sm:$0xff]
    %v70 = vld [vmem:[%s2 + $0x18] sm:$0xff]
    %v71 = vld [vmem:[%s2 + $0x20] sm:$0xff]
    %v72 = vld [vmem:[%s2 + $0x28] sm:$0xff]
    %v73 = vld [vmem:[%s2 + $0x30] sm:$0xff]
    %v74 = vld [vmem:[%s2 + $0x38] sm:$0xff]
    %v75 = vld [vmem:[%s2 + $0x40] sm:$0xff]
    %v76 = vld [vmem:[%s2 + $0x48] sm:$0xff]
    %v77 = vld [vmem:[%s2 + $0x50] sm:$0xff]
    %v78 = vld [vmem:[%s2 + $0x58] sm:$0xff]
    %v79 = vld [vmem:[%s2 + $0x60] sm:$0xff]
    %v80 = vld [vmem:[%s2 + $0x68] sm:$0xff]
    %v81 = vld [vmem:[%s2 + $0x70] sm:$0xff]
    %v82 = vld [vmem:[%s2 + $0x78] sm:$0xff]
    %v83 = vld [vmem:[%s2 + $0x80] sm:$0xff]
    %v84 = vld [vmem:[%s2 + $0x88] sm:$0xff]
    %v85 = vld [vmem:[%s2 + $0x90] sm:$0xff]
    %v86 = vld [vmem:[%s2 + $0x98] sm:$0xff]
    %v87 = vld [vmem:[%s2 + $0xa0] sm:$0xff]
    %v88 = vld [vmem:[%s2 + $0xa8] sm:$0xff]
    %v89 = vld [vmem:[%s2 + $0xb0] sm:$0xff]
    %v90 = vld [vmem:[%s2 + $0xb8] sm:$0xff]
    %v91 = vld [vmem:[%s2 + $0xc0] sm:$0xff]
    %v92 = vld [vmem:[%s2 + $0xc8] sm:$0xff]
    %v93 = vld [vmem:[%s2 + $0xd0] sm:$0xff]
    %v94 = vld [vmem:[%s2 + $0xd8] sm:$0xff]
    %v95 = vld [vmem:[%s2 + $0xe0] sm:$0xff]
    %v96 = vld [vmem:[%s2 + $0xe8] sm:$0xff]
    %v97 = vld [vmem:[%s2 + $0xf0] sm:$0xff]
    %v98 = vld [vmem:[%s2 + $0xf8] sm:$0xff]
    %v99 = vld [vmem:[%s2 + $0x100] sm:$0xff]
    %v100 = vld [vmem:[%s2 + $0x108] sm:$0xff]
    %v101 = vld [vmem:[%s2 + $0x110] sm:$0xff]
    %v102 = vld [vmem:[%s2 + $0x118] sm:$0xff]
    %v103 = vld [vmem:[%s2 + $0x120] sm:$0xff]
    %v104 = vld [vmem:[%s2 + $0x128] sm:$0xff]
    %v105 = vld [vmem:[%s2 + $0x130] sm:$0xff]
    %v106 = vld [vmem:[%s2 + $0x138] sm:$0xff]
    %v107 = vld [vmem:[%s2 + $0x140] sm:$0xff]
    %v108 = vld [vmem:[%s2 + $0x148] sm:$0xff]
    %v109 = vld [vmem:[%s2 + $0x150] sm:$0xff]
    %v110 = vld [vmem:[%s2 + $0x158] sm:$0xff]
    %v111 = vld [vmem:[%s2 + $0x160] sm:$0xff]
    %v112 = vld [vmem:[%s2 + $0x168] sm:$0xff]
    %v113 = vld [vmem:[%s2 + $0x170] sm:$0xff]
    %v114 = vld [vmem:[%s2 + $0x178] sm:$0xff]
    %v115 = vld [vmem:[%s2 + $0x180] sm:$0xff]
    %v116 = vld [vmem:[%s2 + $0x188] sm:$0xff]
    %v117 = vld [vmem:[%s2 + $0x190] sm:$0xff]
    %v118 = vld [vmem:[%s2 + $0x198] sm:$0xff]
    %v119 = vld [vmem:[%s2 + $0x1a0] sm:$0xff]
    %v120 = vld [vmem:[%s2 + $0x1a8] sm:$0xff]
    %v121 = vld [vmem:[%s2 + $0x1b0] sm:$0xff]
    %v122 = vld [vmem:[%s2 + $0x1b8] sm:$0xff]
    %v123 = vld [vmem:[%s2 + $0x1c0] sm:$0xff]
    %v124 = vld [vmem:[%s2 + $0x1c8] sm:$0xff]
    %v125 = vld [vmem:[%s2 + $0x1d0] sm:$0xff]
    %v126 = vld [vmem:[%s2 + $0x1d8] sm:$0xff]
    %v127 = vld [vmem:[%s2 + $0x1e0] sm:$0xff]
    %v128 = vld [vmem:[%s2 + $0x1e8] sm:$0xff]
    %v129 = vld [vmem:[%s2 + $0x1f0] sm:$0xff]
    %v130 = vld [vmem:[%s2 + $0x1f8] sm:$0xff]
    %v131 = vld [vmem:[%s2 + $0x200] sm:$0xff]
    %v132 = vld [vmem:[%s2 + $0x208] sm:$0xff]
    %v133 = vld [vmem:[%s2 + $0x210] sm:$0xff]
    %v134 = vld [vmem:[%s2 + $0x218] sm:$0xff]
    %v135 = vld [vmem:[%s2 + $0x220] sm:$0xff]
    %v136 = vld [vmem:[%s2 + $0x228] sm:$0xff]
    %v137 = vld [vmem:[%s2 + $0x230] sm:$0xff]
    %v138 = vld [vmem:[%s2 + $0x238] sm:$0xff]
    %v139 = vld [vmem:[%s2 + $0x240] sm:$0xff]
    %v140 = vld [vmem:[%s2 + $0x248] sm:$0xff]
    %v141 = vld [vmem:[%s2 + $0x250] sm:$0xff]
    %v142 = vld [vmem:[%s2 + $0x258] sm:$0xff]
    %v143 = vld [vmem:[%s2 + $0x260] sm:$0xff]
    %v144 = vld [vmem:[%s2 + $0x268] sm:$0xff]
    %v145 = vld [vmem:[%s2 + $0x270] sm:$0xff]
    %v146 = vld [vmem:[%s2 + $0x278] sm:$0xff]
    %v147 = vld [vmem:[%s2 + $0x280] sm:$0xff]
    %v148 = vld [vmem:[%s2 + $0x288] sm:$0xff]
    %v149 = vld [vmem:[%s2 + $0x290] sm:$0xff]
    %v150 = vld [vmem:[%s2 + $0x298] sm:$0xff]
    %v151 = vld [vmem:[%s2 + $0x2a0] sm:$0xff]
    %v152 = vld [vmem:[%s2 + $0x2a8] sm:$0xff]
    %v153 = vld [vmem:[%s2 + $0x2b0] sm:$0xff]
    %v154 = vld [vmem:[%s2 + $0x2b8] sm:$0xff]
    %v155 = vld [vmem:[%s2 + $0x2c0] sm:$0xff]
    %v156 = vld [vmem:[%s2 + $0x2c8] sm:$0xff]
    %v157 = vld [vmem:[%s2 + $0x2d0] sm:$0xff]
    %v158 = vld [vmem:[%s2 + $0x2d8] sm:$0xff]
    %v159 = vld [vmem:[%s2 + $0x2e0] sm:$0xff]
    %v160 = vld [vmem:[%s2 + $0x2e8] sm:$0xff]
    %v161 = vld [vmem:[%s2 + $0x2f0] sm:$0xff]
    %v162 = vld [vmem:[%s2 + $0x2f8] sm:$0xff]
    %v163 = vld [vmem:[%s2 + $0x300] sm:$0xff]
    %v164 = vld [vmem:[%s2 + $0x308] sm:$0xff]
    %v165 = vld [vmem:[%s2 + $0x310] sm:$0xff]
    %v166 = vld [vmem:[%s2 + $0x318] sm:$0xff]
    %v167 = vld [vmem:[%s2 + $0x320] sm:$0xff]
    %v168 = vld [vmem:[%s2 + $0x328] sm:$0xff]
    %v169 = vld [vmem:[%s2 + $0x330] sm:$0xff]
    %v170 = vld [vmem:[%s2 + $0x338] sm:$0xff]
    %v171 = vld [vmem:[%s2 + $0x340] sm:$0xff]
    %v172 = vld [vmem:[%s2 + $0x348] sm:$0xff]
    %v173 = vld [vmem:[%s2 + $0x350] sm:$0xff]
    %v174 = vld [vmem:[%s2 + $0x358] sm:$0xff]
    %v175 = vld [vmem:[%s2 + $0x360] sm:$0xff]
    %v176 = vld [vmem:[%s2 + $0x368] sm:$0xff]
    %v177 = vld [vmem:[%s2 + $0x370] sm:$0xff]
    %v178 = vld [vmem:[%s2 + $0x378] sm:$0xff]
    %v179 = vld [vmem:[%s2 + $0x380] sm:$0xff]
    %v180 = vld [vmem:[%s2 + $0x388] sm:$0xff]
    %v181 = vld [vmem:[%s2 + $0x390] sm:$0xff]
    %v182 = vld [vmem:[%s2 + $0x398] sm:$0xff]
    %v183 = vld [vmem:[%s2 + $0x3a0] sm:$0xff]
    %v184 = vld [vmem:[%s2 + $0x3a8] sm:$0xff]
    %v185 = vld [vmem:[%s2 + $0x3b0] sm:$0xff]
    %v186 = vld [vmem:[%s2 + $0x3b8] sm:$0xff]
    %v187 = vld [vmem:[%s2 + $0x3c0] sm:$0xff]
    %v188 = vld [vmem:[%s2 + $0x3c8] sm:$0xff]
    %v189 = vld [vmem:[%s2 + $0x3d0] sm:$0xff]
    %v190 = vld [vmem:[%s2 + $0x3d8] sm:$0xff]
    %v191 = vld [vmem:[%s2 + $0x3e0] sm:$0xff]
    %v192 = vld [vmem:[%s2 + $0x3e8] sm:$0xff]
    %v193 = vld [vmem:[%s2 + $0x3f0] sm:$0xff]
    %v194 = vld [vmem:[%s2 + $0x3f8] sm:$0xff]
    %v195 = vld [vmem:[%s2 + $0x400] sm:$0xff]
    %v196 = vld [vmem:[%s2 + $0x408] sm:$0xff]
    %v197 = vld [vmem:[%s2 + $0x410] sm:$0xff]
    %v198 = vld [vmem:[%s2 + $0x418] sm:$0xff]
    %v199 = vld [vmem:[%s2 + $0x420] sm:$0xff]
    %v200 = vld [vmem:[%s2 + $0x428] sm:$0xff]
    %v201 = vld [vmem:[%s2 + $0x430] sm:$0xff]
    %v202 = vld [vmem:[%s2 + $0x438] sm:$0xff]
    %v203 = vld [vmem:[%s2 + $0x440] sm:$0xff]
    %v204 = vld [vmem:[%s2 + $0x448] sm:$0xff]
    %v205 = vld [vmem:[%s2 + $0x450] sm:$0xff]
    %v206 = vld [vmem:[%s2 + $0x458] sm:$0xff]
    %v207 = vld [vmem:[%s2 + $0x460] sm:$0xff]
    %v208 = vld [vmem:[%s2 + $0x468] sm:$0xff]
    %v209 = vld [vmem:[%s2 + $0x470] sm:$0xff]
    %v210 = vld [vmem:[%s2 + $0x478] sm:$0xff]
    %v211 = vld [vmem:[%s2 + $0x480] sm:$0xff]
    %v212 = vld [vmem:[%s2 + $0x488] sm:$0xff]
    %v213 = vld [vmem:[%s2 + $0x490] sm:$0xff]
    %v214 = vld [vmem:[%s2 + $0x498] sm:$0xff]
    %v215 = vld [vmem:[%s2 + $0x4a0] sm:$0xff]
    %v216 = vld [vmem:[%s2 + $0x4a8] sm:$0xff]
    %v217 = vld [vmem:[%s2 + $0x4b0] sm:$0xff]
    %v218 = vld [vmem:[%s2 + $0x4b8] sm:$0xff]
    %v219 = vld [vmem:[%s2 + $0x4c0] sm:$0xff]
    %v220 = vld [vmem:[%s2 + $0x4c8] sm:$0xff]
    %v221 = vld [vmem:[%s2 + $0x4d0] sm:$0xff]
    %v222 = vld [vmem:[%s2 + $0x4d8] sm:$0xff]
    %v223 = vld [vmem:[%s2 + $0x4e0] sm:$0xff]
    %v224 = vld [vmem:[%s2 + $0x4e8] sm:$0xff]
    %v225 = vld [vmem:[%s2 + $0x4f0] sm:$0xff]
    %v226 = vld [vmem:[%s2 + $0x4f8] sm:$0xff]
    %v227 = vld [vmem:[%s2 + $0x500] sm:$0xff]
    %v228 = vld [vmem:[%s2 + $0x508] sm:$0xff]
    %v229 = vld [vmem:[%s2 + $0x510] sm:$0xff]
    %v230 = vld [vmem:[%s2 + $0x518] sm:$0xff]
    %v231 = vld [vmem:[%s2 + $0x520] sm:$0xff]
    %v232 = vld [vmem:[%s2 + $0x528] sm:$0xff]
    %v233 = vld [vmem:[%s2 + $0x530] sm:$0xff]
    %v234 = vld [vmem:[%s2 + $0x538] sm:$0xff]
    %v235 = vld [vmem:[%s2 + $0x540] sm:$0xff]
    %v236 = vld [vmem:[%s2 + $0x548] sm:$0xff]
    %v237 = vld [vmem:[%s2 + $0x550] sm:$0xff]
    %v238 = vld [vmem:[%s2 + $0x558] sm:$0xff]
    %v239 = vld [vmem:[%s2 + $0x560] sm:$0xff]
    %v240 = vld [vmem:[%s2 + $0x568] sm:$0xff]
    %v241 = vld [vmem:[%s2 + $0x570] sm:$0xff]
    %v242 = vld [vmem:[%s2 + $0x578] sm:$0xff]
    %v243 = vld [vmem:[%s2 + $0x580] sm:$0xff]
    %v244 = vld [vmem:[%s2 + $0x588] sm:$0xff]
    %v245 = vld [vmem:[%s2 + $0x590] sm:$0xff]
    %v246 = vld [vmem:[%s2 + $0x598] sm:$0xff]
    %v247 = vld [vmem:[%s2 + $0x5a0] sm:$0xff]
    %v248 = vld [vmem:[%s2 + $0x5a8] sm:$0xff]
    %v249 = vld [vmem:[%s2 + $0x5b0] sm:$0xff]
    %v250 = vld [vmem:[%s2 + $0x5b8] sm:$0xff]
    %v251 = vld [vmem:[%s2 + $0x5c0] sm:$0xff]
    %v252 = vld [vmem:[%s2 + $0x5c8] sm:$0xff]
    %v253 = vld [vmem:[%s2 + $0x5d0] sm:$0xff]
    %v254 = vld [vmem:[%s2 + $0x5d8] sm:$0xff]
    %v255 = vld [vmem:[%s2 + $0x5e0] sm:$0xff]
    %v256 = vld [vmem:[%s2 + $0x5e8] sm:$0xff]
    %v257 = vld [vmem:[%s2 + $0x5f0] sm:$0xff]
    %v258 = vld [vmem:[%s2 + $0x5f8] sm:$0xff]
    %v259 = vld [vmem:[%s2 + $0x600] sm:$0xff]
    %v260 = vld [vmem:[%s2 + $0x608] sm:$0xff]
    %v261 = vld [vmem:[%s2 + $0x610] sm:$0xff]
    %v262 = vld [vmem:[%s2 + $0x618] sm:$0xff]
    %v263 = vld [vmem:[%s3] sm:$0xf]
    %v265 = vperm.slane %v263, 0
    %v266 = vperm.slane %v263, 1
    %v267 = vperm.slane %v263, 2
    %v268 = vperm.slane %v263, 3
    %v469 = vunpack.c.l.b16 %v67
    %v470 = vunpack.c.h.b16 %v67
    %v471 = vunpack.c.l.b16 %v68
    %v472 = vunpack.c.h.b16 %v68
    %v473 = vunpack.c.l.b16 %v69
    %v474 = vunpack.c.h.b16 %v69
    %v475 = vunpack.c.l.b16 %v70
    %v476 = vunpack.c.h.b16 %v70
    %v477 = vunpack.c.l.b16 %v71
    %v478 = vunpack.c.h.b16 %v71
    %v479 = vunpack.c.l.b16 %v72
    %v480 = vunpack.c.h.b16 %v72
    %v481 = vunpack.c.l.b16 %v73
    %v482 = vunpack.c.h.b16 %v73
    %v483 = vunpack.c.l.b16 %v74
    %v484 = vunpack.c.h.b16 %v74
    %v485 = vunpack.c.l.b16 %v75
    %v486 = vunpack.c.h.b16 %v75
    %v487 = vunpack.c.l.b16 %v76
    %v488 = vunpack.c.h.b16 %v76
    %v489 = vunpack.c.l.b16 %v77
    %v490 = vunpack.c.h.b16 %v77
    %v491 = vunpack.c.l.b16 %v78
    %v492 = vunpack.c.h.b16 %v78
    %v493 = vunpack.c.l.b16 %v79
    %v494 = vunpack.c.h.b16 %v79
    %v495 = vunpack.c.l.b16 %v80
    %v496 = vunpack.c.h.b16 %v80
    %v497 = vunpack.c.l.b16 %v81
    %v498 = vunpack.c.h.b16 %v81
    %v499 = vunpack.c.l.b16 %v82
    %v500 = vunpack.c.h.b16 %v82
    %v501 = vunpack.c.l.b16 %v83
    %v502 = vunpack.c.h.b16 %v83
    %v503 = vunpack.c.l.b16 %v84
    %v504 = vunpack.c.h.b16 %v84
    %v505 = vunpack.c.l.b16 %v85
    %v506 = vunpack.c.h.b16 %v85
    %v507 = vunpack.c.l.b16 %v86
    %v508 = vunpack.c.h.b16 %v86
    %v509 = vunpack.c.l.b16 %v87
    %v510 = vunpack.c.h.b16 %v87
    %v511 = vunpack.c.l.b16 %v88
    %v512 = vunpack.c.h.b16 %v88
    %v513 = vunpack.c.l.b16 %v89
    %v514 = vunpack.c.h.b16 %v89
    %v515 = vunpack.c.l.b16 %v90
    %v516 = vunpack.c.h.b16 %v90
    %v517 = vunpack.c.l.b16 %v91
    %v518 = vunpack.c.h.b16 %v91
    %v519 = vunpack.c.l.b16 %v92
    %v520 = vunpack.c.h.b16 %v92
    %v521 = vunpack.c.l.b16 %v93
    %v522 = vunpack.c.h.b16 %v93
    %v523 = vunpack.c.l.b16 %v94
    %v524 = vunpack.c.h.b16 %v94
    %v525 = vunpack.c.l.b16 %v95
    %v526 = vunpack.c.h.b16 %v95
    %v527 = vunpack.c.l.b16 %v96
    %v528 = vunpack.c.h.b16 %v96
    %v529 = vunpack.c.l.b16 %v97
    %v530 = vunpack.c.h.b16 %v97
    %v531 = vunpack.c.l.b16 %v98
    %v532 = vunpack.c.h.b16 %v98
    %v533 = vunpack.c.l.b16 %v99
    %v534 = vunpack.c.h.b16 %v99
    %v535 = vunpack.c.l.b16 %v100
    %v536 = vunpack.c.h.b16 %v100
    %v537 = vunpack.c.l.b16 %v101
    %v538 = vunpack.c.h.b16 %v101
    %v539 = vunpack.c.l.b16 %v102
    %v540 = vunpack.c.h.b16 %v102
    %v541 = vunpack.c.l.b16 %v103
    %v542 = vunpack.c.h.b16 %v103
    %v543 = vunpack.c.l.b16 %v104
    %v544 = vunpack.c.h.b16 %v104
    %v545 = vunpack.c.l.b16 %v105
    %v546 = vunpack.c.h.b16 %v105
    %v547 = vunpack.c.l.b16 %v106
    %v548 = vunpack.c.h.b16 %v106
    %v549 = vunpack.c.l.b16 %v107
    %v550 = vunpack.c.h.b16 %v107
    %v551 = vunpack.c.l.b16 %v108
    %v552 = vunpack.c.h.b16 %v108
    %v553 = vunpack.c.l.b16 %v109
    %v554 = vunpack.c.h.b16 %v109
    %v555 = vunpack.c.l.b16 %v110
    %v556 = vunpack.c.h.b16 %v110
    %v557 = vunpack.c.l.b16 %v111
    %v558 = vunpack.c.h.b16 %v111
    %v559 = vunpack.c.l.b16 %v112
    %v560 = vunpack.c.h.b16 %v112
    %v561 = vunpack.c.l.b16 %v113
    %v562 = vunpack.c.h.b16 %v113
    %v563 = vunpack.c.l.b16 %v114
    %v564 = vunpack.c.h.b16 %v114
    %v565 = vunpack.c.l.b16 %v115
    %v566 = vunpack.c.h.b16 %v115
    %v567 = vunpack.c.l.b16 %v116
    %v568 = vunpack.c.h.b16 %v116
    %v569 = vunpack.c.l.b16 %v117
    %v570 = vunpack.c.h.b16 %v117
    %v571 = vunpack.c.l.b16 %v118
    %v572 = vunpack.c.h.b16 %v118
    %v573 = vunpack.c.l.b16 %v119
    %v574 = vunpack.c.h.b16 %v119
    %v575 = vunpack.c.l.b16 %v120
    %v576 = vunpack.c.h.b16 %v120
    %v577 = vunpack.c.l.b16 %v121
    %v578 = vunpack.c.h.b16 %v121
    %v579 = vunpack.c.l.b16 %v122
    %v580 = vunpack.c.h.b16 %v122
    %v581 = vunpack.c.l.b16 %v123
    %v582 = vunpack.c.h.b16 %v123
    %v583 = vunpack.c.l.b16 %v124
    %v584 = vunpack.c.h.b16 %v124
    %v585 = vunpack.c.l.b16 %v125
    %v586 = vunpack.c.h.b16 %v125
    %v587 = vunpack.c.l.b16 %v126
    %v588 = vunpack.c.h.b16 %v126
    %v589 = vunpack.c.l.b16 %v127
    %v590 = vunpack.c.h.b16 %v127
    %v591 = vunpack.c.l.b16 %v128
    %v592 = vunpack.c.h.b16 %v128
    %v593 = vunpack.c.l.b16 %v129
    %v594 = vunpack.c.h.b16 %v129
    %v595 = vunpack.c.l.b16 %v130
    %v596 = vunpack.c.h.b16 %v130
    %v597 = vunpack.c.l.b16 %v131
    %v598 = vunpack.c.h.b16 %v131
    %v599 = vunpack.c.l.b16 %v132
    %v600 = vunpack.c.h.b16 %v132
    %v601 = vunpack.c.l.b16 %v133
    %v602 = vunpack.c.h.b16 %v133
    %v603 = vunpack.c.l.b16 %v134
    %v604 = vunpack.c.h.b16 %v134
    %v605 = vunpack.c.l.b16 %v135
    %v606 = vunpack.c.h.b16 %v135
    %v607 = vunpack.c.l.b16 %v136
    %v608 = vunpack.c.h.b16 %v136
    %v609 = vunpack.c.l.b16 %v137
    %v610 = vunpack.c.h.b16 %v137
    %v611 = vunpack.c.l.b16 %v138
    %v612 = vunpack.c.h.b16 %v138
    %v613 = vunpack.c.l.b16 %v139
    %v614 = vunpack.c.h.b16 %v139
    %v615 = vunpack.c.l.b16 %v140
    %v616 = vunpack.c.h.b16 %v140
    %v617 = vunpack.c.l.b16 %v141
    %v618 = vunpack.c.h.b16 %v141
    %v619 = vunpack.c.l.b16 %v142
    %v620 = vunpack.c.h.b16 %v142
    %v621 = vunpack.c.l.b16 %v143
    %v622 = vunpack.c.h.b16 %v143
    %v623 = vunpack.c.l.b16 %v144
    %v624 = vunpack.c.h.b16 %v144
    %v625 = vunpack.c.l.b16 %v145
    %v626 = vunpack.c.h.b16 %v145
    %v627 = vunpack.c.l.b16 %v146
    %v628 = vunpack.c.h.b16 %v146
    %v629 = vunpack.c.l.b16 %v147
    %v630 = vunpack.c.h.b16 %v147
    %v631 = vunpack.c.l.b16 %v148
    %v632 = vunpack.c.h.b16 %v148
    %v633 = vunpack.c.l.b16 %v149
    %v634 = vunpack.c.h.b16 %v149
    %v635 = vunpack.c.l.b16 %v150
    %v636 = vunpack.c.h.b16 %v150
    %v637 = vunpack.c.l.b16 %v151
    %v638 = vunpack.c.h.b16 %v151
    %v639 = vunpack.c.l.b16 %v152
    %v640 = vunpack.c.h.b16 %v152
    %v641 = vunpack.c.l.b16 %v153
    %v642 = vunpack.c.h.b16 %v153
    %v643 = vunpack.c.l.b16 %v154
    %v644 = vunpack.c.h.b16 %v154
    %v645 = vunpack.c.l.b16 %v155
    %v646 = vunpack.c.h.b16 %v155
    %v647 = vunpack.c.l.b16 %v156
    %v648 = vunpack.c.h.b16 %v156
    %v649 = vunpack.c.l.b16 %v157
    %v650 = vunpack.c.h.b16 %v157
    %v651 = vunpack.c.l.b16 %v158
    %v652 = vunpack.c.h.b16 %v158
    %v653 = vunpack.c.l.b16 %v159
    %v654 = vunpack.c.h.b16 %v159
    %v655 = vunpack.c.l.b16 %v160
    %v656 = vunpack.c.h.b16 %v160
    %v657 = vunpack.c.l.b16 %v161
    %v658 = vunpack.c.h.b16 %v161
    %v659 = vunpack.c.l.b16 %v162
    %v660 = vunpack.c.h.b16 %v162
    %v661 = vunpack.c.l.b16 %v163
    %v662 = vunpack.c.h.b16 %v163
    %v663 = vunpack.c.l.b16 %v164
    %v664 = vunpack.c.h.b16 %v164
    %v665 = vunpack.c.l.b16 %v165
    %v666 = vunpack.c.h.b16 %v165
    %v667 = vunpack.c.l.b16 %v166
    %v668 = vunpack.c.h.b16 %v166
    %v669 = vunpack.c.l.b16 %v167
    %v670 = vunpack.c.h.b16 %v167
    %v671 = vunpack.c.l.b16 %v168
    %v672 = vunpack.c.h.b16 %v168
    %v673 = vunpack.c.l.b16 %v169
    %v674 = vunpack.c.h.b16 %v169
    %v675 = vunpack.c.l.b16 %v170
    %v676 = vunpack.c.h.b16 %v170
    %v677 = vunpack.c.l.b16 %v171
    %v678 = vunpack.c.h.b16 %v171
    %v679 = vunpack.c.l.b16 %v172
    %v680 = vunpack.c.h.b16 %v172
    %v681 = vunpack.c.l.b16 %v173
    %v682 = vunpack.c.h.b16 %v173
    %v683 = vunpack.c.l.b16 %v174
    %v684 = vunpack.c.h.b16 %v174
    %v685 = vunpack.c.l.b16 %v175
    %v686 = vunpack.c.h.b16 %v175
    %v687 = vunpack.c.l.b16 %v176
    %v688 = vunpack.c.h.b16 %v176
    %v689 = vunpack.c.l.b16 %v177
    %v690 = vunpack.c.h.b16 %v177
    %v691 = vunpack.c.l.b16 %v178
    %v692 = vunpack.c.h.b16 %v178
    %v693 = vunpack.c.l.b16 %v179
    %v694 = vunpack.c.h.b16 %v179
    %v695 = vunpack.c.l.b16 %v180
    %v696 = vunpack.c.h.b16 %v180
    %v697 = vunpack.c.l.b16 %v181
    %v698 = vunpack.c.h.b16 %v181
    %v699 = vunpack.c.l.b16 %v182
    %v700 = vunpack.c.h.b16 %v182
    %v701 = vunpack.c.l.b16 %v183
    %v702 = vunpack.c.h.b16 %v183
    %v703 = vunpack.c.l.b16 %v184
    %v704 = vunpack.c.h.b16 %v184
    %v705 = vunpack.c.l.b16 %v185
    %v706 = vunpack.c.h.b16 %v185
    %v707 = vunpack.c.l.b16 %v186
    %v708 = vunpack.c.h.b16 %v186
    %v709 = vunpack.c.l.b16 %v187
    %v710 = vunpack.c.h.b16 %v187
    %v711 = vunpack.c.l.b16 %v188
    %v712 = vunpack.c.h.b16 %v188
    %v713 = vunpack.c.l.b16 %v189
    %v714 = vunpack.c.h.b16 %v189
    %v715 = vunpack.c.l.b16 %v190
    %v716 = vunpack.c.h.b16 %v190
    %v717 = vunpack.c.l.b16 %v191
    %v718 = vunpack.c.h.b16 %v191
    %v719 = vunpack.c.l.b16 %v192
    %v720 = vunpack.c.h.b16 %v192
    %v721 = vunpack.c.l.b16 %v193
    %v722 = vunpack.c.h.b16 %v193
    %v723 = vunpack.c.l.b16 %v194
    %v724 = vunpack.c.h.b16 %v194
    %v725 = vunpack.c.l.b16 %v195
    %v726 = vunpack.c.h.b16 %v195
    %v727 = vunpack.c.l.b16 %v196
    %v728 = vunpack.c.h.b16 %v196
    %v729 = vunpack.c.l.b16 %v197
    %v730 = vunpack.c.h.b16 %v197
    %v731 = vunpack.c.l.b16 %v198
    %v732 = vunpack.c.h.b16 %v198
    %v733 = vunpack.c.l.b16 %v199
    %v734 = vunpack.c.h.b16 %v199
    %v735 = vunpack.c.l.b16 %v200
    %v736 = vunpack.c.h.b16 %v200
    %v737 = vunpack.c.l.b16 %v201
    %v738 = vunpack.c.h.b16 %v201
    %v739 = vunpack.c.l.b16 %v202
    %v740 = vunpack.c.h.b16 %v202
    %v741 = vunpack.c.l.b16 %v203
    %v742 = vunpack.c.h.b16 %v203
    %v743 = vunpack.c.l.b16 %v204
    %v744 = vunpack.c.h.b16 %v204
    %v745 = vunpack.c.l.b16 %v205
    %v746 = vunpack.c.h.b16 %v205
    %v747 = vunpack.c.l.b16 %v206
    %v748 = vunpack.c.h.b16 %v206
    %v749 = vunpack.c.l.b16 %v207
    %v750 = vunpack.c.h.b16 %v207
    %v751 = vunpack.c.l.b16 %v208
    %v752 = vunpack.c.h.b16 %v208
    %v753 = vunpack.c.l.b16 %v209
    %v754 = vunpack.c.h.b16 %v209
    %v755 = vunpack.c.l.b16 %v210
    %v756 = vunpack.c.h.b16 %v210
    %v757 = vunpack.c.l.b16 %v211
    %v758 = vunpack.c.h.b16 %v211
    %v759 = vunpack.c.l.b16 %v212
    %v760 = vunpack.c.h.b16 %v212
    %v761 = vunpack.c.l.b16 %v213
    %v762 = vunpack.c.h.b16 %v213
    %v763 = vunpack.c.l.b16 %v214
    %v764 = vunpack.c.h.b16 %v214
    %v765 = vunpack.c.l.b16 %v215
    %v766 = vunpack.c.h.b16 %v215
    %v767 = vunpack.c.l.b16 %v216
    %v768 = vunpack.c.h.b16 %v216
    %v769 = vunpack.c.l.b16 %v217
    %v770 = vunpack.c.h.b16 %v217
    %v771 = vunpack.c.l.b16 %v218
    %v772 = vunpack.c.h.b16 %v218
    %v773 = vunpack.c.l.b16 %v219
    %v774 = vunpack.c.h.b16 %v219
    %v775 = vunpack.c.l.b16 %v220
    %v776 = vunpack.c.h.b16 %v220
    %v777 = vunpack.c.l.b16 %v221
    %v778 = vunpack.c.h.b16 %v221
    %v779 = vunpack.c.l.b16 %v222
    %v780 = vunpack.c.h.b16 %v222
    %v781 = vunpack.c.l.b16 %v223
    %v782 = vunpack.c.h.b16 %v223
    %v783 = vunpack.c.l.b16 %v224
    %v784 = vunpack.c.h.b16 %v224
    %v785 = vunpack.c.l.b16 %v225
    %v786 = vunpack.c.h.b16 %v225
    %v787 = vunpack.c.l.b16 %v226
    %v788 = vunpack.c.h.b16 %v226
    %v789 = vunpack.c.l.b16 %v227
    %v790 = vunpack.c.h.b16 %v227
    %v791 = vunpack.c.l.b16 %v228
    %v792 = vunpack.c.h.b16 %v228
    %v793 = vunpack.c.l.b16 %v229
    %v794 = vunpack.c.h.b16 %v229
    %v795 = vunpack.c.l.b16 %v230
    %v796 = vunpack.c.h.b16 %v230
    %v797 = vunpack.c.l.b16 %v231
    %v798 = vunpack.c.h.b16 %v231
    %v799 = vunpack.c.l.b16 %v232
    %v800 = vunpack.c.h.b16 %v232
    %v801 = vunpack.c.l.b16 %v233
    %v802 = vunpack.c.h.b16 %v233
    %v803 = vunpack.c.l.b16 %v234
    %v804 = vunpack.c.h.b16 %v234
    %v805 = vunpack.c.l.b16 %v235
    %v806 = vunpack.c.h.b16 %v235
    %v807 = vunpack.c.l.b16 %v236
    %v808 = vunpack.c.h.b16 %v236
    %v809 = vunpack.c.l.b16 %v237
    %v810 = vunpack.c.h.b16 %v237
    %v811 = vunpack.c.l.b16 %v238
    %v812 = vunpack.c.h.b16 %v238
    %v813 = vunpack.c.l.b16 %v239
    %v814 = vunpack.c.h.b16 %v239
    %v815 = vunpack.c.l.b16 %v240
    %v816 = vunpack.c.h.b16 %v240
    %v817 = vunpack.c.l.b16 %v241
    %v818 = vunpack.c.h.b16 %v241
    %v819 = vunpack.c.l.b16 %v242
    %v820 = vunpack.c.h.b16 %v242
    %v821 = vunpack.c.l.b16 %v243
    %v822 = vunpack.c.h.b16 %v243
    %v823 = vunpack.c.l.b16 %v244
    %v824 = vunpack.c.h.b16 %v244
    %v825 = vunpack.c.l.b16 %v245
    %v826 = vunpack.c.h.b16 %v245
    %v827 = vunpack.c.l.b16 %v246
    %v828 = vunpack.c.h.b16 %v246
    %v829 = vunpack.c.l.b16 %v247
    %v830 = vunpack.c.h.b16 %v247
    %v831 = vunpack.c.l.b16 %v248
    %v832 = vunpack.c.h.b16 %v248
    %v833 = vunpack.c.l.b16 %v249
    %v834 = vunpack.c.h.b16 %v249
    %v835 = vunpack.c.l.b16 %v250
    %v836 = vunpack.c.h.b16 %v250
    %v837 = vunpack.c.l.b16 %v251
    %v838 = vunpack.c.h.b16 %v251
    %v839 = vunpack.c.l.b16 %v252
    %v840 = vunpack.c.h.b16 %v252
    %v841 = vunpack.c.l.b16 %v253
    %v842 = vunpack.c.h.b16 %v253
    %v843 = vunpack.c.l.b16 %v254
    %v844 = vunpack.c.h.b16 %v254
    %v845 = vunpack.c.l.b16 %v255
    %v846 = vunpack.c.h.b16 %v255
    %v847 = vunpack.c.l.b16 %v256
    %v848 = vunpack.c.h.b16 %v256
    %v849 = vunpack.c.l.b16 %v257
    %v850 = vunpack.c.h.b16 %v257
    %v851 = vunpack.c.l.b16 %v258
    %v852 = vunpack.c.h.b16 %v258
    %v853 = vunpack.c.l.b16 %v259
    %v854 = vunpack.c.h.b16 %v259
    %v855 = vunpack.c.l.b16 %v260
    %v856 = vunpack.c.h.b16 %v260
    %v857 = vunpack.c.l.b16 %v261
    %v858 = vunpack.c.h.b16 %v261
    %v859 = vunpack.c.l.b16 %v262
    %v860 = vunpack.c.h.b16 %v262
    %v861 = vpack.c.b16 %v473, %v469
    %v862 = vpack.c.b16 %v474, %v470
    %v863 = vpack.c.b16 %v475, %v471
    %v864 = vpack.c.b16 %v476, %v472
    %v865 = vpack.c.b16 %v481, %v477
    %v866 = vpack.c.b16 %v482, %v478
    %v867 = vpack.c.b16 %v483, %v479
    %v868 = vpack.c.b16 %v484, %v480
    %v869 = vpack.c.b16 %v489, %v485
    %v870 = vpack.c.b16 %v490, %v486
    %v871 = vpack.c.b16 %v491, %v487
    %v872 = vpack.c.b16 %v492, %v488
    %v873 = vpack.c.b16 %v497, %v493
    %v874 = vpack.c.b16 %v498, %v494
    %v875 = vpack.c.b16 %v499, %v495
    %v876 = vpack.c.b16 %v500, %v496
    %v877 = vpack.c.b16 %v505, %v501
    %v878 = vpack.c.b16 %v506, %v502
    %v879 = vpack.c.b16 %v507, %v503
    %v880 = vpack.c.b16 %v508, %v504
    %v881 = vpack.c.b16 %v513, %v509
    %v882 = vpack.c.b16 %v514, %v510
    %v883 = vpack.c.b16 %v515, %v511
    %v884 = vpack.c.b16 %v516, %v512
    %v885 = vpack.c.b16 %v521, %v517
    %v886 = vpack.c.b16 %v522, %v518
    %v887 = vpack.c.b16 %v523, %v519
    %v888 = vpack.c.b16 %v524, %v520
    %v889 = vpack.c.b16 %v529, %v525
    %v890 = vpack.c.b16 %v530, %v526
    %v891 = vpack.c.b16 %v531, %v527
    %v892 = vpack.c.b16 %v532, %v528
    %v893 = vpack.c.b16 %v537, %v533
    %v894 = vpack.c.b16 %v538, %v534
    %v895 = vpack.c.b16 %v539, %v535
    %v896 = vpack.c.b16 %v540, %v536
    %v897 = vpack.c.b16 %v545, %v541
    %v898 = vpack.c.b16 %v546, %v542
    %v899 = vpack.c.b16 %v547, %v543
    %v900 = vpack.c.b16 %v548, %v544
    %v901 = vpack.c.b16 %v553, %v549
    %v902 = vpack.c.b16 %v554, %v550
    %v903 = vpack.c.b16 %v555, %v551
    %v904 = vpack.c.b16 %v556, %v552
    %v905 = vpack.c.b16 %v561, %v557
    %v906 = vpack.c.b16 %v562, %v558
    %v907 = vpack.c.b16 %v563, %v559
    %v908 = vpack.c.b16 %v564, %v560
    %v909 = vpack.c.b16 %v569, %v565
    %v910 = vpack.c.b16 %v570, %v566
    %v911 = vpack.c.b16 %v571, %v567
    %v912 = vpack.c.b16 %v572, %v568
    %v913 = vpack.c.b16 %v577, %v573
    %v914 = vpack.c.b16 %v578, %v574
    %v915 = vpack.c.b16 %v579, %v575
    %v916 = vpack.c.b16 %v580, %v576
    %v917 = vpack.c.b16 %v585, %v581
    %v918 = vpack.c.b16 %v586, %v582
    %v919 = vpack.c.b16 %v587, %v583
    %v920 = vpack.c.b16 %v588, %v584
    %v921 = vpack.c.b16 %v593, %v589
    %v922 = vpack.c.b16 %v594, %v590
    %v923 = vpack.c.b16 %v595, %v591
    %v924 = vpack.c.b16 %v596, %v592
    %v925 = vpack.c.b16 %v601, %v597
    %v926 = vpack.c.b16 %v602, %v598
    %v927 = vpack.c.b16 %v603, %v599
    %v928 = vpack.c.b16 %v604, %v600
    %v929 = vpack.c.b16 %v609, %v605
    %v930 = vpack.c.b16 %v610, %v606
    %v931 = vpack.c.b16 %v611, %v607
    %v932 = vpack.c.b16 %v612, %v608
    %v933 = vpack.c.b16 %v617, %v613
    %v934 = vpack.c.b16 %v618, %v614
    %v935 = vpack.c.b16 %v619, %v615
    %v936 = vpack.c.b16 %v620, %v616
    %v937 = vpack.c.b16 %v625, %v621
    %v938 = vpack.c.b16 %v626, %v622
    %v939 = vpack.c.b16 %v627, %v623
    %v940 = vpack.c.b16 %v628, %v624
    %v941 = vpack.c.b16 %v633, %v629
    %v942 = vpack.c.b16 %v634, %v630
    %v943 = vpack.c.b16 %v635, %v631
    %v944 = vpack.c.b16 %v636, %v632
    %v945 = vpack.c.b16 %v641, %v637
    %v946 = vpack.c.b16 %v642, %v638
    %v947 = vpack.c.b16 %v643, %v639
    %v948 = vpack.c.b16 %v644, %v640
    %v949 = vpack.c.b16 %v649, %v645
    %v950 = vpack.c.b16 %v650, %v646
    %v951 = vpack.c.b16 %v651, %v647
    %v952 = vpack.c.b16 %v652, %v648
    %v953 = vpack.c.b16 %v657, %v653
    %v954 = vpack.c.b16 %v658, %v654
    %v955 = vpack.c.b16 %v659, %v655
    %v956 = vpack.c.b16 %v660, %v656
    %v957 = vpack.c.b16 %v665, %v661
    %v958 = vpack.c.b16 %v666, %v662
    %v959 = vpack.c.b16 %v667, %v663
    %v960 = vpack.c.b16 %v668, %v664
    %v961 = vpack.c.b16 %v673, %v669
    %v962 = vpack.c.b16 %v674, %v670
    %v963 = vpack.c.b16 %v675, %v671
    %v964 = vpack.c.b16 %v676, %v672
    %v965 = vpack.c.b16 %v681, %v677
    %v966 = vpack.c.b16 %v682, %v678
    %v967 = vpack.c.b16 %v683, %v679
    %v968 = vpack.c.b16 %v684, %v680
    %v969 = vpack.c.b16 %v689, %v685
    %v970 = vpack.c.b16 %v690, %v686
    %v971 = vpack.c.b16 %v691, %v687
    %v972 = vpack.c.b16 %v692, %v688
    %v973 = vpack.c.b16 %v697, %v693
    %v974 = vpack.c.b16 %v698, %v694
    %v975 = vpack.c.b16 %v699, %v695
    %v976 = vpack.c.b16 %v700, %v696
    %v977 = vpack.c.b16 %v705, %v701
    %v978 = vpack.c.b16 %v706, %v702
    %v979 = vpack.c.b16 %v707, %v703
    %v980 = vpack.c.b16 %v708, %v704
    %v981 = vpack.c.b16 %v713, %v709
    %v982 = vpack.c.b16 %v714, %v710
    %v983 = vpack.c.b16 %v715, %v711
    %v984 = vpack.c.b16 %v716, %v712
    %v985 = vpack.c.b16 %v721, %v717
    %v986 = vpack.c.b16 %v722, %v718
    %v987 = vpack.c.b16 %v723, %v719
    %v988 = vpack.c.b16 %v724, %v720
    %v989 = vpack.c.b16 %v729, %v725
    %v990 = vpack.c.b16 %v730, %v726
    %v991 = vpack.c.b16 %v731, %v727
    %v992 = vpack.c.b16 %v732, %v728
    %v993 = vpack.c.b16 %v737, %v733
    %v994 = vpack.c.b16 %v738, %v734
    %v995 = vpack.c.b16 %v739, %v735
    %v996 = vpack.c.b16 %v740, %v736
    %v997 = vpack.c.b16 %v745, %v741
    %v998 = vpack.c.b16 %v746, %v742
    %v999 = vpack.c.b16 %v747, %v743
    %v1000 = vpack.c.b16 %v748, %v744
    %v1001 = vpack.c.b16 %v753, %v749
    %v1002 = vpack.c.b16 %v754, %v750
    %v1003 = vpack.c.b16 %v755, %v751
    %v1004 = vpack.c.b16 %v756, %v752
    %v1005 = vpack.c.b16 %v761, %v757
    %v1006 = vpack.c.b16 %v762, %v758
    %v1007 = vpack.c.b16 %v763, %v759
    %v1008 = vpack.c.b16 %v764, %v760
    %v1009 = vpack.c.b16 %v769, %v765
    %v1010 = vpack.c.b16 %v770, %v766
    %v1011 = vpack.c.b16 %v771, %v767
    %v1012 = vpack.c.b16 %v772, %v768
    %v1013 = vpack.c.b16 %v777, %v773
    %v1014 = vpack.c.b16 %v778, %v774
    %v1015 = vpack.c.b16 %v779, %v775
    %v1016 = vpack.c.b16 %v780, %v776
    %v1017 = vpack.c.b16 %v785, %v781
    %v1018 = vpack.c.b16 %v786, %v782
    %v1019 = vpack.c.b16 %v787, %v783
    %v1020 = vpack.c.b16 %v788, %v784
    %v1021 = vpack.c.b16 %v793, %v789
    %v1022 = vpack.c.b16 %v794, %v790
    %v1023 = vpack.c.b16 %v795, %v791
    %v1024 = vpack.c.b16 %v796, %v792
    %v1025 = vpack.c.b16 %v801, %v797
    %v1026 = vpack.c.b16 %v802, %v798
    %v1027 = vpack.c.b16 %v803, %v799
    %v1028 = vpack.c.b16 %v804, %v800
    %v1029 = vpack.c.b16 %v809, %v805
    %v1030 = vpack.c.b16 %v810, %v806
    %v1031 = vpack.c.b16 %v811, %v807
    %v1032 = vpack.c.b16 %v812, %v808
    %v1033 = vpack.c.b16 %v817, %v813
    %v1034 = vpack.c.b16 %v818, %v814
    %v1035 = vpack.c.b16 %v819, %v815
    %v1036 = vpack.c.b16 %v820, %v816
    %v1037 = vpack.c.b16 %v825, %v821
    %v1038 = vpack.c.b16 %v826, %v822
    %v1039 = vpack.c.b16 %v827, %v823
    %v1040 = vpack.c.b16 %v828, %v824
    %v1041 = vpack.c.b16 %v833, %v829
    %v1042 = vpack.c.b16 %v834, %v830
    %v1043 = vpack.c.b16 %v835, %v831
    %v1044 = vpack.c.b16 %v836, %v832
    %v1045 = vpack.c.b16 %v841, %v837
    %v1046 = vpack.c.b16 %v842, %v838
    %v1047 = vpack.c.b16 %v843, %v839
    %v1048 = vpack.c.b16 %v844, %v840
    %v1049 = vpack.c.b16 %v849, %v845
    %v1050 = vpack.c.b16 %v850, %v846
    %v1051 = vpack.c.b16 %v851, %v847
    %v1052 = vpack.c.b16 %v852, %v848
    %v1053 = vpack.c.b16 %v857, %v853
    %v1054 = vpack.c.b16 %v858, %v854
    %v1055 = vpack.c.b16 %v859, %v855
    %v1056 = vpack.c.b16 %v860, %v856
    %vm1253 = vcmask 130048
    %v1255 = vsel %vm1253, %v66, 0
    %1257 = vmatpush.bf16.msra.mxu0 %v889
    %1258 = vmatpush.bf16.msra.mxu0 %v885
    %1259 = vmatpush.bf16.msra.mxu0 %v881
    %1260 = vmatpush.bf16.msra.mxu0 %v877
    %1261 = vmatpush.bf16.msra.mxu0 %v873
    %1262 = vmatpush.bf16.msra.mxu0 %v869
    %1263 = vmatpush.bf16.msra.mxu0 %v865
    %1264 = vmatpush.bf16.msra.mxu0 %v861
    %1265 = vmatmul.bf16.gmra.mxu0 %v60
    %v1266 = vpop.f32.mrf.mxu0
    %v1267 = vadd.f32 %v265, %v1266
    %v1268 = vpop.f32.mrf.mxu0
    %1269 = vdwg.mxu0
    %1270 = vmatpush.bf16.msra.mxu0 %v921
    %1271 = vmatpush.bf16.msra.mxu0 %v917
    %1272 = vmatpush.bf16.msra.mxu0 %v913
    %1273 = vmatpush.bf16.msra.mxu0 %v909
    %1274 = vmatpush.bf16.msra.mxu0 %v905
    %1275 = vmatpush.bf16.msra.mxu0 %v901
    %1276 = vmatpush.bf16.msra.mxu0 %v897
    %1277 = vmatpush.bf16.msra.mxu0 %v893
    %1278 = vmatmul.bf16.gmra.mxu0 %v61
    %v1279 = vpop.f32.mrf.mxu0
    %v1280 = vadd.f32 %v1267, %v1279
    %v1281 = vpop.f32.mrf.mxu0
    %1282 = vdwg.mxu0
    %1283 = vmatpush.bf16.msra.mxu0 %v953
    %1284 = vmatpush.bf16.msra.mxu0 %v949
    %1285 = vmatpush.bf16.msra.mxu0 %v945
    %1286 = vmatpush.bf16.msra.mxu0 %v941
    %1287 = vmatpush.bf16.msra.mxu0 %v937
    %1288 = vmatpush.bf16.msra.mxu0 %v933
    %1289 = vmatpush.bf16.msra.mxu0 %v929
    %1290 = vmatpush.bf16.msra.mxu0 %v925
    %1291 = vmatmul.bf16.gmra.mxu0 %v62
    %v1292 = vpop.f32.mrf.mxu0
    %v1293 = vadd.f32 %v1280, %v1292
    %v1294 = vpop.f32.mrf.mxu0
    %1295 = vdwg.mxu0
    %1296 = vmatpush.bf16.msra.mxu0 %v985
    %1297 = vmatpush.bf16.msra.mxu0 %v981
    %1298 = vmatpush.bf16.msra.mxu0 %v977
    %1299 = vmatpush.bf16.msra.mxu0 %v973
    %1300 = vmatpush.bf16.msra.mxu0 %v969
    %1301 = vmatpush.bf16.msra.mxu0 %v965
    %1302 = vmatpush.bf16.msra.mxu0 %v961
    %1303 = vmatpush.bf16.msra.mxu0 %v957
    %1304 = vmatmul.bf16.gmra.mxu0 %v63
    %v1305 = vpop.f32.mrf.mxu0
    %v1306 = vadd.f32 %v1293, %v1305
    %v1307 = vpop.f32.mrf.mxu0
    %1308 = vdwg.mxu0
    %1309 = vmatpush.bf16.msra.mxu0 %v1017
    %1310 = vmatpush.bf16.msra.mxu0 %v1013
    %1311 = vmatpush.bf16.msra.mxu0 %v1009
    %1312 = vmatpush.bf16.msra.mxu0 %v1005
    %1313 = vmatpush.bf16.msra.mxu0 %v1001
    %1314 = vmatpush.bf16.msra.mxu0 %v997
    %1315 = vmatpush.bf16.msra.mxu0 %v993
    %1316 = vmatpush.bf16.msra.mxu0 %v989
    %1317 = vmatmul.bf16.gmra.mxu0 %v64
    %v1318 = vpop.f32.mrf.mxu0
    %v1319 = vadd.f32 %v1306, %v1318
    %v1320 = vpop.f32.mrf.mxu0
    %1321 = vdwg.mxu0
    %1322 = vmatpush.bf16.msra.mxu0 %v1049
    %1323 = vmatpush.bf16.msra.mxu0 %v1045
    %1324 = vmatpush.bf16.msra.mxu0 %v1041
    %1325 = vmatpush.bf16.msra.mxu0 %v1037
    %1326 = vmatpush.bf16.msra.mxu0 %v1033
    %1327 = vmatpush.bf16.msra.mxu0 %v1029
    %1328 = vmatpush.bf16.msra.mxu0 %v1025
    %1329 = vmatpush.bf16.msra.mxu0 %v1021
    %1330 = vmatmul.bf16.gmra.mxu0 %v65
    %v1331 = vpop.f32.mrf.mxu0
    %v1332 = vadd.f32 %v1319, %v1331
    %v1333 = vpop.f32.mrf.mxu0
    %1334 = vdwg.mxu0
    %1335 = vmatpush.bf16.msra.mxu0 0
    %1336 = vmatpush.bf16.msra.mxu0 0
    %1337 = vmatpush.bf16.msra.mxu0 0
    %1338 = vmatpush.bf16.msra.mxu0 0
    %1339 = vmatpush.bf16.msra.mxu0 0
    %1340 = vmatpush.bf16.msra.mxu0 0
    %1341 = vmatpush.bf16.msra.mxu0 0
    %1342 = vmatpush.bf16.msra.mxu0 %v1053
    %1343 = vmatmul.bf16.gmra.mxu0 %v1255
    %v1344 = vpop.f32.mrf.mxu0
    %v1345 = vadd.f32 %v1332, %v1344
    %v1346 = vpop.f32.mrf.mxu0
    %1347 = vdwg.mxu0
    %1348 = vmatpush.bf16.msra.mxu0 %v890
    %1349 = vmatpush.bf16.msra.mxu0 %v886
    %1350 = vmatpush.bf16.msra.mxu0 %v882
    %1351 = vmatpush.bf16.msra.mxu0 %v878
    %1352 = vmatpush.bf16.msra.mxu0 %v874
    %1353 = vmatpush.bf16.msra.mxu0 %v870
    %1354 = vmatpush.bf16.msra.mxu0 %v866
    %1355 = vmatpush.bf16.msra.mxu0 %v862
    %1356 = vmatmul.bf16.gmra.mxu0 %v60
    %v1357 = vpop.f32.mrf.mxu0
    %v1358 = vadd.f32 %v266, %v1357
    %v1359 = vpop.f32.mrf.mxu0
    %1360 = vdwg.mxu0
    %1361 = vmatpush.bf16.msra.mxu0 %v922
    %1362 = vmatpush.bf16.msra.mxu0 %v918
    %1363 = vmatpush.bf16.msra.mxu0 %v914
    %1364 = vmatpush.bf16.msra.mxu0 %v910
    %1365 = vmatpush.bf16.msra.mxu0 %v906
    %1366 = vmatpush.bf16.msra.mxu0 %v902
    %1367 = vmatpush.bf16.msra.mxu0 %v898
    %1368 = vmatpush.bf16.msra.mxu0 %v894
    %1369 = vmatmul.bf16.gmra.mxu0 %v61
    %v1370 = vpop.f32.mrf.mxu0
    %v1371 = vadd.f32 %v1358, %v1370
    %v1372 = vpop.f32.mrf.mxu0
    %1373 = vdwg.mxu0
    %1374 = vmatpush.bf16.msra.mxu0 %v954
    %1375 = vmatpush.bf16.msra.mxu0 %v950
    %1376 = vmatpush.bf16.msra.mxu0 %v946
    %1377 = vmatpush.bf16.msra.mxu0 %v942
    %1378 = vmatpush.bf16.msra.mxu0 %v938
    %1379 = vmatpush.bf16.msra.mxu0 %v934
    %1380 = vmatpush.bf16.msra.mxu0 %v930
    %1381 = vmatpush.bf16.msra.mxu0 %v926
    %1382 = vmatmul.bf16.gmra.mxu0 %v62
    %v1383 = vpop.f32.mrf.mxu0
    %v1384 = vadd.f32 %v1371, %v1383
    %v1385 = vpop.f32.mrf.mxu0
    %1386 = vdwg.mxu0
    %1387 = vmatpush.bf16.msra.mxu0 %v986
    %1388 = vmatpush.bf16.msra.mxu0 %v982
    %1389 = vmatpush.bf16.msra.mxu0 %v978
    %1390 = vmatpush.bf16.msra.mxu0 %v974
    %1391 = vmatpush.bf16.msra.mxu0 %v970
    %1392 = vmatpush.bf16.msra.mxu0 %v966
    %1393 = vmatpush.bf16.msra.mxu0 %v962
    %1394 = vmatpush.bf16.msra.mxu0 %v958
    %1395 = vmatmul.bf16.gmra.mxu0 %v63
    %v1396 = vpop.f32.mrf.mxu0
    %v1397 = vadd.f32 %v1384, %v1396
    %v1398 = vpop.f32.mrf.mxu0
    %1399 = vdwg.mxu0
    %1400 = vmatpush.bf16.msra.mxu0 %v1018
    %1401 = vmatpush.bf16.msra.mxu0 %v1014
    %1402 = vmatpush.bf16.msra.mxu0 %v1010
    %1403 = vmatpush.bf16.msra.mxu0 %v1006
    %1404 = vmatpush.bf16.msra.mxu0 %v1002
    %1405 = vmatpush.bf16.msra.mxu0 %v998
    %1406 = vmatpush.bf16.msra.mxu0 %v994
    %1407 = vmatpush.bf16.msra.mxu0 %v990
    %1408 = vmatmul.bf16.gmra.mxu0 %v64
    %v1409 = vpop.f32.mrf.mxu0
    %v1410 = vadd.f32 %v1397, %v1409
    %v1411 = vpop.f32.mrf.mxu0
    %1412 = vdwg.mxu0
    %1413 = vmatpush.bf16.msra.mxu0 %v1050
    %1414 = vmatpush.bf16.msra.mxu0 %v1046
    %1415 = vmatpush.bf16.msra.mxu0 %v1042
    %1416 = vmatpush.bf16.msra.mxu0 %v1038
    %1417 = vmatpush.bf16.msra.mxu0 %v1034
    %1418 = vmatpush.bf16.msra.mxu0 %v1030
    %1419 = vmatpush.bf16.msra.mxu0 %v1026
    %1420 = vmatpush.bf16.msra.mxu0 %v1022
    %1421 = vmatmul.bf16.gmra.mxu0 %v65
    %v1422 = vpop.f32.mrf.mxu0
    %v1423 = vadd.f32 %v1410, %v1422
    %v1424 = vpop.f32.mrf.mxu0
    %1425 = vdwg.mxu0
    %1426 = vmatpush.bf16.msra.mxu0 0
    %1427 = vmatpush.bf16.msra.mxu0 0
    %1428 = vmatpush.bf16.msra.mxu0 0
    %1429 = vmatpush.bf16.msra.mxu0 0
    %1430 = vmatpush.bf16.msra.mxu0 0
    %1431 = vmatpush.bf16.msra.mxu0 0
    %1432 = vmatpush.bf16.msra.mxu0 0
    %1433 = vmatpush.bf16.msra.mxu0 %v1054
    %1434 = vmatmul.bf16.gmra.mxu0 %v1255
    %v1435 = vpop.f32.mrf.mxu0
    %v1436 = vadd.f32 %v1423, %v1435
    %v1437 = vpop.f32.mrf.mxu0
    %1438 = vdwg.mxu0
    %1439 = vmatpush.bf16.msra.mxu0 %v891
    %1440 = vmatpush.bf16.msra.mxu0 %v887
    %1441 = vmatpush.bf16.msra.mxu0 %v883
    %1442 = vmatpush.bf16.msra.mxu0 %v879
    %1443 = vmatpush.bf16.msra.mxu0 %v875
    %1444 = vmatpush.bf16.msra.mxu0 %v871
    %1445 = vmatpush.bf16.msra.mxu0 %v867
    %1446 = vmatpush.bf16.msra.mxu0 %v863
    %1447 = vmatmul.bf16.gmra.mxu0 %v60
    %v1448 = vpop.f32.mrf.mxu0
    %v1449 = vadd.f32 %v267, %v1448
    %v1450 = vpop.f32.mrf.mxu0
    %1451 = vdwg.mxu0
    %1452 = vmatpush.bf16.msra.mxu0 %v923
    %1453 = vmatpush.bf16.msra.mxu0 %v919
    %1454 = vmatpush.bf16.msra.mxu0 %v915
    %1455 = vmatpush.bf16.msra.mxu0 %v911
    %1456 = vmatpush.bf16.msra.mxu0 %v907
    %1457 = vmatpush.bf16.msra.mxu0 %v903
    %1458 = vmatpush.bf16.msra.mxu0 %v899
    %1459 = vmatpush.bf16.msra.mxu0 %v895
    %1460 = vmatmul.bf16.gmra.mxu0 %v61
    %v1461 = vpop.f32.mrf.mxu0
    %v1462 = vadd.f32 %v1449, %v1461
    %v1463 = vpop.f32.mrf.mxu0
    %1464 = vdwg.mxu0
    %1465 = vmatpush.bf16.msra.mxu0 %v955
    %1466 = vmatpush.bf16.msra.mxu0 %v951
    %1467 = vmatpush.bf16.msra.mxu0 %v947
    %1468 = vmatpush.bf16.msra.mxu0 %v943
    %1469 = vmatpush.bf16.msra.mxu0 %v939
    %1470 = vmatpush.bf16.msra.mxu0 %v935
    %1471 = vmatpush.bf16.msra.mxu0 %v931
    %1472 = vmatpush.bf16.msra.mxu0 %v927
    %1473 = vmatmul.bf16.gmra.mxu0 %v62
    %v1474 = vpop.f32.mrf.mxu0
    %v1475 = vadd.f32 %v1462, %v1474
    %v1476 = vpop.f32.mrf.mxu0
    %1477 = vdwg.mxu0
    %1478 = vmatpush.bf16.msra.mxu0 %v987
    %1479 = vmatpush.bf16.msra.mxu0 %v983
    %1480 = vmatpush.bf16.msra.mxu0 %v979
    %1481 = vmatpush.bf16.msra.mxu0 %v975
    %1482 = vmatpush.bf16.msra.mxu0 %v971
    %1483 = vmatpush.bf16.msra.mxu0 %v967
    %1484 = vmatpush.bf16.msra.mxu0 %v963
    %1485 = vmatpush.bf16.msra.mxu0 %v959
    %1486 = vmatmul.bf16.gmra.mxu0 %v63
    %v1487 = vpop.f32.mrf.mxu0
    %v1488 = vadd.f32 %v1475, %v1487
    %v1489 = vpop.f32.mrf.mxu0
    %1490 = vdwg.mxu0
    %1491 = vmatpush.bf16.msra.mxu0 %v1019
    %1492 = vmatpush.bf16.msra.mxu0 %v1015
    %1493 = vmatpush.bf16.msra.mxu0 %v1011
    %1494 = vmatpush.bf16.msra.mxu0 %v1007
    %1495 = vmatpush.bf16.msra.mxu0 %v1003
    %1496 = vmatpush.bf16.msra.mxu0 %v999
    %1497 = vmatpush.bf16.msra.mxu0 %v995
    %1498 = vmatpush.bf16.msra.mxu0 %v991
    %1499 = vmatmul.bf16.gmra.mxu0 %v64
    %v1500 = vpop.f32.mrf.mxu0
    %v1501 = vadd.f32 %v1488, %v1500
    %v1502 = vpop.f32.mrf.mxu0
    %1503 = vdwg.mxu0
    %1504 = vmatpush.bf16.msra.mxu0 %v1051
    %1505 = vmatpush.bf16.msra.mxu0 %v1047
    %1506 = vmatpush.bf16.msra.mxu0 %v1043
    %1507 = vmatpush.bf16.msra.mxu0 %v1039
    %1508 = vmatpush.bf16.msra.mxu0 %v1035
    %1509 = vmatpush.bf16.msra.mxu0 %v1031
    %1510 = vmatpush.bf16.msra.mxu0 %v1027
    %1511 = vmatpush.bf16.msra.mxu0 %v1023
    %1512 = vmatmul.bf16.gmra.mxu0 %v65
    %v1513 = vpop.f32.mrf.mxu0
    %v1514 = vadd.f32 %v1501, %v1513
    %v1515 = vpop.f32.mrf.mxu0
    %1516 = vdwg.mxu0
    %1517 = vmatpush.bf16.msra.mxu0 0
    %1518 = vmatpush.bf16.msra.mxu0 0
    %1519 = vmatpush.bf16.msra.mxu0 0
    %1520 = vmatpush.bf16.msra.mxu0 0
    %1521 = vmatpush.bf16.msra.mxu0 0
    %1522 = vmatpush.bf16.msra.mxu0 0
    %1523 = vmatpush.bf16.msra.mxu0 0
    %1524 = vmatpush.bf16.msra.mxu0 %v1055
    %1525 = vmatmul.bf16.gmra.mxu0 %v1255
    %v1526 = vpop.f32.mrf.mxu0
    %v1527 = vadd.f32 %v1514, %v1526
    %v1528 = vpop.f32.mrf.mxu0
    %1529 = vdwg.mxu0
    %1530 = vmatpush.bf16.msra.mxu0 %v892
    %1531 = vmatpush.bf16.msra.mxu0 %v888
    %1532 = vmatpush.bf16.msra.mxu0 %v884
    %1533 = vmatpush.bf16.msra.mxu0 %v880
    %1534 = vmatpush.bf16.msra.mxu0 %v876
    %1535 = vmatpush.bf16.msra.mxu0 %v872
    %1536 = vmatpush.bf16.msra.mxu0 %v868
    %1537 = vmatpush.bf16.msra.mxu0 %v864
    %1538 = vmatmul.bf16.gmra.mxu0 %v60
    %v1539 = vpop.f32.mrf.mxu0
    %v1540 = vadd.f32 %v268, %v1539
    %v1541 = vpop.f32.mrf.mxu0
    %1542 = vdwg.mxu0
    %1543 = vmatpush.bf16.msra.mxu0 %v924
    %1544 = vmatpush.bf16.msra.mxu0 %v920
    %1545 = vmatpush.bf16.msra.mxu0 %v916
    %1546 = vmatpush.bf16.msra.mxu0 %v912
    %1547 = vmatpush.bf16.msra.mxu0 %v908
    %1548 = vmatpush.bf16.msra.mxu0 %v904
    %1549 = vmatpush.bf16.msra.mxu0 %v900
    %1550 = vmatpush.bf16.msra.mxu0 %v896
    %1551 = vmatmul.bf16.gmra.mxu0 %v61
    %v1552 = vpop.f32.mrf.mxu0
    %v1553 = vadd.f32 %v1540, %v1552
    %v1554 = vpop.f32.mrf.mxu0
    %1555 = vdwg.mxu0
    %1556 = vmatpush.bf16.msra.mxu0 %v956
    %1557 = vmatpush.bf16.msra.mxu0 %v952
    %1558 = vmatpush.bf16.msra.mxu0 %v948
    %1559 = vmatpush.bf16.msra.mxu0 %v944
    %1560 = vmatpush.bf16.msra.mxu0 %v940
    %1561 = vmatpush.bf16.msra.mxu0 %v936
    %1562 = vmatpush.bf16.msra.mxu0 %v932
    %1563 = vmatpush.bf16.msra.mxu0 %v928
    %1564 = vmatmul.bf16.gmra.mxu0 %v62
    %v1565 = vpop.f32.mrf.mxu0
    %v1566 = vadd.f32 %v1553, %v1565
    %v1567 = vpop.f32.mrf.mxu0
    %1568 = vdwg.mxu0
    %1569 = vmatpush.bf16.msra.mxu0 %v988
    %1570 = vmatpush.bf16.msra.mxu0 %v984
    %1571 = vmatpush.bf16.msra.mxu0 %v980
    %1572 = vmatpush.bf16.msra.mxu0 %v976
    %1573 = vmatpush.bf16.msra.mxu0 %v972
    %1574 = vmatpush.bf16.msra.mxu0 %v968
    %1575 = vmatpush.bf16.msra.mxu0 %v964
    %1576 = vmatpush.bf16.msra.mxu0 %v960
    %1577 = vmatmul.bf16.gmra.mxu0 %v63
    %v1578 = vpop.f32.mrf.mxu0
    %v1579 = vadd.f32 %v1566, %v1578
    %v1580 = vpop.f32.mrf.mxu0
    %1581 = vdwg.mxu0
    %1582 = vmatpush.bf16.msra.mxu0 %v1020
    %1583 = vmatpush.bf16.msra.mxu0 %v1016
    %1584 = vmatpush.bf16.msra.mxu0 %v1012
    %1585 = vmatpush.bf16.msra.mxu0 %v1008
    %1586 = vmatpush.bf16.msra.mxu0 %v1004
    %1587 = vmatpush.bf16.msra.mxu0 %v1000
    %1588 = vmatpush.bf16.msra.mxu0 %v996
    %1589 = vmatpush.bf16.msra.mxu0 %v992
    %1590 = vmatmul.bf16.gmra.mxu0 %v64
    %v1591 = vpop.f32.mrf.mxu0
    %v1592 = vadd.f32 %v1579, %v1591
    %v1593 = vpop.f32.mrf.mxu0
    %1594 = vdwg.mxu0
    %1595 = vmatpush.bf16.msra.mxu0 %v1052
    %1596 = vmatpush.bf16.msra.mxu0 %v1048
    %1597 = vmatpush.bf16.msra.mxu0 %v1044
    %1598 = vmatpush.bf16.msra.mxu0 %v1040
    %1599 = vmatpush.bf16.msra.mxu0 %v1036
    %1600 = vmatpush.bf16.msra.mxu0 %v1032
    %1601 = vmatpush.bf16.msra.mxu0 %v1028
    %1602 = vmatpush.bf16.msra.mxu0 %v1024
    %1603 = vmatmul.bf16.gmra.mxu0 %v65
    %v1604 = vpop.f32.mrf.mxu0
    %v1605 = vadd.f32 %v1592, %v1604
    %v1606 = vpop.f32.mrf.mxu0
    %1607 = vdwg.mxu0
    %1608 = vmatpush.bf16.msra.mxu0 0
    %1609 = vmatpush.bf16.msra.mxu0 0
    %1610 = vmatpush.bf16.msra.mxu0 0
    %1611 = vmatpush.bf16.msra.mxu0 0
    %1612 = vmatpush.bf16.msra.mxu0 0
    %1613 = vmatpush.bf16.msra.mxu0 0
    %1614 = vmatpush.bf16.msra.mxu0 0
    %1615 = vmatpush.bf16.msra.mxu0 %v1056
    %1616 = vmatmul.bf16.gmra.mxu0 %v1255
    %v1617 = vpop.f32.mrf.mxu0
    %v1618 = vadd.f32 %v1605, %v1617
    %v1619 = vpop.f32.mrf.mxu0
    %1620 = vdwg.mxu0
    %v1621 = vmax.f32 %v1345, 0.0
    %v1622 = vmax.f32 %v1436, 0.0
    %v1623 = vmax.f32 %v1527, 0.0
    %v1624 = vmax.f32 %v1618, 0.0
    %v1625 = vpack.c.bf16 %v1621, %v1621
    %v1626 = vpack.c.bf16 %v1622, %v1622
    %v1627 = vpack.c.bf16 %v1623, %v1623
    %v1628 = vpack.c.bf16 %v1624, %v1624
    %v1629 = vld [vmem:[%s4] sm:$0xff]
    %v1630 = vld [vmem:[%s4 + $0x8] sm:$0xff]
    %v1631 = vld [vmem:[%s4 + $0x10] sm:$0xff]
    %v1632 = vld [vmem:[%s4 + $0x18] sm:$0xff]
    %v1633 = vld [vmem:[%s4 + $0x20] sm:$0xff]
    %v1634 = vld [vmem:[%s4 + $0x28] sm:$0xff]
    %v1635 = vld [vmem:[%s4 + $0x30] sm:$0xff]
    %v1636 = vld [vmem:[%s4 + $0x38] sm:$0xff]
    %v1637 = vld [vmem:[%s4 + $0x40] sm:$0xff]
    %v1638 = vld [vmem:[%s4 + $0x48] sm:$0xff]
    %v1639 = vld [vmem:[%s4 + $0x50] sm:$0xff]
    %v1640 = vld [vmem:[%s4 + $0x58] sm:$0xff]
    %v1641 = vld [vmem:[%s4 + $0x60] sm:$0xff]
    %v1642 = vld [vmem:[%s4 + $0x68] sm:$0xff]
    %v1643 = vld [vmem:[%s4 + $0x70] sm:$0xff]
    %v1644 = vld [vmem:[%s4 + $0x78] sm:$0xff]
    %v1645 = vld [vmem:[%s4 + $0x80] sm:$0xff]
    %v1646 = vld [vmem:[%s4 + $0x88] sm:$0xff]
    %v1647 = vld [vmem:[%s4 + $0x90] sm:$0xff]
    %v1648 = vld [vmem:[%s4 + $0x98] sm:$0xff]
    %v1649 = vld [vmem:[%s4 + $0xa0] sm:$0xff]
    %v1650 = vld [vmem:[%s4 + $0xa8] sm:$0xff]
    %v1651 = vld [vmem:[%s4 + $0xb0] sm:$0xff]
    %v1652 = vld [vmem:[%s4 + $0xb8] sm:$0xff]
    %v1653 = vld [vmem:[%s4 + $0xc0] sm:$0xff]
    %v1654 = vld [vmem:[%s4 + $0xc8] sm:$0xff]
    %v1655 = vld [vmem:[%s4 + $0xd0] sm:$0xff]
    %v1656 = vld [vmem:[%s4 + $0xd8] sm:$0xff]
    %v1657 = vld [vmem:[%s4 + $0xe0] sm:$0xff]
    %v1658 = vld [vmem:[%s4 + $0xe8] sm:$0xff]
    %v1659 = vld [vmem:[%s4 + $0xf0] sm:$0xff]
    %v1660 = vld [vmem:[%s4 + $0xf8] sm:$0xff]
    %v1661 = vld [vmem:[%s4 + $0x100] sm:$0xff]
    %v1662 = vld [vmem:[%s4 + $0x108] sm:$0xff]
    %v1663 = vld [vmem:[%s4 + $0x110] sm:$0xff]
    %v1664 = vld [vmem:[%s4 + $0x118] sm:$0xff]
    %v1665 = vld [vmem:[%s4 + $0x120] sm:$0xff]
    %v1666 = vld [vmem:[%s4 + $0x128] sm:$0xff]
    %v1667 = vld [vmem:[%s4 + $0x130] sm:$0xff]
    %v1668 = vld [vmem:[%s4 + $0x138] sm:$0xff]
    %v1669 = vld [vmem:[%s4 + $0x140] sm:$0xff]
    %v1670 = vld [vmem:[%s4 + $0x148] sm:$0xff]
    %v1671 = vld [vmem:[%s4 + $0x150] sm:$0xff]
    %v1672 = vld [vmem:[%s4 + $0x158] sm:$0xff]
    %v1673 = vld [vmem:[%s4 + $0x160] sm:$0xff]
    %v1674 = vld [vmem:[%s4 + $0x168] sm:$0xff]
    %v1675 = vld [vmem:[%s4 + $0x170] sm:$0xff]
    %v1676 = vld [vmem:[%s4 + $0x178] sm:$0xff]
    %v1677 = vld [vmem:[%s4 + $0x180] sm:$0xff]
    %v1678 = vld [vmem:[%s4 + $0x188] sm:$0xff]
    %v1679 = vld [vmem:[%s5] sm:$0x3]
    %v1681 = vperm.slane %v1679, 0
    %v1682 = vperm.slane %v1679, 1
    %v1735 = vunpack.c.l.b16 %v1629
    %v1736 = vunpack.c.h.b16 %v1629
    %v1737 = vunpack.c.l.b16 %v1630
    %v1738 = vunpack.c.h.b16 %v1630
    %v1739 = vunpack.c.l.b16 %v1631
    %v1740 = vunpack.c.h.b16 %v1631
    %v1741 = vunpack.c.l.b16 %v1632
    %v1742 = vunpack.c.h.b16 %v1632
    %v1743 = vunpack.c.l.b16 %v1633
    %v1744 = vunpack.c.h.b16 %v1633
    %v1745 = vunpack.c.l.b16 %v1634
    %v1746 = vunpack.c.h.b16 %v1634
    %v1747 = vunpack.c.l.b16 %v1635
    %v1748 = vunpack.c.h.b16 %v1635
    %v1749 = vunpack.c.l.b16 %v1636
    %v1750 = vunpack.c.h.b16 %v1636
    %v1751 = vunpack.c.l.b16 %v1637
    %v1752 = vunpack.c.h.b16 %v1637
    %v1753 = vunpack.c.l.b16 %v1638
    %v1754 = vunpack.c.h.b16 %v1638
    %v1755 = vunpack.c.l.b16 %v1639
    %v1756 = vunpack.c.h.b16 %v1639
    %v1757 = vunpack.c.l.b16 %v1640
    %v1758 = vunpack.c.h.b16 %v1640
    %v1759 = vunpack.c.l.b16 %v1641
    %v1760 = vunpack.c.h.b16 %v1641
    %v1761 = vunpack.c.l.b16 %v1642
    %v1762 = vunpack.c.h.b16 %v1642
    %v1763 = vunpack.c.l.b16 %v1643
    %v1764 = vunpack.c.h.b16 %v1643
    %v1765 = vunpack.c.l.b16 %v1644
    %v1766 = vunpack.c.h.b16 %v1644
    %v1767 = vunpack.c.l.b16 %v1645
    %v1768 = vunpack.c.h.b16 %v1645
    %v1769 = vunpack.c.l.b16 %v1646
    %v1770 = vunpack.c.h.b16 %v1646
    %v1771 = vunpack.c.l.b16 %v1647
    %v1772 = vunpack.c.h.b16 %v1647
    %v1773 = vunpack.c.l.b16 %v1648
    %v1774 = vunpack.c.h.b16 %v1648
    %v1775 = vunpack.c.l.b16 %v1649
    %v1776 = vunpack.c.h.b16 %v1649
    %v1777 = vunpack.c.l.b16 %v1650
    %v1778 = vunpack.c.h.b16 %v1650
    %v1779 = vunpack.c.l.b16 %v1651
    %v1780 = vunpack.c.h.b16 %v1651
    %v1781 = vunpack.c.l.b16 %v1652
    %v1782 = vunpack.c.h.b16 %v1652
    %v1783 = vunpack.c.l.b16 %v1653
    %v1784 = vunpack.c.h.b16 %v1653
    %v1785 = vunpack.c.l.b16 %v1654
    %v1786 = vunpack.c.h.b16 %v1654
    %v1787 = vunpack.c.l.b16 %v1655
    %v1788 = vunpack.c.h.b16 %v1655
    %v1789 = vunpack.c.l.b16 %v1656
    %v1790 = vunpack.c.h.b16 %v1656
    %v1791 = vunpack.c.l.b16 %v1657
    %v1792 = vunpack.c.h.b16 %v1657
    %v1793 = vunpack.c.l.b16 %v1658
    %v1794 = vunpack.c.h.b16 %v1658
    %v1795 = vunpack.c.l.b16 %v1659
    %v1796 = vunpack.c.h.b16 %v1659
    %v1797 = vunpack.c.l.b16 %v1660
    %v1798 = vunpack.c.h.b16 %v1660
    %v1799 = vunpack.c.l.b16 %v1661
    %v1800 = vunpack.c.h.b16 %v1661
    %v1801 = vunpack.c.l.b16 %v1662
    %v1802 = vunpack.c.h.b16 %v1662
    %v1803 = vunpack.c.l.b16 %v1663
    %v1804 = vunpack.c.h.b16 %v1663
    %v1805 = vunpack.c.l.b16 %v1664
    %v1806 = vunpack.c.h.b16 %v1664
    %v1807 = vunpack.c.l.b16 %v1665
    %v1808 = vunpack.c.h.b16 %v1665
    %v1809 = vunpack.c.l.b16 %v1666
    %v1810 = vunpack.c.h.b16 %v1666
    %v1811 = vunpack.c.l.b16 %v1667
    %v1812 = vunpack.c.h.b16 %v1667
    %v1813 = vunpack.c.l.b16 %v1668
    %v1814 = vunpack.c.h.b16 %v1668
    %v1815 = vunpack.c.l.b16 %v1669
    %v1816 = vunpack.c.h.b16 %v1669
    %v1817 = vunpack.c.l.b16 %v1670
    %v1818 = vunpack.c.h.b16 %v1670
    %v1819 = vunpack.c.l.b16 %v1671
    %v1820 = vunpack.c.h.b16 %v1671
    %v1821 = vunpack.c.l.b16 %v1672
    %v1822 = vunpack.c.h.b16 %v1672
    %v1823 = vunpack.c.l.b16 %v1673
    %v1824 = vunpack.c.h.b16 %v1673
    %v1825 = vunpack.c.l.b16 %v1674
    %v1826 = vunpack.c.h.b16 %v1674
    %v1827 = vunpack.c.l.b16 %v1675
    %v1828 = vunpack.c.h.b16 %v1675
    %v1829 = vunpack.c.l.b16 %v1676
    %v1830 = vunpack.c.h.b16 %v1676
    %v1831 = vunpack.c.l.b16 %v1677
    %v1832 = vunpack.c.h.b16 %v1677
    %v1833 = vunpack.c.l.b16 %v1678
    %v1834 = vunpack.c.h.b16 %v1678
    %v1835 = vpack.c.b16 %v1737, %v1735
    %v1836 = vpack.c.b16 %v1738, %v1736
    %v1837 = vpack.c.b16 %v1741, %v1739
    %v1838 = vpack.c.b16 %v1742, %v1740
    %v1839 = vpack.c.b16 %v1745, %v1743
    %v1840 = vpack.c.b16 %v1746, %v1744
    %v1841 = vpack.c.b16 %v1749, %v1747
    %v1842 = vpack.c.b16 %v1750, %v1748
    %v1843 = vpack.c.b16 %v1753, %v1751
    %v1844 = vpack.c.b16 %v1754, %v1752
    %v1845 = vpack.c.b16 %v1757, %v1755
    %v1846 = vpack.c.b16 %v1758, %v1756
    %v1847 = vpack.c.b16 %v1761, %v1759
    %v1848 = vpack.c.b16 %v1762, %v1760
    %v1849 = vpack.c.b16 %v1765, %v1763
    %v1850 = vpack.c.b16 %v1766, %v1764
    %v1851 = vpack.c.b16 %v1769, %v1767
    %v1852 = vpack.c.b16 %v1770, %v1768
    %v1853 = vpack.c.b16 %v1773, %v1771
    %v1854 = vpack.c.b16 %v1774, %v1772
    %v1855 = vpack.c.b16 %v1777, %v1775
    %v1856 = vpack.c.b16 %v1778, %v1776
    %v1857 = vpack.c.b16 %v1781, %v1779
    %v1858 = vpack.c.b16 %v1782, %v1780
    %v1859 = vpack.c.b16 %v1785, %v1783
    %v1860 = vpack.c.b16 %v1786, %v1784
    %v1861 = vpack.c.b16 %v1789, %v1787
    %v1862 = vpack.c.b16 %v1790, %v1788
    %v1863 = vpack.c.b16 %v1793, %v1791
    %v1864 = vpack.c.b16 %v1794, %v1792
    %v1865 = vpack.c.b16 %v1797, %v1795
    %v1866 = vpack.c.b16 %v1798, %v1796
    %v1867 = vpack.c.b16 %v1801, %v1799
    %v1868 = vpack.c.b16 %v1802, %v1800
    %v1869 = vpack.c.b16 %v1805, %v1803
    %v1870 = vpack.c.b16 %v1806, %v1804
    %v1871 = vpack.c.b16 %v1809, %v1807
    %v1872 = vpack.c.b16 %v1810, %v1808
    %v1873 = vpack.c.b16 %v1813, %v1811
    %v1874 = vpack.c.b16 %v1814, %v1812
    %v1875 = vpack.c.b16 %v1817, %v1815
    %v1876 = vpack.c.b16 %v1818, %v1816
    %v1877 = vpack.c.b16 %v1821, %v1819
    %v1878 = vpack.c.b16 %v1822, %v1820
    %v1879 = vpack.c.b16 %v1825, %v1823
    %v1880 = vpack.c.b16 %v1826, %v1824
    %v1881 = vpack.c.b16 %v1829, %v1827
    %v1882 = vpack.c.b16 %v1830, %v1828
    %v1883 = vpack.c.b16 %v1833, %v1831
    %v1884 = vpack.c.b16 %v1834, %v1832
    %v1936 = vsel %vm1253, %v1628, 0
    %1938 = vmatpush.bf16.msra.mxu0 %v1849
    %1939 = vmatpush.bf16.msra.mxu0 %v1847
    %1940 = vmatpush.bf16.msra.mxu0 %v1845
    %1941 = vmatpush.bf16.msra.mxu0 %v1843
    %1942 = vmatpush.bf16.msra.mxu0 %v1841
    %1943 = vmatpush.bf16.msra.mxu0 %v1839
    %1944 = vmatpush.bf16.msra.mxu0 %v1837
    %1945 = vmatpush.bf16.msra.mxu0 %v1835
    %1946 = vmatmul.bf16.gmra.mxu0 %v1625
    %v1947 = vpop.f32.mrf.mxu0
    %v1948 = vadd.f32 %v1681, %v1947
    %v1949 = vpop.f32.mrf.mxu0
    %1950 = vdwg.mxu0
    %1951 = vmatpush.bf16.msra.mxu0 %v1865
    %1952 = vmatpush.bf16.msra.mxu0 %v1863
    %1953 = vmatpush.bf16.msra.mxu0 %v1861
    %1954 = vmatpush.bf16.msra.mxu0 %v1859
    %1955 = vmatpush.bf16.msra.mxu0 %v1857
    %1956 = vmatpush.bf16.msra.mxu0 %v1855
    %1957 = vmatpush.bf16.msra.mxu0 %v1853
    %1958 = vmatpush.bf16.msra.mxu0 %v1851
    %1959 = vmatmul.bf16.gmra.mxu0 %v1626
    %v1960 = vpop.f32.mrf.mxu0
    %v1961 = vadd.f32 %v1948, %v1960
    %v1962 = vpop.f32.mrf.mxu0
    %1963 = vdwg.mxu0
    %1964 = vmatpush.bf16.msra.mxu0 %v1881
    %1965 = vmatpush.bf16.msra.mxu0 %v1879
    %1966 = vmatpush.bf16.msra.mxu0 %v1877
    %1967 = vmatpush.bf16.msra.mxu0 %v1875
    %1968 = vmatpush.bf16.msra.mxu0 %v1873
    %1969 = vmatpush.bf16.msra.mxu0 %v1871
    %1970 = vmatpush.bf16.msra.mxu0 %v1869
    %1971 = vmatpush.bf16.msra.mxu0 %v1867
    %1972 = vmatmul.bf16.gmra.mxu0 %v1627
    %v1973 = vpop.f32.mrf.mxu0
    %v1974 = vadd.f32 %v1961, %v1973
    %v1975 = vpop.f32.mrf.mxu0
    %1976 = vdwg.mxu0
    %1977 = vmatpush.bf16.msra.mxu0 0
    %1978 = vmatpush.bf16.msra.mxu0 0
    %1979 = vmatpush.bf16.msra.mxu0 0
    %1980 = vmatpush.bf16.msra.mxu0 0
    %1981 = vmatpush.bf16.msra.mxu0 0
    %1982 = vmatpush.bf16.msra.mxu0 0
    %1983 = vmatpush.bf16.msra.mxu0 0
    %1984 = vmatpush.bf16.msra.mxu0 %v1883
    %1985 = vmatmul.bf16.gmra.mxu0 %v1936
    %v1986 = vpop.f32.mrf.mxu0
    %v1987 = vadd.f32 %v1974, %v1986
    %v1988 = vpop.f32.mrf.mxu0
    %1989 = vdwg.mxu0
    %1990 = vmatpush.bf16.msra.mxu0 %v1850
    %1991 = vmatpush.bf16.msra.mxu0 %v1848
    %1992 = vmatpush.bf16.msra.mxu0 %v1846
    %1993 = vmatpush.bf16.msra.mxu0 %v1844
    %1994 = vmatpush.bf16.msra.mxu0 %v1842
    %1995 = vmatpush.bf16.msra.mxu0 %v1840
    %1996 = vmatpush.bf16.msra.mxu0 %v1838
    %1997 = vmatpush.bf16.msra.mxu0 %v1836
    %1998 = vmatmul.bf16.gmra.mxu0 %v1625
    %v1999 = vpop.f32.mrf.mxu0
    %v2000 = vadd.f32 %v1682, %v1999
    %v2001 = vpop.f32.mrf.mxu0
    %2002 = vdwg.mxu0
    %2003 = vmatpush.bf16.msra.mxu0 %v1866
    %2004 = vmatpush.bf16.msra.mxu0 %v1864
    %2005 = vmatpush.bf16.msra.mxu0 %v1862
    %2006 = vmatpush.bf16.msra.mxu0 %v1860
    %2007 = vmatpush.bf16.msra.mxu0 %v1858
    %2008 = vmatpush.bf16.msra.mxu0 %v1856
    %2009 = vmatpush.bf16.msra.mxu0 %v1854
    %2010 = vmatpush.bf16.msra.mxu0 %v1852
    %2011 = vmatmul.bf16.gmra.mxu0 %v1626
    %v2012 = vpop.f32.mrf.mxu0
    %v2013 = vadd.f32 %v2000, %v2012
    %v2014 = vpop.f32.mrf.mxu0
    %2015 = vdwg.mxu0
    %2016 = vmatpush.bf16.msra.mxu0 %v1882
    %2017 = vmatpush.bf16.msra.mxu0 %v1880
    %2018 = vmatpush.bf16.msra.mxu0 %v1878
    %2019 = vmatpush.bf16.msra.mxu0 %v1876
    %2020 = vmatpush.bf16.msra.mxu0 %v1874
    %2021 = vmatpush.bf16.msra.mxu0 %v1872
    %2022 = vmatpush.bf16.msra.mxu0 %v1870
    %2023 = vmatpush.bf16.msra.mxu0 %v1868
    %2024 = vmatmul.bf16.gmra.mxu0 %v1627
    %v2025 = vpop.f32.mrf.mxu0
    %v2026 = vadd.f32 %v2013, %v2025
    %v2027 = vpop.f32.mrf.mxu0
    %2028 = vdwg.mxu0
    %2029 = vmatpush.bf16.msra.mxu0 0
    %2030 = vmatpush.bf16.msra.mxu0 0
    %2031 = vmatpush.bf16.msra.mxu0 0
    %2032 = vmatpush.bf16.msra.mxu0 0
    %2033 = vmatpush.bf16.msra.mxu0 0
    %2034 = vmatpush.bf16.msra.mxu0 0
    %2035 = vmatpush.bf16.msra.mxu0 0
    %2036 = vmatpush.bf16.msra.mxu0 %v1884
    %2037 = vmatmul.bf16.gmra.mxu0 %v1936
    %v2038 = vpop.f32.mrf.mxu0
    %v2039 = vadd.f32 %v2026, %v2038
    %v2040 = vpop.f32.mrf.mxu0
    %2041 = vdwg.mxu0
    %v2044 = vrot.slane %v2039, 6
    %vm2045 = vcmask 1041408
    %v2046 = vsel %vm2045, %v1987, %v2044
    %2048 = vst [vmem:[%s11] sm:$0xf] %v2046
    %v2049 = vmul.f32 %v2039, 0.5
    %v2050 = vmul.f32 %v2049, 1.442695
    %v2051 = vpow.pop %v2050
    %v2052 = vld [vmem:[%s1] sm:$0x3]
    %v2053 = vmul.f32 %v2052, %v2051
    %v2054 = vadd.f32 %v1987, %v2053
    %v2055 = vpack.c.bf16 %v2054, %v2054
    %v2056 = vld [vmem:[%s6] sm:$0xff]
    %v2057 = vld [vmem:[%s6 + $0x8] sm:$0xff]
    %v2058 = vld [vmem:[%s6 + $0x10] sm:$0xff]
    %v2059 = vld [vmem:[%s6 + $0x18] sm:$0xff]
    %v2060 = vld [vmem:[%s6 + $0x20] sm:$0xff]
    %v2061 = vld [vmem:[%s6 + $0x28] sm:$0xff]
    %v2062 = vld [vmem:[%s6 + $0x30] sm:$0xff]
    %v2063 = vld [vmem:[%s6 + $0x38] sm:$0xff]
    %v2064 = vld [vmem:[%s7] sm:$0xf]
    %v2066 = vperm.slane %v2064, 0
    %v2067 = vperm.slane %v2064, 1
    %v2068 = vperm.slane %v2064, 2
    %v2069 = vperm.slane %v2064, 3
    %v2082 = vunpack.c.l.b16 %v2056
    %v2083 = vunpack.c.h.b16 %v2056
    %v2084 = vunpack.c.l.b16 %v2057
    %v2085 = vunpack.c.h.b16 %v2057
    %v2086 = vunpack.c.l.b16 %v2058
    %v2087 = vunpack.c.h.b16 %v2058
    %v2088 = vunpack.c.l.b16 %v2059
    %v2089 = vunpack.c.h.b16 %v2059
    %v2090 = vunpack.c.l.b16 %v2060
    %v2091 = vunpack.c.h.b16 %v2060
    %v2092 = vunpack.c.l.b16 %v2061
    %v2093 = vunpack.c.h.b16 %v2061
    %v2094 = vunpack.c.l.b16 %v2062
    %v2095 = vunpack.c.h.b16 %v2062
    %v2096 = vunpack.c.l.b16 %v2063
    %v2097 = vunpack.c.h.b16 %v2063
    %v2098 = vpack.c.b16 %v2086, %v2082
    %v2099 = vpack.c.b16 %v2087, %v2083
    %v2100 = vpack.c.b16 %v2088, %v2084
    %v2101 = vpack.c.b16 %v2089, %v2085
    %v2102 = vpack.c.b16 %v2094, %v2090
    %v2103 = vpack.c.b16 %v2095, %v2091
    %v2104 = vpack.c.b16 %v2096, %v2092
    %v2105 = vpack.c.b16 %v2097, %v2093
    %vm2114 = vcmask 261120
    %v2116 = vsel %vm2114, %v2055, 0
    %2118 = vmatpush.bf16.msra.mxu0 0
    %2119 = vmatpush.bf16.msra.mxu0 0
    %2120 = vmatpush.bf16.msra.mxu0 0
    %2121 = vmatpush.bf16.msra.mxu0 0
    %2122 = vmatpush.bf16.msra.mxu0 0
    %2123 = vmatpush.bf16.msra.mxu0 0
    %2124 = vmatpush.bf16.msra.mxu0 %v2102
    %2125 = vmatpush.bf16.msra.mxu0 %v2098
    %2126 = vmatmul.bf16.gmra.mxu0 %v2116
    %v2127 = vpop.f32.mrf.mxu0
    %v2128 = vadd.f32 %v2066, %v2127
    %v2129 = vpop.f32.mrf.mxu0
    %2130 = vdwg.mxu0
    %2131 = vmatpush.bf16.msra.mxu0 0
    %2132 = vmatpush.bf16.msra.mxu0 0
    %2133 = vmatpush.bf16.msra.mxu0 0
    %2134 = vmatpush.bf16.msra.mxu0 0
    %2135 = vmatpush.bf16.msra.mxu0 0
    %2136 = vmatpush.bf16.msra.mxu0 0
    %2137 = vmatpush.bf16.msra.mxu0 %v2103
    %2138 = vmatpush.bf16.msra.mxu0 %v2099
    %2139 = vmatmul.bf16.gmra.mxu0 %v2116
    %v2140 = vpop.f32.mrf.mxu0
    %v2141 = vadd.f32 %v2067, %v2140
    %v2142 = vpop.f32.mrf.mxu0
    %2143 = vdwg.mxu0
    %2144 = vmatpush.bf16.msra.mxu0 0
    %2145 = vmatpush.bf16.msra.mxu0 0
    %2146 = vmatpush.bf16.msra.mxu0 0
    %2147 = vmatpush.bf16.msra.mxu0 0
    %2148 = vmatpush.bf16.msra.mxu0 0
    %2149 = vmatpush.bf16.msra.mxu0 0
    %2150 = vmatpush.bf16.msra.mxu0 %v2104
    %2151 = vmatpush.bf16.msra.mxu0 %v2100
    %2152 = vmatmul.bf16.gmra.mxu0 %v2116
    %v2153 = vpop.f32.mrf.mxu0
    %v2154 = vadd.f32 %v2068, %v2153
    %v2155 = vpop.f32.mrf.mxu0
    %2156 = vdwg.mxu0
    %2157 = vmatpush.bf16.msra.mxu0 0
    %2158 = vmatpush.bf16.msra.mxu0 0
    %2159 = vmatpush.bf16.msra.mxu0 0
    %2160 = vmatpush.bf16.msra.mxu0 0
    %2161 = vmatpush.bf16.msra.mxu0 0
    %2162 = vmatpush.bf16.msra.mxu0 0
    %2163 = vmatpush.bf16.msra.mxu0 %v2105
    %2164 = vmatpush.bf16.msra.mxu0 %v2101
    %2165 = vmatmul.bf16.gmra.mxu0 %v2116
    %v2166 = vpop.f32.mrf.mxu0
    %v2167 = vadd.f32 %v2069, %v2166
    %v2168 = vpop.f32.mrf.mxu0
    %2169 = vdwg.mxu0
    %v2170 = vmax.f32 %v2128, 0.0
    %v2171 = vmax.f32 %v2141, 0.0
    %v2172 = vmax.f32 %v2154, 0.0
    %v2173 = vmax.f32 %v2167, 0.0
    %v2174 = vpack.c.bf16 %v2170, %v2170
    %v2175 = vpack.c.bf16 %v2171, %v2171
    %v2176 = vpack.c.bf16 %v2172, %v2172
    %v2177 = vpack.c.bf16 %v2173, %v2173
    %v2178 = vld [vmem:[%s8] sm:$0xff]
    %v2179 = vld [vmem:[%s8 + $0x8] sm:$0xff]
    %v2180 = vld [vmem:[%s8 + $0x10] sm:$0xff]
    %v2181 = vld [vmem:[%s8 + $0x18] sm:$0xf]
    %v2182 = vld [vmem:[%s8 + $0x1c] sm:$0xff]
    %v2183 = vld [vmem:[%s8 + $0x24] sm:$0xff]
    %v2184 = vld [vmem:[%s8 + $0x2c] sm:$0xff]
    %v2185 = vld [vmem:[%s8 + $0x34] sm:$0xf]
    %v2186 = vld [vmem:[%s8 + $0x38] sm:$0xff]
    %v2187 = vld [vmem:[%s8 + $0x40] sm:$0xff]
    %v2188 = vld [vmem:[%s8 + $0x48] sm:$0xff]
    %v2189 = vld [vmem:[%s8 + $0x50] sm:$0xf]
    %v2190 = vld [vmem:[%s8 + $0x54] sm:$0xff]
    %v2191 = vld [vmem:[%s8 + $0x5c] sm:$0xff]
    %v2192 = vld [vmem:[%s8 + $0x64] sm:$0xff]
    %v2193 = vld [vmem:[%s8 + $0x6c] sm:$0xf]
    %v2194 = vld [vmem:[%s8 + $0x70] sm:$0xff]
    %v2195 = vld [vmem:[%s8 + $0x78] sm:$0xff]
    %v2196 = vld [vmem:[%s8 + $0x80] sm:$0xff]
    %v2197 = vld [vmem:[%s8 + $0x88] sm:$0xf]
    %v2198 = vld [vmem:[%s8 + $0x8c] sm:$0xff]
    %v2199 = vld [vmem:[%s8 + $0x94] sm:$0xff]
    %v2200 = vld [vmem:[%s8 + $0x9c] sm:$0xff]
    %v2201 = vld [vmem:[%s8 + $0xa4] sm:$0xf]
    %v2202 = vld [vmem:[%s8 + $0xa8] sm:$0xff]
    %v2203 = vld [vmem:[%s8 + $0xb0] sm:$0xff]
    %v2204 = vld [vmem:[%s8 + $0xb8] sm:$0xff]
    %v2205 = vld [vmem:[%s8 + $0xc0] sm:$0xf]
    %v2206 = vld [vmem:[%s8 + $0xc4] sm:$0xff]
    %v2207 = vld [vmem:[%s8 + $0xcc] sm:$0xff]
    %v2208 = vld [vmem:[%s8 + $0xd4] sm:$0xff]
    %v2209 = vld [vmem:[%s8 + $0xdc] sm:$0xf]
    %v2210 = vld [vmem:[%s8 + $0xe0] sm:$0xff]
    %v2211 = vld [vmem:[%s8 + $0xe8] sm:$0xff]
    %v2212 = vld [vmem:[%s8 + $0xf0] sm:$0xff]
    %v2213 = vld [vmem:[%s8 + $0xf8] sm:$0xf]
    %v2214 = vld [vmem:[%s8 + $0xfc] sm:$0xff]
    %v2215 = vld [vmem:[%s8 + $0x104] sm:$0xff]
    %v2216 = vld [vmem:[%s8 + $0x10c] sm:$0xff]
    %v2217 = vld [vmem:[%s8 + $0x114] sm:$0xf]
    %v2218 = vld [vmem:[%s8 + $0x118] sm:$0xff]
    %v2219 = vld [vmem:[%s8 + $0x120] sm:$0xff]
    %v2220 = vld [vmem:[%s8 + $0x128] sm:$0xff]
    %v2221 = vld [vmem:[%s8 + $0x130] sm:$0xf]
    %v2222 = vld [vmem:[%s8 + $0x134] sm:$0xff]
    %v2223 = vld [vmem:[%s8 + $0x13c] sm:$0xff]
    %v2224 = vld [vmem:[%s8 + $0x144] sm:$0xff]
    %v2225 = vld [vmem:[%s8 + $0x14c] sm:$0xf]
    %v2226 = vld [vmem:[%s8 + $0x150] sm:$0xff]
    %v2227 = vld [vmem:[%s8 + $0x158] sm:$0xff]
    %v2228 = vld [vmem:[%s8 + $0x160] sm:$0xff]
    %v2229 = vld [vmem:[%s8 + $0x168] sm:$0xf]
    %v2230 = vld [vmem:[%s8 + $0x16c] sm:$0xff]
    %v2231 = vld [vmem:[%s8 + $0x174] sm:$0xff]
    %v2232 = vld [vmem:[%s8 + $0x17c] sm:$0xff]
    %v2233 = vld [vmem:[%s8 + $0x184] sm:$0xf]
    %v2234 = vld [vmem:[%s8 + $0x188] sm:$0xff]
    %v2235 = vld [vmem:[%s8 + $0x190] sm:$0xff]
    %v2236 = vld [vmem:[%s8 + $0x198] sm:$0xff]
    %v2237 = vld [vmem:[%s8 + $0x1a0] sm:$0xf]
    %v2238 = vld [vmem:[%s8 + $0x1a4] sm:$0xff]
    %v2239 = vld [vmem:[%s8 + $0x1ac] sm:$0xff]
    %v2240 = vld [vmem:[%s8 + $0x1b4] sm:$0xff]
    %v2241 = vld [vmem:[%s8 + $0x1bc] sm:$0xf]
    %v2242 = vld [vmem:[%s8 + $0x1c0] sm:$0xff]
    %v2243 = vld [vmem:[%s8 + $0x1c8] sm:$0xff]
    %v2244 = vld [vmem:[%s8 + $0x1d0] sm:$0xff]
    %v2245 = vld [vmem:[%s8 + $0x1d8] sm:$0xf]
    %v2246 = vld [vmem:[%s8 + $0x1dc] sm:$0xff]
    %v2247 = vld [vmem:[%s8 + $0x1e4] sm:$0xff]
    %v2248 = vld [vmem:[%s8 + $0x1ec] sm:$0xff]
    %v2249 = vld [vmem:[%s8 + $0x1f4] sm:$0xf]
    %v2250 = vld [vmem:[%s8 + $0x1f8] sm:$0xff]
    %v2251 = vld [vmem:[%s8 + $0x200] sm:$0xff]
    %v2252 = vld [vmem:[%s8 + $0x208] sm:$0xff]
    %v2253 = vld [vmem:[%s8 + $0x210] sm:$0xf]
    %v2254 = vld [vmem:[%s8 + $0x214] sm:$0xff]
    %v2255 = vld [vmem:[%s8 + $0x21c] sm:$0xff]
    %v2256 = vld [vmem:[%s8 + $0x224] sm:$0xff]
    %v2257 = vld [vmem:[%s8 + $0x22c] sm:$0xf]
    %v2258 = vld [vmem:[%s8 + $0x230] sm:$0xff]
    %v2259 = vld [vmem:[%s8 + $0x238] sm:$0xff]
    %v2260 = vld [vmem:[%s8 + $0x240] sm:$0xff]
    %v2261 = vld [vmem:[%s8 + $0x248] sm:$0xf]
    %v2262 = vld [vmem:[%s8 + $0x24c] sm:$0xff]
    %v2263 = vld [vmem:[%s8 + $0x254] sm:$0xff]
    %v2264 = vld [vmem:[%s8 + $0x25c] sm:$0xff]
    %v2265 = vld [vmem:[%s8 + $0x264] sm:$0xf]
    %v2266 = vld [vmem:[%s8 + $0x268] sm:$0xff]
    %v2267 = vld [vmem:[%s8 + $0x270] sm:$0xff]
    %v2268 = vld [vmem:[%s8 + $0x278] sm:$0xff]
    %v2269 = vld [vmem:[%s8 + $0x280] sm:$0xf]
    %v2270 = vld [vmem:[%s8 + $0x284] sm:$0xff]
    %v2271 = vld [vmem:[%s8 + $0x28c] sm:$0xff]
    %v2272 = vld [vmem:[%s8 + $0x294] sm:$0xff]
    %v2273 = vld [vmem:[%s8 + $0x29c] sm:$0xf]
    %v2274 = vld [vmem:[%s8 + $0x2a0] sm:$0xff]
    %v2275 = vld [vmem:[%s8 + $0x2a8] sm:$0xff]
    %v2276 = vld [vmem:[%s8 + $0x2b0] sm:$0xff]
    %v2277 = vld [vmem:[%s8 + $0x2b8] sm:$0xf]
    %v2278 = vld [vmem:[%s8 + $0x2bc] sm:$0xff]
    %v2279 = vld [vmem:[%s8 + $0x2c4] sm:$0xff]
    %v2280 = vld [vmem:[%s8 + $0x2cc] sm:$0xff]
    %v2281 = vld [vmem:[%s8 + $0x2d4] sm:$0xf]
    %v2282 = vld [vmem:[%s8 + $0x2d8] sm:$0xff]
    %v2283 = vld [vmem:[%s8 + $0x2e0] sm:$0xff]
    %v2284 = vld [vmem:[%s8 + $0x2e8] sm:$0xff]
    %v2285 = vld [vmem:[%s8 + $0x2f0] sm:$0xf]
    %v2286 = vld [vmem:[%s8 + $0x2f4] sm:$0xff]
    %v2287 = vld [vmem:[%s8 + $0x2fc] sm:$0xff]
    %v2288 = vld [vmem:[%s8 + $0x304] sm:$0xff]
    %v2289 = vld [vmem:[%s8 + $0x30c] sm:$0xf]
    %v2290 = vld [vmem:[%s8 + $0x310] sm:$0xff]
    %v2291 = vld [vmem:[%s8 + $0x318] sm:$0xff]
    %v2292 = vld [vmem:[%s8 + $0x320] sm:$0xff]
    %v2293 = vld [vmem:[%s8 + $0x328] sm:$0xf]
    %v2294 = vld [vmem:[%s8 + $0x32c] sm:$0xff]
    %v2295 = vld [vmem:[%s8 + $0x334] sm:$0xff]
    %v2296 = vld [vmem:[%s8 + $0x33c] sm:$0xff]
    %v2297 = vld [vmem:[%s8 + $0x344] sm:$0xf]
    %v2298 = vld [vmem:[%s8 + $0x348] sm:$0xff]
    %v2299 = vld [vmem:[%s8 + $0x350] sm:$0xff]
    %v2300 = vld [vmem:[%s8 + $0x358] sm:$0xff]
    %v2301 = vld [vmem:[%s8 + $0x360] sm:$0xf]
    %v2302 = vld [vmem:[%s8 + $0x364] sm:$0xff]
    %v2303 = vld [vmem:[%s8 + $0x36c] sm:$0xff]
    %v2304 = vld [vmem:[%s8 + $0x374] sm:$0xff]
    %v2305 = vld [vmem:[%s8 + $0x37c] sm:$0xf]
    %v2306 = vld [vmem:[%s8 + $0x380] sm:$0xff]
    %v2307 = vld [vmem:[%s8 + $0x388] sm:$0xff]
    %v2308 = vld [vmem:[%s8 + $0x390] sm:$0xff]
    %v2309 = vld [vmem:[%s8 + $0x398] sm:$0xf]
    %v2310 = vld [vmem:[%s8 + $0x39c] sm:$0xff]
    %v2311 = vld [vmem:[%s8 + $0x3a4] sm:$0xff]
    %v2312 = vld [vmem:[%s8 + $0x3ac] sm:$0xff]
    %v2313 = vld [vmem:[%s8 + $0x3b4] sm:$0xf]
    %v2314 = vld [vmem:[%s8 + $0x3b8] sm:$0xff]
    %v2315 = vld [vmem:[%s8 + $0x3c0] sm:$0xff]
    %v2316 = vld [vmem:[%s8 + $0x3c8] sm:$0xff]
    %v2317 = vld [vmem:[%s8 + $0x3d0] sm:$0xf]
    %v2318 = vld [vmem:[%s8 + $0x3d4] sm:$0xff]
    %v2319 = vld [vmem:[%s8 + $0x3dc] sm:$0xff]
    %v2320 = vld [vmem:[%s8 + $0x3e4] sm:$0xff]
    %v2321 = vld [vmem:[%s8 + $0x3ec] sm:$0xf]
    %v2322 = vld [vmem:[%s8 + $0x3f0] sm:$0xff]
    %v2323 = vld [vmem:[%s8 + $0x3f8] sm:$0xff]
    %v2324 = vld [vmem:[%s8 + $0x400] sm:$0xff]
    %v2325 = vld [vmem:[%s8 + $0x408] sm:$0xf]
    %v2326 = vld [vmem:[%s8 + $0x40c] sm:$0xff]
    %v2327 = vld [vmem:[%s8 + $0x414] sm:$0xff]
    %v2328 = vld [vmem:[%s8 + $0x41c] sm:$0xff]
    %v2329 = vld [vmem:[%s8 + $0x424] sm:$0xf]
    %v2330 = vld [vmem:[%s8 + $0x428] sm:$0xff]
    %v2331 = vld [vmem:[%s8 + $0x430] sm:$0xff]
    %v2332 = vld [vmem:[%s8 + $0x438] sm:$0xff]
    %v2333 = vld [vmem:[%s8 + $0x440] sm:$0xf]
    %v2334 = vld [vmem:[%s8 + $0x444] sm:$0xff]
    %v2335 = vld [vmem:[%s8 + $0x44c] sm:$0xff]
    %v2336 = vld [vmem:[%s8 + $0x454] sm:$0xff]
    %v2337 = vld [vmem:[%s8 + $0x45c] sm:$0xf]
    %v2338 = vld [vmem:[%s8 + $0x460] sm:$0xff]
    %v2339 = vld [vmem:[%s8 + $0x468] sm:$0xff]
    %v2340 = vld [vmem:[%s8 + $0x470] sm:$0xff]
    %v2341 = vld [vmem:[%s8 + $0x478] sm:$0xf]
    %v2342 = vld [vmem:[%s8 + $0x47c] sm:$0xff]
    %v2343 = vld [vmem:[%s8 + $0x484] sm:$0xff]
    %v2344 = vld [vmem:[%s8 + $0x48c] sm:$0xff]
    %v2345 = vld [vmem:[%s8 + $0x494] sm:$0xf]
    %v2346 = vld [vmem:[%s8 + $0x498] sm:$0xff]
    %v2347 = vld [vmem:[%s8 + $0x4a0] sm:$0xff]
    %v2348 = vld [vmem:[%s8 + $0x4a8] sm:$0xff]
    %v2349 = vld [vmem:[%s8 + $0x4b0] sm:$0xf]
    %v2350 = vld [vmem:[%s8 + $0x4b4] sm:$0xff]
    %v2351 = vld [vmem:[%s8 + $0x4bc] sm:$0xff]
    %v2352 = vld [vmem:[%s8 + $0x4c4] sm:$0xff]
    %v2353 = vld [vmem:[%s8 + $0x4cc] sm:$0xf]
    %v2354 = vld [vmem:[%s8 + $0x4d0] sm:$0xff]
    %v2355 = vld [vmem:[%s8 + $0x4d8] sm:$0xff]
    %v2356 = vld [vmem:[%s8 + $0x4e0] sm:$0xff]
    %v2357 = vld [vmem:[%s8 + $0x4e8] sm:$0xf]
    %v2358 = vld [vmem:[%s8 + $0x4ec] sm:$0xff]
    %v2359 = vld [vmem:[%s8 + $0x4f4] sm:$0xff]
    %v2360 = vld [vmem:[%s8 + $0x4fc] sm:$0xff]
    %v2361 = vld [vmem:[%s8 + $0x504] sm:$0xf]
    %v2362 = vld [vmem:[%s8 + $0x508] sm:$0xff]
    %v2363 = vld [vmem:[%s8 + $0x510] sm:$0xff]
    %v2364 = vld [vmem:[%s8 + $0x518] sm:$0xff]
    %v2365 = vld [vmem:[%s8 + $0x520] sm:$0xf]
    %v2366 = vld [vmem:[%s8 + $0x524] sm:$0xff]
    %v2367 = vld [vmem:[%s8 + $0x52c] sm:$0xff]
    %v2368 = vld [vmem:[%s8 + $0x534] sm:$0xff]
    %v2369 = vld [vmem:[%s8 + $0x53c] sm:$0xf]
    %v2370 = vld [vmem:[%s8 + $0x540] sm:$0xff]
    %v2371 = vld [vmem:[%s8 + $0x548] sm:$0xff]
    %v2372 = vld [vmem:[%s8 + $0x550] sm:$0xff]
    %v2373 = vld [vmem:[%s8 + $0x558] sm:$0xf]
    %v2374 = vld [vmem:[%s8 + $0x55c] sm:$0xff]
    %v2375 = vld [vmem:[%s8 + $0x564] sm:$0xff]
    %v2376 = vld [vmem:[%s8 + $0x56c] sm:$0xff]
    %v2377 = vld [vmem:[%s8 + $0x574] sm:$0xf]
    %v2378 = vld [vmem:[%s9] sm:$0x7f]
    %v2380 = vperm.slane %v2378, 0
    %v2381 = vperm.slane %v2378, 1
    %v2382 = vperm.slane %v2378, 2
    %v2383 = vperm.slane %v2378, 3
    %v2384 = vperm.slane %v2378, 4
    %v2385 = vperm.slane %v2378, 5
    %v2386 = vperm.slane %v2378, 6
    %v2594 = vunpack.c.l.b16 %v2178
    %v2595 = vunpack.c.h.b16 %v2178
    %v2596 = vunpack.c.l.b16 %v2179
    %v2597 = vunpack.c.h.b16 %v2179
    %v2598 = vunpack.c.l.b16 %v2180
    %v2599 = vunpack.c.h.b16 %v2180
    %v2600 = vunpack.c.l.b16 %v2181
    %v2601 = vunpack.c.l.b16 %v2182
    %v2602 = vunpack.c.h.b16 %v2182
    %v2603 = vunpack.c.l.b16 %v2183
    %v2604 = vunpack.c.h.b16 %v2183
    %v2605 = vunpack.c.l.b16 %v2184
    %v2606 = vunpack.c.h.b16 %v2184
    %v2607 = vunpack.c.l.b16 %v2185
    %v2608 = vunpack.c.l.b16 %v2186
    %v2609 = vunpack.c.h.b16 %v2186
    %v2610 = vunpack.c.l.b16 %v2187
    %v2611 = vunpack.c.h.b16 %v2187
    %v2612 = vunpack.c.l.b16 %v2188
    %v2613 = vunpack.c.h.b16 %v2188
    %v2614 = vunpack.c.l.b16 %v2189
    %v2615 = vunpack.c.l.b16 %v2190
    %v2616 = vunpack.c.h.b16 %v2190
    %v2617 = vunpack.c.l.b16 %v2191
    %v2618 = vunpack.c.h.b16 %v2191
    %v2619 = vunpack.c.l.b16 %v2192
    %v2620 = vunpack.c.h.b16 %v2192
    %v2621 = vunpack.c.l.b16 %v2193
    %v2622 = vunpack.c.l.b16 %v2194
    %v2623 = vunpack.c.h.b16 %v2194
    %v2624 = vunpack.c.l.b16 %v2195
    %v2625 = vunpack.c.h.b16 %v2195
    %v2626 = vunpack.c.l.b16 %v2196
    %v2627 = vunpack.c.h.b16 %v2196
    %v2628 = vunpack.c.l.b16 %v2197
    %v2629 = vunpack.c.l.b16 %v2198
    %v2630 = vunpack.c.h.b16 %v2198
    %v2631 = vunpack.c.l.b16 %v2199
    %v2632 = vunpack.c.h.b16 %v2199
    %v2633 = vunpack.c.l.b16 %v2200
    %v2634 = vunpack.c.h.b16 %v2200
    %v2635 = vunpack.c.l.b16 %v2201
    %v2636 = vunpack.c.l.b16 %v2202
    %v2637 = vunpack.c.h.b16 %v2202
    %v2638 = vunpack.c.l.b16 %v2203
    %v2639 = vunpack.c.h.b16 %v2203
    %v2640 = vunpack.c.l.b16 %v2204
    %v2641 = vunpack.c.h.b16 %v2204
    %v2642 = vunpack.c.l.b16 %v2205
    %v2643 = vunpack.c.l.b16 %v2206
    %v2644 = vunpack.c.h.b16 %v2206
    %v2645 = vunpack.c.l.b16 %v2207
    %v2646 = vunpack.c.h.b16 %v2207
    %v2647 = vunpack.c.l.b16 %v2208
    %v2648 = vunpack.c.h.b16 %v2208
    %v2649 = vunpack.c.l.b16 %v2209
    %v2650 = vunpack.c.l.b16 %v2210
    %v2651 = vunpack.c.h.b16 %v2210
    %v2652 = vunpack.c.l.b16 %v2211
    %v2653 = vunpack.c.h.b16 %v2211
    %v2654 = vunpack.c.l.b16 %v2212
    %v2655 = vunpack.c.h.b16 %v2212
    %v2656 = vunpack.c.l.b16 %v2213
    %v2657 = vunpack.c.l.b16 %v2214
    %v2658 = vunpack.c.h.b16 %v2214
    %v2659 = vunpack.c.l.b16 %v2215
    %v2660 = vunpack.c.h.b16 %v2215
    %v2661 = vunpack.c.l.b16 %v2216
    %v2662 = vunpack.c.h.b16 %v2216
    %v2663 = vunpack.c.l.b16 %v2217
    %v2664 = vunpack.c.l.b16 %v2218
    %v2665 = vunpack.c.h.b16 %v2218
    %v2666 = vunpack.c.l.b16 %v2219
    %v2667 = vunpack.c.h.b16 %v2219
    %v2668 = vunpack.c.l.b16 %v2220
    %v2669 = vunpack.c.h.b16 %v2220
    %v2670 = vunpack.c.l.b16 %v2221
    %v2671 = vunpack.c.l.b16 %v2222
    %v2672 = vunpack.c.h.b16 %v2222
    %v2673 = vunpack.c.l.b16 %v2223
    %v2674 = vunpack.c.h.b16 %v2223
    %v2675 = vunpack.c.l.b16 %v2224
    %v2676 = vunpack.c.h.b16 %v2224
    %v2677 = vunpack.c.l.b16 %v2225
    %v2678 = vunpack.c.l.b16 %v2226
    %v2679 = vunpack.c.h.b16 %v2226
    %v2680 = vunpack.c.l.b16 %v2227
    %v2681 = vunpack.c.h.b16 %v2227
    %v2682 = vunpack.c.l.b16 %v2228
    %v2683 = vunpack.c.h.b16 %v2228
    %v2684 = vunpack.c.l.b16 %v2229
    %v2685 = vunpack.c.l.b16 %v2230
    %v2686 = vunpack.c.h.b16 %v2230
    %v2687 = vunpack.c.l.b16 %v2231
    %v2688 = vunpack.c.h.b16 %v2231
    %v2689 = vunpack.c.l.b16 %v2232
    %v2690 = vunpack.c.h.b16 %v2232
    %v2691 = vunpack.c.l.b16 %v2233
    %v2692 = vunpack.c.l.b16 %v2234
    %v2693 = vunpack.c.h.b16 %v2234
    %v2694 = vunpack.c.l.b16 %v2235
    %v2695 = vunpack.c.h.b16 %v2235
    %v2696 = vunpack.c.l.b16 %v2236
    %v2697 = vunpack.c.h.b16 %v2236
    %v2698 = vunpack.c.l.b16 %v2237
    %v2699 = vunpack.c.l.b16 %v2238
    %v2700 = vunpack.c.h.b16 %v2238
    %v2701 = vunpack.c.l.b16 %v2239
    %v2702 = vunpack.c.h.b16 %v2239
    %v2703 = vunpack.c.l.b16 %v2240
    %v2704 = vunpack.c.h.b16 %v2240
    %v2705 = vunpack.c.l.b16 %v2241
    %v2706 = vunpack.c.l.b16 %v2242
    %v2707 = vunpack.c.h.b16 %v2242
    %v2708 = vunpack.c.l.b16 %v2243
    %v2709 = vunpack.c.h.b16 %v2243
    %v2710 = vunpack.c.l.b16 %v2244
    %v2711 = vunpack.c.h.b16 %v2244
    %v2712 = vunpack.c.l.b16 %v2245
    %v2713 = vunpack.c.l.b16 %v2246
    %v2714 = vunpack.c.h.b16 %v2246
    %v2715 = vunpack.c.l.b16 %v2247
    %v2716 = vunpack.c.h.b16 %v2247
    %v2717 = vunpack.c.l.b16 %v2248
    %v2718 = vunpack.c.h.b16 %v2248
    %v2719 = vunpack.c.l.b16 %v2249
    %v2720 = vunpack.c.l.b16 %v2250
    %v2721 = vunpack.c.h.b16 %v2250
    %v2722 = vunpack.c.l.b16 %v2251
    %v2723 = vunpack.c.h.b16 %v2251
    %v2724 = vunpack.c.l.b16 %v2252
    %v2725 = vunpack.c.h.b16 %v2252
    %v2726 = vunpack.c.l.b16 %v2253
    %v2727 = vunpack.c.l.b16 %v2254
    %v2728 = vunpack.c.h.b16 %v2254
    %v2729 = vunpack.c.l.b16 %v2255
    %v2730 = vunpack.c.h.b16 %v2255
    %v2731 = vunpack.c.l.b16 %v2256
    %v2732 = vunpack.c.h.b16 %v2256
    %v2733 = vunpack.c.l.b16 %v2257
    %v2734 = vunpack.c.l.b16 %v2258
    %v2735 = vunpack.c.h.b16 %v2258
    %v2736 = vunpack.c.l.b16 %v2259
    %v2737 = vunpack.c.h.b16 %v2259
    %v2738 = vunpack.c.l.b16 %v2260
    %v2739 = vunpack.c.h.b16 %v2260
    %v2740 = vunpack.c.l.b16 %v2261
    %v2741 = vunpack.c.l.b16 %v2262
    %v2742 = vunpack.c.h.b16 %v2262
    %v2743 = vunpack.c.l.b16 %v2263
    %v2744 = vunpack.c.h.b16 %v2263
    %v2745 = vunpack.c.l.b16 %v2264
    %v2746 = vunpack.c.h.b16 %v2264
    %v2747 = vunpack.c.l.b16 %v2265
    %v2748 = vunpack.c.l.b16 %v2266
    %v2749 = vunpack.c.h.b16 %v2266
    %v2750 = vunpack.c.l.b16 %v2267
    %v2751 = vunpack.c.h.b16 %v2267
    %v2752 = vunpack.c.l.b16 %v2268
    %v2753 = vunpack.c.h.b16 %v2268
    %v2754 = vunpack.c.l.b16 %v2269
    %v2755 = vunpack.c.l.b16 %v2270
    %v2756 = vunpack.c.h.b16 %v2270
    %v2757 = vunpack.c.l.b16 %v2271
    %v2758 = vunpack.c.h.b16 %v2271
    %v2759 = vunpack.c.l.b16 %v2272
    %v2760 = vunpack.c.h.b16 %v2272
    %v2761 = vunpack.c.l.b16 %v2273
    %v2762 = vunpack.c.l.b16 %v2274
    %v2763 = vunpack.c.h.b16 %v2274
    %v2764 = vunpack.c.l.b16 %v2275
    %v2765 = vunpack.c.h.b16 %v2275
    %v2766 = vunpack.c.l.b16 %v2276
    %v2767 = vunpack.c.h.b16 %v2276
    %v2768 = vunpack.c.l.b16 %v2277
    %v2769 = vunpack.c.l.b16 %v2278
    %v2770 = vunpack.c.h.b16 %v2278
    %v2771 = vunpack.c.l.b16 %v2279
    %v2772 = vunpack.c.h.b16 %v2279
    %v2773 = vunpack.c.l.b16 %v2280
    %v2774 = vunpack.c.h.b16 %v2280
    %v2775 = vunpack.c.l.b16 %v2281
    %v2776 = vunpack.c.l.b16 %v2282
    %v2777 = vunpack.c.h.b16 %v2282
    %v2778 = vunpack.c.l.b16 %v2283
    %v2779 = vunpack.c.h.b16 %v2283
    %v2780 = vunpack.c.l.b16 %v2284
    %v2781 = vunpack.c.h.b16 %v2284
    %v2782 = vunpack.c.l.b16 %v2285
    %v2783 = vunpack.c.l.b16 %v2286
    %v2784 = vunpack.c.h.b16 %v2286
    %v2785 = vunpack.c.l.b16 %v2287
    %v2786 = vunpack.c.h.b16 %v2287
    %v2787 = vunpack.c.l.b16 %v2288
    %v2788 = vunpack.c.h.b16 %v2288
    %v2789 = vunpack.c.l.b16 %v2289
    %v2790 = vunpack.c.l.b16 %v2290
    %v2791 = vunpack.c.h.b16 %v2290
    %v2792 = vunpack.c.l.b16 %v2291
    %v2793 = vunpack.c.h.b16 %v2291
    %v2794 = vunpack.c.l.b16 %v2292
    %v2795 = vunpack.c.h.b16 %v2292
    %v2796 = vunpack.c.l.b16 %v2293
    %v2797 = vunpack.c.l.b16 %v2294
    %v2798 = vunpack.c.h.b16 %v2294
    %v2799 = vunpack.c.l.b16 %v2295
    %v2800 = vunpack.c.h.b16 %v2295
    %v2801 = vunpack.c.l.b16 %v2296
    %v2802 = vunpack.c.h.b16 %v2296
    %v2803 = vunpack.c.l.b16 %v2297
    %v2804 = vunpack.c.l.b16 %v2298
    %v2805 = vunpack.c.h.b16 %v2298
    %v2806 = vunpack.c.l.b16 %v2299
    %v2807 = vunpack.c.h.b16 %v2299
    %v2808 = vunpack.c.l.b16 %v2300
    %v2809 = vunpack.c.h.b16 %v2300
    %v2810 = vunpack.c.l.b16 %v2301
    %v2811 = vunpack.c.l.b16 %v2302
    %v2812 = vunpack.c.h.b16 %v2302
    %v2813 = vunpack.c.l.b16 %v2303
    %v2814 = vunpack.c.h.b16 %v2303
    %v2815 = vunpack.c.l.b16 %v2304
    %v2816 = vunpack.c.h.b16 %v2304
    %v2817 = vunpack.c.l.b16 %v2305
    %v2818 = vunpack.c.l.b16 %v2306
    %v2819 = vunpack.c.h.b16 %v2306
    %v2820 = vunpack.c.l.b16 %v2307
    %v2821 = vunpack.c.h.b16 %v2307
    %v2822 = vunpack.c.l.b16 %v2308
    %v2823 = vunpack.c.h.b16 %v2308
    %v2824 = vunpack.c.l.b16 %v2309
    %v2825 = vunpack.c.l.b16 %v2310
    %v2826 = vunpack.c.h.b16 %v2310
    %v2827 = vunpack.c.l.b16 %v2311
    %v2828 = vunpack.c.h.b16 %v2311
    %v2829 = vunpack.c.l.b16 %v2312
    %v2830 = vunpack.c.h.b16 %v2312
    %v2831 = vunpack.c.l.b16 %v2313
    %v2832 = vunpack.c.l.b16 %v2314
    %v2833 = vunpack.c.h.b16 %v2314
    %v2834 = vunpack.c.l.b16 %v2315
    %v2835 = vunpack.c.h.b16 %v2315
    %v2836 = vunpack.c.l.b16 %v2316
    %v2837 = vunpack.c.h.b16 %v2316
    %v2838 = vunpack.c.l.b16 %v2317
    %v2839 = vunpack.c.l.b16 %v2318
    %v2840 = vunpack.c.h.b16 %v2318
    %v2841 = vunpack.c.l.b16 %v2319
    %v2842 = vunpack.c.h.b16 %v2319
    %v2843 = vunpack.c.l.b16 %v2320
    %v2844 = vunpack.c.h.b16 %v2320
    %v2845 = vunpack.c.l.b16 %v2321
    %v2846 = vunpack.c.l.b16 %v2322
    %v2847 = vunpack.c.h.b16 %v2322
    %v2848 = vunpack.c.l.b16 %v2323
    %v2849 = vunpack.c.h.b16 %v2323
    %v2850 = vunpack.c.l.b16 %v2324
    %v2851 = vunpack.c.h.b16 %v2324
    %v2852 = vunpack.c.l.b16 %v2325
    %v2853 = vunpack.c.l.b16 %v2326
    %v2854 = vunpack.c.h.b16 %v2326
    %v2855 = vunpack.c.l.b16 %v2327
    %v2856 = vunpack.c.h.b16 %v2327
    %v2857 = vunpack.c.l.b16 %v2328
    %v2858 = vunpack.c.h.b16 %v2328
    %v2859 = vunpack.c.l.b16 %v2329
    %v2860 = vunpack.c.l.b16 %v2330
    %v2861 = vunpack.c.h.b16 %v2330
    %v2862 = vunpack.c.l.b16 %v2331
    %v2863 = vunpack.c.h.b16 %v2331
    %v2864 = vunpack.c.l.b16 %v2332
    %v2865 = vunpack.c.h.b16 %v2332
    %v2866 = vunpack.c.l.b16 %v2333
    %v2867 = vunpack.c.l.b16 %v2334
    %v2868 = vunpack.c.h.b16 %v2334
    %v2869 = vunpack.c.l.b16 %v2335
    %v2870 = vunpack.c.h.b16 %v2335
    %v2871 = vunpack.c.l.b16 %v2336
    %v2872 = vunpack.c.h.b16 %v2336
    %v2873 = vunpack.c.l.b16 %v2337
    %v2874 = vunpack.c.l.b16 %v2338
    %v2875 = vunpack.c.h.b16 %v2338
    %v2876 = vunpack.c.l.b16 %v2339
    %v2877 = vunpack.c.h.b16 %v2339
    %v2878 = vunpack.c.l.b16 %v2340
    %v2879 = vunpack.c.h.b16 %v2340
    %v2880 = vunpack.c.l.b16 %v2341
    %v2881 = vunpack.c.l.b16 %v2342
    %v2882 = vunpack.c.h.b16 %v2342
    %v2883 = vunpack.c.l.b16 %v2343
    %v2884 = vunpack.c.h.b16 %v2343
    %v2885 = vunpack.c.l.b16 %v2344
    %v2886 = vunpack.c.h.b16 %v2344
    %v2887 = vunpack.c.l.b16 %v2345
    %v2888 = vunpack.c.l.b16 %v2346
    %v2889 = vunpack.c.h.b16 %v2346
    %v2890 = vunpack.c.l.b16 %v2347
    %v2891 = vunpack.c.h.b16 %v2347
    %v2892 = vunpack.c.l.b16 %v2348
    %v2893 = vunpack.c.h.b16 %v2348
    %v2894 = vunpack.c.l.b16 %v2349
    %v2895 = vunpack.c.l.b16 %v2350
    %v2896 = vunpack.c.h.b16 %v2350
    %v2897 = vunpack.c.l.b16 %v2351
    %v2898 = vunpack.c.h.b16 %v2351
    %v2899 = vunpack.c.l.b16 %v2352
    %v2900 = vunpack.c.h.b16 %v2352
    %v2901 = vunpack.c.l.b16 %v2353
    %v2902 = vunpack.c.l.b16 %v2354
    %v2903 = vunpack.c.h.b16 %v2354
    %v2904 = vunpack.c.l.b16 %v2355
    %v2905 = vunpack.c.h.b16 %v2355
    %v2906 = vunpack.c.l.b16 %v2356
    %v2907 = vunpack.c.h.b16 %v2356
    %v2908 = vunpack.c.l.b16 %v2357
    %v2909 = vunpack.c.l.b16 %v2358
    %v2910 = vunpack.c.h.b16 %v2358
    %v2911 = vunpack.c.l.b16 %v2359
    %v2912 = vunpack.c.h.b16 %v2359
    %v2913 = vunpack.c.l.b16 %v2360
    %v2914 = vunpack.c.h.b16 %v2360
    %v2915 = vunpack.c.l.b16 %v2361
    %v2916 = vunpack.c.l.b16 %v2362
    %v2917 = vunpack.c.h.b16 %v2362
    %v2918 = vunpack.c.l.b16 %v2363
    %v2919 = vunpack.c.h.b16 %v2363
    %v2920 = vunpack.c.l.b16 %v2364
    %v2921 = vunpack.c.h.b16 %v2364
    %v2922 = vunpack.c.l.b16 %v2365
    %v2923 = vunpack.c.l.b16 %v2366
    %v2924 = vunpack.c.h.b16 %v2366
    %v2925 = vunpack.c.l.b16 %v2367
    %v2926 = vunpack.c.h.b16 %v2367
    %v2927 = vunpack.c.l.b16 %v2368
    %v2928 = vunpack.c.h.b16 %v2368
    %v2929 = vunpack.c.l.b16 %v2369
    %v2930 = vunpack.c.l.b16 %v2370
    %v2931 = vunpack.c.h.b16 %v2370
    %v2932 = vunpack.c.l.b16 %v2371
    %v2933 = vunpack.c.h.b16 %v2371
    %v2934 = vunpack.c.l.b16 %v2372
    %v2935 = vunpack.c.h.b16 %v2372
    %v2936 = vunpack.c.l.b16 %v2373
    %v2937 = vunpack.c.l.b16 %v2374
    %v2938 = vunpack.c.h.b16 %v2374
    %v2939 = vunpack.c.l.b16 %v2375
    %v2940 = vunpack.c.h.b16 %v2375
    %v2941 = vunpack.c.l.b16 %v2376
    %v2942 = vunpack.c.h.b16 %v2376
    %v2943 = vunpack.c.l.b16 %v2377
    %v2944 = vpack.c.b16 %v2601, %v2594
    %v2945 = vpack.c.b16 %v2602, %v2595
    %v2946 = vpack.c.b16 %v2603, %v2596
    %v2947 = vpack.c.b16 %v2604, %v2597
    %v2948 = vpack.c.b16 %v2605, %v2598
    %v2949 = vpack.c.b16 %v2606, %v2599
    %v2950 = vpack.c.b16 %v2607, %v2600
    %v2951 = vpack.c.b16 %v2615, %v2608
    %v2952 = vpack.c.b16 %v2616, %v2609
    %v2953 = vpack.c.b16 %v2617, %v2610
    %v2954 = vpack.c.b16 %v2618, %v2611
    %v2955 = vpack.c.b16 %v2619, %v2612
    %v2956 = vpack.c.b16 %v2620, %v2613
    %v2957 = vpack.c.b16 %v2621, %v2614
    %v2958 = vpack.c.b16 %v2629, %v2622
    %v2959 = vpack.c.b16 %v2630, %v2623
    %v2960 = vpack.c.b16 %v2631, %v2624
    %v2961 = vpack.c.b16 %v2632, %v2625
    %v2962 = vpack.c.b16 %v2633, %v2626
    %v2963 = vpack.c.b16 %v2634, %v2627
    %v2964 = vpack.c.b16 %v2635, %v2628
    %v2965 = vpack.c.b16 %v2643, %v2636
    %v2966 = vpack.c.b16 %v2644, %v2637
    %v2967 = vpack.c.b16 %v2645, %v2638
    %v2968 = vpack.c.b16 %v2646, %v2639
    %v2969 = vpack.c.b16 %v2647, %v2640
    %v2970 = vpack.c.b16 %v2648, %v2641
    %v2971 = vpack.c.b16 %v2649, %v2642
    %v2972 = vpack.c.b16 %v2657, %v2650
    %v2973 = vpack.c.b16 %v2658, %v2651
    %v2974 = vpack.c.b16 %v2659, %v2652
    %v2975 = vpack.c.b16 %v2660, %v2653
    %v2976 = vpack.c.b16 %v2661, %v2654
    %v2977 = vpack.c.b16 %v2662, %v2655
    %v2978 = vpack.c.b16 %v2663, %v2656
    %v2979 = vpack.c.b16 %v2671, %v2664
    %v2980 = vpack.c.b16 %v2672, %v2665
    %v2981 = vpack.c.b16 %v2673, %v2666
    %v2982 = vpack.c.b16 %v2674, %v2667
    %v2983 = vpack.c.b16 %v2675, %v2668
    %v2984 = vpack.c.b16 %v2676, %v2669
    %v2985 = vpack.c.b16 %v2677, %v2670
    %v2986 = vpack.c.b16 %v2685, %v2678
    %v2987 = vpack.c.b16 %v2686, %v2679
    %v2988 = vpack.c.b16 %v2687, %v2680
    %v2989 = vpack.c.b16 %v2688, %v2681
    %v2990 = vpack.c.b16 %v2689, %v2682
    %v2991 = vpack.c.b16 %v2690, %v2683
    %v2992 = vpack.c.b16 %v2691, %v2684
    %v2993 = vpack.c.b16 %v2699, %v2692
    %v2994 = vpack.c.b16 %v2700, %v2693
    %v2995 = vpack.c.b16 %v2701, %v2694
    %v2996 = vpack.c.b16 %v2702, %v2695
    %v2997 = vpack.c.b16 %v2703, %v2696
    %v2998 = vpack.c.b16 %v2704, %v2697
    %v2999 = vpack.c.b16 %v2705, %v2698
    %v3000 = vpack.c.b16 %v2713, %v2706
    %v3001 = vpack.c.b16 %v2714, %v2707
    %v3002 = vpack.c.b16 %v2715, %v2708
    %v3003 = vpack.c.b16 %v2716, %v2709
    %v3004 = vpack.c.b16 %v2717, %v2710
    %v3005 = vpack.c.b16 %v2718, %v2711
    %v3006 = vpack.c.b16 %v2719, %v2712
    %v3007 = vpack.c.b16 %v2727, %v2720
    %v3008 = vpack.c.b16 %v2728, %v2721
    %v3009 = vpack.c.b16 %v2729, %v2722
    %v3010 = vpack.c.b16 %v2730, %v2723
    %v3011 = vpack.c.b16 %v2731, %v2724
    %v3012 = vpack.c.b16 %v2732, %v2725
    %v3013 = vpack.c.b16 %v2733, %v2726
    %v3014 = vpack.c.b16 %v2741, %v2734
    %v3015 = vpack.c.b16 %v2742, %v2735
    %v3016 = vpack.c.b16 %v2743, %v2736
    %v3017 = vpack.c.b16 %v2744, %v2737
    %v3018 = vpack.c.b16 %v2745, %v2738
    %v3019 = vpack.c.b16 %v2746, %v2739
    %v3020 = vpack.c.b16 %v2747, %v2740
    %v3021 = vpack.c.b16 %v2755, %v2748
    %v3022 = vpack.c.b16 %v2756, %v2749
    %v3023 = vpack.c.b16 %v2757, %v2750
    %v3024 = vpack.c.b16 %v2758, %v2751
    %v3025 = vpack.c.b16 %v2759, %v2752
    %v3026 = vpack.c.b16 %v2760, %v2753
    %v3027 = vpack.c.b16 %v2761, %v2754
    %v3028 = vpack.c.b16 %v2769, %v2762
    %v3029 = vpack.c.b16 %v2770, %v2763
    %v3030 = vpack.c.b16 %v2771, %v2764
    %v3031 = vpack.c.b16 %v2772, %v2765
    %v3032 = vpack.c.b16 %v2773, %v2766
    %v3033 = vpack.c.b16 %v2774, %v2767
    %v3034 = vpack.c.b16 %v2775, %v2768
    %v3035 = vpack.c.b16 %v2783, %v2776
    %v3036 = vpack.c.b16 %v2784, %v2777
    %v3037 = vpack.c.b16 %v2785, %v2778
    %v3038 = vpack.c.b16 %v2786, %v2779
    %v3039 = vpack.c.b16 %v2787, %v2780
    %v3040 = vpack.c.b16 %v2788, %v2781
    %v3041 = vpack.c.b16 %v2789, %v2782
    %v3042 = vpack.c.b16 %v2797, %v2790
    %v3043 = vpack.c.b16 %v2798, %v2791
    %v3044 = vpack.c.b16 %v2799, %v2792
    %v3045 = vpack.c.b16 %v2800, %v2793
    %v3046 = vpack.c.b16 %v2801, %v2794
    %v3047 = vpack.c.b16 %v2802, %v2795
    %v3048 = vpack.c.b16 %v2803, %v2796
    %v3049 = vpack.c.b16 %v2811, %v2804
    %v3050 = vpack.c.b16 %v2812, %v2805
    %v3051 = vpack.c.b16 %v2813, %v2806
    %v3052 = vpack.c.b16 %v2814, %v2807
    %v3053 = vpack.c.b16 %v2815, %v2808
    %v3054 = vpack.c.b16 %v2816, %v2809
    %v3055 = vpack.c.b16 %v2817, %v2810
    %v3056 = vpack.c.b16 %v2825, %v2818
    %v3057 = vpack.c.b16 %v2826, %v2819
    %v3058 = vpack.c.b16 %v2827, %v2820
    %v3059 = vpack.c.b16 %v2828, %v2821
    %v3060 = vpack.c.b16 %v2829, %v2822
    %v3061 = vpack.c.b16 %v2830, %v2823
    %v3062 = vpack.c.b16 %v2831, %v2824
    %v3063 = vpack.c.b16 %v2839, %v2832
    %v3064 = vpack.c.b16 %v2840, %v2833
    %v3065 = vpack.c.b16 %v2841, %v2834
    %v3066 = vpack.c.b16 %v2842, %v2835
    %v3067 = vpack.c.b16 %v2843, %v2836
    %v3068 = vpack.c.b16 %v2844, %v2837
    %v3069 = vpack.c.b16 %v2845, %v2838
    %v3070 = vpack.c.b16 %v2853, %v2846
    %v3071 = vpack.c.b16 %v2854, %v2847
    %v3072 = vpack.c.b16 %v2855, %v2848
    %v3073 = vpack.c.b16 %v2856, %v2849
    %v3074 = vpack.c.b16 %v2857, %v2850
    %v3075 = vpack.c.b16 %v2858, %v2851
    %v3076 = vpack.c.b16 %v2859, %v2852
    %v3077 = vpack.c.b16 %v2867, %v2860
    %v3078 = vpack.c.b16 %v2868, %v2861
    %v3079 = vpack.c.b16 %v2869, %v2862
    %v3080 = vpack.c.b16 %v2870, %v2863
    %v3081 = vpack.c.b16 %v2871, %v2864
    %v3082 = vpack.c.b16 %v2872, %v2865
    %v3083 = vpack.c.b16 %v2873, %v2866
    %v3084 = vpack.c.b16 %v2881, %v2874
    %v3085 = vpack.c.b16 %v2882, %v2875
    %v3086 = vpack.c.b16 %v2883, %v2876
    %v3087 = vpack.c.b16 %v2884, %v2877
    %v3088 = vpack.c.b16 %v2885, %v2878
    %v3089 = vpack.c.b16 %v2886, %v2879
    %v3090 = vpack.c.b16 %v2887, %v2880
    %v3091 = vpack.c.b16 %v2895, %v2888
    %v3092 = vpack.c.b16 %v2896, %v2889
    %v3093 = vpack.c.b16 %v2897, %v2890
    %v3094 = vpack.c.b16 %v2898, %v2891
    %v3095 = vpack.c.b16 %v2899, %v2892
    %v3096 = vpack.c.b16 %v2900, %v2893
    %v3097 = vpack.c.b16 %v2901, %v2894
    %v3098 = vpack.c.b16 %v2909, %v2902
    %v3099 = vpack.c.b16 %v2910, %v2903
    %v3100 = vpack.c.b16 %v2911, %v2904
    %v3101 = vpack.c.b16 %v2912, %v2905
    %v3102 = vpack.c.b16 %v2913, %v2906
    %v3103 = vpack.c.b16 %v2914, %v2907
    %v3104 = vpack.c.b16 %v2915, %v2908
    %v3105 = vpack.c.b16 %v2923, %v2916
    %v3106 = vpack.c.b16 %v2924, %v2917
    %v3107 = vpack.c.b16 %v2925, %v2918
    %v3108 = vpack.c.b16 %v2926, %v2919
    %v3109 = vpack.c.b16 %v2927, %v2920
    %v3110 = vpack.c.b16 %v2928, %v2921
    %v3111 = vpack.c.b16 %v2929, %v2922
    %v3112 = vpack.c.b16 %v2937, %v2930
    %v3113 = vpack.c.b16 %v2938, %v2931
    %v3114 = vpack.c.b16 %v2939, %v2932
    %v3115 = vpack.c.b16 %v2940, %v2933
    %v3116 = vpack.c.b16 %v2941, %v2934
    %v3117 = vpack.c.b16 %v2942, %v2935
    %v3118 = vpack.c.b16 %v2943, %v2936
    %v3295 = vsel %vm1253, %v2177, 0
    %3297 = vmatpush.bf16.msra.mxu0 %v2993
    %3298 = vmatpush.bf16.msra.mxu0 %v2986
    %3299 = vmatpush.bf16.msra.mxu0 %v2979
    %3300 = vmatpush.bf16.msra.mxu0 %v2972
    %3301 = vmatpush.bf16.msra.mxu0 %v2965
    %3302 = vmatpush.bf16.msra.mxu0 %v2958
    %3303 = vmatpush.bf16.msra.mxu0 %v2951
    %3304 = vmatpush.bf16.msra.mxu0 %v2944
    %3305 = vmatmul.bf16.gmra.mxu0 %v2174
    %v3306 = vpop.f32.mrf.mxu0
    %v3307 = vadd.f32 %v2380, %v3306
    %v3308 = vpop.f32.mrf.mxu0
    %3309 = vdwg.mxu0
    %3310 = vmatpush.bf16.msra.mxu0 %v3049
    %3311 = vmatpush.bf16.msra.mxu0 %v3042
    %3312 = vmatpush.bf16.msra.mxu0 %v3035
    %3313 = vmatpush.bf16.msra.mxu0 %v3028
    %3314 = vmatpush.bf16.msra.mxu0 %v3021
    %3315 = vmatpush.bf16.msra.mxu0 %v3014
    %3316 = vmatpush.bf16.msra.mxu0 %v3007
    %3317 = vmatpush.bf16.msra.mxu0 %v3000
    %3318 = vmatmul.bf16.gmra.mxu0 %v2175
    %v3319 = vpop.f32.mrf.mxu0
    %v3320 = vadd.f32 %v3307, %v3319
    %v3321 = vpop.f32.mrf.mxu0
    %3322 = vdwg.mxu0
    %3323 = vmatpush.bf16.msra.mxu0 %v3105
    %3324 = vmatpush.bf16.msra.mxu0 %v3098
    %3325 = vmatpush.bf16.msra.mxu0 %v3091
    %3326 = vmatpush.bf16.msra.mxu0 %v3084
    %3327 = vmatpush.bf16.msra.mxu0 %v3077
    %3328 = vmatpush.bf16.msra.mxu0 %v3070
    %3329 = vmatpush.bf16.msra.mxu0 %v3063
    %3330 = vmatpush.bf16.msra.mxu0 %v3056
    %3331 = vmatmul.bf16.gmra.mxu0 %v2176
    %v3332 = vpop.f32.mrf.mxu0
    %v3333 = vadd.f32 %v3320, %v3332
    %v3334 = vpop.f32.mrf.mxu0
    %3335 = vdwg.mxu0
    %3336 = vmatpush.bf16.msra.mxu0 0
    %3337 = vmatpush.bf16.msra.mxu0 0
    %3338 = vmatpush.bf16.msra.mxu0 0
    %3339 = vmatpush.bf16.msra.mxu0 0
    %3340 = vmatpush.bf16.msra.mxu0 0
    %3341 = vmatpush.bf16.msra.mxu0 0
    %3342 = vmatpush.bf16.msra.mxu0 0
    %3343 = vmatpush.bf16.msra.mxu0 %v3112
    %3344 = vmatmul.bf16.gmra.mxu0 %v3295
    %v3345 = vpop.f32.mrf.mxu0
    %v3346 = vadd.f32 %v3333, %v3345
    %v3347 = vpop.f32.mrf.mxu0
    %3348 = vdwg.mxu0
    %3349 = vmatpush.bf16.msra.mxu0 %v2994
    %3350 = vmatpush.bf16.msra.mxu0 %v2987
    %3351 = vmatpush.bf16.msra.mxu0 %v2980
    %3352 = vmatpush.bf16.msra.mxu0 %v2973
    %3353 = vmatpush.bf16.msra.mxu0 %v2966
    %3354 = vmatpush.bf16.msra.mxu0 %v2959
    %3355 = vmatpush.bf16.msra.mxu0 %v2952
    %3356 = vmatpush.bf16.msra.mxu0 %v2945
    %3357 = vmatmul.bf16.gmra.mxu0 %v2174
    %v3358 = vpop.f32.mrf.mxu0
    %v3359 = vadd.f32 %v2381, %v3358
    %v3360 = vpop.f32.mrf.mxu0
    %3361 = vdwg.mxu0
    %3362 = vmatpush.bf16.msra.mxu0 %v3050
    %3363 = vmatpush.bf16.msra.mxu0 %v3043
    %3364 = vmatpush.bf16.msra.mxu0 %v3036
    %3365 = vmatpush.bf16.msra.mxu0 %v3029
    %3366 = vmatpush.bf16.msra.mxu0 %v3022
    %3367 = vmatpush.bf16.msra.mxu0 %v3015
    %3368 = vmatpush.bf16.msra.mxu0 %v3008
    %3369 = vmatpush.bf16.msra.mxu0 %v3001
    %3370 = vmatmul.bf16.gmra.mxu0 %v2175
    %v3371 = vpop.f32.mrf.mxu0
    %v3372 = vadd.f32 %v3359, %v3371
    %v3373 = vpop.f32.mrf.mxu0
    %3374 = vdwg.mxu0
    %3375 = vmatpush.bf16.msra.mxu0 %v3106
    %3376 = vmatpush.bf16.msra.mxu0 %v3099
    %3377 = vmatpush.bf16.msra.mxu0 %v3092
    %3378 = vmatpush.bf16.msra.mxu0 %v3085
    %3379 = vmatpush.bf16.msra.mxu0 %v3078
    %3380 = vmatpush.bf16.msra.mxu0 %v3071
    %3381 = vmatpush.bf16.msra.mxu0 %v3064
    %3382 = vmatpush.bf16.msra.mxu0 %v3057
    %3383 = vmatmul.bf16.gmra.mxu0 %v2176
    %v3384 = vpop.f32.mrf.mxu0
    %v3385 = vadd.f32 %v3372, %v3384
    %v3386 = vpop.f32.mrf.mxu0
    %3387 = vdwg.mxu0
    %3388 = vmatpush.bf16.msra.mxu0 0
    %3389 = vmatpush.bf16.msra.mxu0 0
    %3390 = vmatpush.bf16.msra.mxu0 0
    %3391 = vmatpush.bf16.msra.mxu0 0
    %3392 = vmatpush.bf16.msra.mxu0 0
    %3393 = vmatpush.bf16.msra.mxu0 0
    %3394 = vmatpush.bf16.msra.mxu0 0
    %3395 = vmatpush.bf16.msra.mxu0 %v3113
    %3396 = vmatmul.bf16.gmra.mxu0 %v3295
    %v3397 = vpop.f32.mrf.mxu0
    %v3398 = vadd.f32 %v3385, %v3397
    %v3399 = vpop.f32.mrf.mxu0
    %3400 = vdwg.mxu0
    %3401 = vmatpush.bf16.msra.mxu0 %v2995
    %3402 = vmatpush.bf16.msra.mxu0 %v2988
    %3403 = vmatpush.bf16.msra.mxu0 %v2981
    %3404 = vmatpush.bf16.msra.mxu0 %v2974
    %3405 = vmatpush.bf16.msra.mxu0 %v2967
    %3406 = vmatpush.bf16.msra.mxu0 %v2960
    %3407 = vmatpush.bf16.msra.mxu0 %v2953
    %3408 = vmatpush.bf16.msra.mxu0 %v2946
    %3409 = vmatmul.bf16.gmra.mxu0 %v2174
    %v3410 = vpop.f32.mrf.mxu0
    %v3411 = vadd.f32 %v2382, %v3410
    %v3412 = vpop.f32.mrf.mxu0
    %3413 = vdwg.mxu0
    %3414 = vmatpush.bf16.msra.mxu0 %v3051
    %3415 = vmatpush.bf16.msra.mxu0 %v3044
    %3416 = vmatpush.bf16.msra.mxu0 %v3037
    %3417 = vmatpush.bf16.msra.mxu0 %v3030
    %3418 = vmatpush.bf16.msra.mxu0 %v3023
    %3419 = vmatpush.bf16.msra.mxu0 %v3016
    %3420 = vmatpush.bf16.msra.mxu0 %v3009
    %3421 = vmatpush.bf16.msra.mxu0 %v3002
    %3422 = vmatmul.bf16.gmra.mxu0 %v2175
    %v3423 = vpop.f32.mrf.mxu0
    %v3424 = vadd.f32 %v3411, %v3423
    %v3425 = vpop.f32.mrf.mxu0
    %3426 = vdwg.mxu0
    %3427 = vmatpush.bf16.msra.mxu0 %v3107
    %3428 = vmatpush.bf16.msra.mxu0 %v3100
    %3429 = vmatpush.bf16.msra.mxu0 %v3093
    %3430 = vmatpush.bf16.msra.mxu0 %v3086
    %3431 = vmatpush.bf16.msra.mxu0 %v3079
    %3432 = vmatpush.bf16.msra.mxu0 %v3072
    %3433 = vmatpush.bf16.msra.mxu0 %v3065
    %3434 = vmatpush.bf16.msra.mxu0 %v3058
    %3435 = vmatmul.bf16.gmra.mxu0 %v2176
    %v3436 = vpop.f32.mrf.mxu0
    %v3437 = vadd.f32 %v3424, %v3436
    %v3438 = vpop.f32.mrf.mxu0
    %3439 = vdwg.mxu0
    %3440 = vmatpush.bf16.msra.mxu0 0
    %3441 = vmatpush.bf16.msra.mxu0 0
    %3442 = vmatpush.bf16.msra.mxu0 0
    %3443 = vmatpush.bf16.msra.mxu0 0
    %3444 = vmatpush.bf16.msra.mxu0 0
    %3445 = vmatpush.bf16.msra.mxu0 0
    %3446 = vmatpush.bf16.msra.mxu0 0
    %3447 = vmatpush.bf16.msra.mxu0 %v3114
    %3448 = vmatmul.bf16.gmra.mxu0 %v3295
    %v3449 = vpop.f32.mrf.mxu0
    %v3450 = vadd.f32 %v3437, %v3449
    %v3451 = vpop.f32.mrf.mxu0
    %3452 = vdwg.mxu0
    %3453 = vmatpush.bf16.msra.mxu0 %v2996
    %3454 = vmatpush.bf16.msra.mxu0 %v2989
    %3455 = vmatpush.bf16.msra.mxu0 %v2982
    %3456 = vmatpush.bf16.msra.mxu0 %v2975
    %3457 = vmatpush.bf16.msra.mxu0 %v2968
    %3458 = vmatpush.bf16.msra.mxu0 %v2961
    %3459 = vmatpush.bf16.msra.mxu0 %v2954
    %3460 = vmatpush.bf16.msra.mxu0 %v2947
    %3461 = vmatmul.bf16.gmra.mxu0 %v2174
    %v3462 = vpop.f32.mrf.mxu0
    %v3463 = vadd.f32 %v2383, %v3462
    %v3464 = vpop.f32.mrf.mxu0
    %3465 = vdwg.mxu0
    %3466 = vmatpush.bf16.msra.mxu0 %v3052
    %3467 = vmatpush.bf16.msra.mxu0 %v3045
    %3468 = vmatpush.bf16.msra.mxu0 %v3038
    %3469 = vmatpush.bf16.msra.mxu0 %v3031
    %3470 = vmatpush.bf16.msra.mxu0 %v3024
    %3471 = vmatpush.bf16.msra.mxu0 %v3017
    %3472 = vmatpush.bf16.msra.mxu0 %v3010
    %3473 = vmatpush.bf16.msra.mxu0 %v3003
    %3474 = vmatmul.bf16.gmra.mxu0 %v2175
    %v3475 = vpop.f32.mrf.mxu0
    %v3476 = vadd.f32 %v3463, %v3475
    %v3477 = vpop.f32.mrf.mxu0
    %3478 = vdwg.mxu0
    %3479 = vmatpush.bf16.msra.mxu0 %v3108
    %3480 = vmatpush.bf16.msra.mxu0 %v3101
    %3481 = vmatpush.bf16.msra.mxu0 %v3094
    %3482 = vmatpush.bf16.msra.mxu0 %v3087
    %3483 = vmatpush.bf16.msra.mxu0 %v3080
    %3484 = vmatpush.bf16.msra.mxu0 %v3073
    %3485 = vmatpush.bf16.msra.mxu0 %v3066
    %3486 = vmatpush.bf16.msra.mxu0 %v3059
    %3487 = vmatmul.bf16.gmra.mxu0 %v2176
    %v3488 = vpop.f32.mrf.mxu0
    %v3489 = vadd.f32 %v3476, %v3488
    %v3490 = vpop.f32.mrf.mxu0
    %3491 = vdwg.mxu0
    %3492 = vmatpush.bf16.msra.mxu0 0
    %3493 = vmatpush.bf16.msra.mxu0 0
    %3494 = vmatpush.bf16.msra.mxu0 0
    %3495 = vmatpush.bf16.msra.mxu0 0
    %3496 = vmatpush.bf16.msra.mxu0 0
    %3497 = vmatpush.bf16.msra.mxu0 0
    %3498 = vmatpush.bf16.msra.mxu0 0
    %3499 = vmatpush.bf16.msra.mxu0 %v3115
    %3500 = vmatmul.bf16.gmra.mxu0 %v3295
    %v3501 = vpop.f32.mrf.mxu0
    %v3502 = vadd.f32 %v3489, %v3501
    %v3503 = vpop.f32.mrf.mxu0
    %3504 = vdwg.mxu0
    %3505 = vmatpush.bf16.msra.mxu0 %v2997
    %3506 = vmatpush.bf16.msra.mxu0 %v2990
    %3507 = vmatpush.bf16.msra.mxu0 %v2983
    %3508 = vmatpush.bf16.msra.mxu0 %v2976
    %3509 = vmatpush.bf16.msra.mxu0 %v2969
    %3510 = vmatpush.bf16.msra.mxu0 %v2962
    %3511 = vmatpush.bf16.msra.mxu0 %v2955
    %3512 = vmatpush.bf16.msra.mxu0 %v2948
    %3513 = vmatmul.bf16.gmra.mxu0 %v2174
    %v3514 = vpop.f32.mrf.mxu0
    %v3515 = vadd.f32 %v2384, %v3514
    %v3516 = vpop.f32.mrf.mxu0
    %3517 = vdwg.mxu0
    %3518 = vmatpush.bf16.msra.mxu0 %v3053
    %3519 = vmatpush.bf16.msra.mxu0 %v3046
    %3520 = vmatpush.bf16.msra.mxu0 %v3039
    %3521 = vmatpush.bf16.msra.mxu0 %v3032
    %3522 = vmatpush.bf16.msra.mxu0 %v3025
    %3523 = vmatpush.bf16.msra.mxu0 %v3018
    %3524 = vmatpush.bf16.msra.mxu0 %v3011
    %3525 = vmatpush.bf16.msra.mxu0 %v3004
    %3526 = vmatmul.bf16.gmra.mxu0 %v2175
    %v3527 = vpop.f32.mrf.mxu0
    %v3528 = vadd.f32 %v3515, %v3527
    %v3529 = vpop.f32.mrf.mxu0
    %3530 = vdwg.mxu0
    %3531 = vmatpush.bf16.msra.mxu0 %v3109
    %3532 = vmatpush.bf16.msra.mxu0 %v3102
    %3533 = vmatpush.bf16.msra.mxu0 %v3095
    %3534 = vmatpush.bf16.msra.mxu0 %v3088
    %3535 = vmatpush.bf16.msra.mxu0 %v3081
    %3536 = vmatpush.bf16.msra.mxu0 %v3074
    %3537 = vmatpush.bf16.msra.mxu0 %v3067
    %3538 = vmatpush.bf16.msra.mxu0 %v3060
    %3539 = vmatmul.bf16.gmra.mxu0 %v2176
    %v3540 = vpop.f32.mrf.mxu0
    %v3541 = vadd.f32 %v3528, %v3540
    %v3542 = vpop.f32.mrf.mxu0
    %3543 = vdwg.mxu0
    %3544 = vmatpush.bf16.msra.mxu0 0
    %3545 = vmatpush.bf16.msra.mxu0 0
    %3546 = vmatpush.bf16.msra.mxu0 0
    %3547 = vmatpush.bf16.msra.mxu0 0
    %3548 = vmatpush.bf16.msra.mxu0 0
    %3549 = vmatpush.bf16.msra.mxu0 0
    %3550 = vmatpush.bf16.msra.mxu0 0
    %3551 = vmatpush.bf16.msra.mxu0 %v3116
    %3552 = vmatmul.bf16.gmra.mxu0 %v3295
    %v3553 = vpop.f32.mrf.mxu0
    %v3554 = vadd.f32 %v3541, %v3553
    %v3555 = vpop.f32.mrf.mxu0
    %3556 = vdwg.mxu0
    %3557 = vmatpush.bf16.msra.mxu0 %v2998
    %3558 = vmatpush.bf16.msra.mxu0 %v2991
    %3559 = vmatpush.bf16.msra.mxu0 %v2984
    %3560 = vmatpush.bf16.msra.mxu0 %v2977
    %3561 = vmatpush.bf16.msra.mxu0 %v2970
    %3562 = vmatpush.bf16.msra.mxu0 %v2963
    %3563 = vmatpush.bf16.msra.mxu0 %v2956
    %3564 = vmatpush.bf16.msra.mxu0 %v2949
    %3565 = vmatmul.bf16.gmra.mxu0 %v2174
    %v3566 = vpop.f32.mrf.mxu0
    %v3567 = vadd.f32 %v2385, %v3566
    %v3568 = vpop.f32.mrf.mxu0
    %3569 = vdwg.mxu0
    %3570 = vmatpush.bf16.msra.mxu0 %v3054
    %3571 = vmatpush.bf16.msra.mxu0 %v3047
    %3572 = vmatpush.bf16.msra.mxu0 %v3040
    %3573 = vmatpush.bf16.msra.mxu0 %v3033
    %3574 = vmatpush.bf16.msra.mxu0 %v3026
    %3575 = vmatpush.bf16.msra.mxu0 %v3019
    %3576 = vmatpush.bf16.msra.mxu0 %v3012
    %3577 = vmatpush.bf16.msra.mxu0 %v3005
    %3578 = vmatmul.bf16.gmra.mxu0 %v2175
    %v3579 = vpop.f32.mrf.mxu0
    %v3580 = vadd.f32 %v3567, %v3579
    %v3581 = vpop.f32.mrf.mxu0
    %3582 = vdwg.mxu0
    %3583 = vmatpush.bf16.msra.mxu0 %v3110
    %3584 = vmatpush.bf16.msra.mxu0 %v3103
    %3585 = vmatpush.bf16.msra.mxu0 %v3096
    %3586 = vmatpush.bf16.msra.mxu0 %v3089
    %3587 = vmatpush.bf16.msra.mxu0 %v3082
    %3588 = vmatpush.bf16.msra.mxu0 %v3075
    %3589 = vmatpush.bf16.msra.mxu0 %v3068
    %3590 = vmatpush.bf16.msra.mxu0 %v3061
    %3591 = vmatmul.bf16.gmra.mxu0 %v2176
    %v3592 = vpop.f32.mrf.mxu0
    %v3593 = vadd.f32 %v3580, %v3592
    %v3594 = vpop.f32.mrf.mxu0
    %3595 = vdwg.mxu0
    %3596 = vmatpush.bf16.msra.mxu0 0
    %3597 = vmatpush.bf16.msra.mxu0 0
    %3598 = vmatpush.bf16.msra.mxu0 0
    %3599 = vmatpush.bf16.msra.mxu0 0
    %3600 = vmatpush.bf16.msra.mxu0 0
    %3601 = vmatpush.bf16.msra.mxu0 0
    %3602 = vmatpush.bf16.msra.mxu0 0
    %3603 = vmatpush.bf16.msra.mxu0 %v3117
    %3604 = vmatmul.bf16.gmra.mxu0 %v3295
    %v3605 = vpop.f32.mrf.mxu0
    %v3606 = vadd.f32 %v3593, %v3605
    %v3607 = vpop.f32.mrf.mxu0
    %3608 = vdwg.mxu0
    %3609 = vmatpush.bf16.msra.mxu0 %v2999
    %3610 = vmatpush.bf16.msra.mxu0 %v2992
    %3611 = vmatpush.bf16.msra.mxu0 %v2985
    %3612 = vmatpush.bf16.msra.mxu0 %v2978
    %3613 = vmatpush.bf16.msra.mxu0 %v2971
    %3614 = vmatpush.bf16.msra.mxu0 %v2964
    %3615 = vmatpush.bf16.msra.mxu0 %v2957
    %3616 = vmatpush.bf16.msra.mxu0 %v2950
    %3617 = vmatmul.bf16.gmra.mxu0 %v2174
    %v3618 = vpop.f32.mrf.mxu0
    %v3619 = vadd.f32 %v2386, %v3618
    %v3620 = vpop.f32.mrf.mxu0
    %3621 = vdwg.mxu0
    %3622 = vmatpush.bf16.msra.mxu0 %v3055
    %3623 = vmatpush.bf16.msra.mxu0 %v3048
    %3624 = vmatpush.bf16.msra.mxu0 %v3041
    %3625 = vmatpush.bf16.msra.mxu0 %v3034
    %3626 = vmatpush.bf16.msra.mxu0 %v3027
    %3627 = vmatpush.bf16.msra.mxu0 %v3020
    %3628 = vmatpush.bf16.msra.mxu0 %v3013
    %3629 = vmatpush.bf16.msra.mxu0 %v3006
    %3630 = vmatmul.bf16.gmra.mxu0 %v2175
    %v3631 = vpop.f32.mrf.mxu0
    %v3632 = vadd.f32 %v3619, %v3631
    %v3633 = vpop.f32.mrf.mxu0
    %3634 = vdwg.mxu0
    %3635 = vmatpush.bf16.msra.mxu0 %v3111
    %3636 = vmatpush.bf16.msra.mxu0 %v3104
    %3637 = vmatpush.bf16.msra.mxu0 %v3097
    %3638 = vmatpush.bf16.msra.mxu0 %v3090
    %3639 = vmatpush.bf16.msra.mxu0 %v3083
    %3640 = vmatpush.bf16.msra.mxu0 %v3076
    %3641 = vmatpush.bf16.msra.mxu0 %v3069
    %3642 = vmatpush.bf16.msra.mxu0 %v3062
    %3643 = vmatmul.bf16.gmra.mxu0 %v2176
    %v3644 = vpop.f32.mrf.mxu0
    %v3645 = vadd.f32 %v3632, %v3644
    %v3646 = vpop.f32.mrf.mxu0
    %3647 = vdwg.mxu0
    %3648 = vmatpush.bf16.msra.mxu0 0
    %3649 = vmatpush.bf16.msra.mxu0 0
    %3650 = vmatpush.bf16.msra.mxu0 0
    %3651 = vmatpush.bf16.msra.mxu0 0
    %3652 = vmatpush.bf16.msra.mxu0 0
    %3653 = vmatpush.bf16.msra.mxu0 0
    %3654 = vmatpush.bf16.msra.mxu0 0
    %3655 = vmatpush.bf16.msra.mxu0 %v3118
    %3656 = vmatmul.bf16.gmra.mxu0 %v3295
    %v3657 = vpop.f32.mrf.mxu0
    %v3658 = vadd.f32 %v3645, %v3657
    %v3659 = vpop.f32.mrf.mxu0
    %3660 = vdwg.mxu0
    %v3661 = vxor.u32 %v3346, 2147483648
    %v3662 = vxor.u32 %v3398, 2147483648
    %v3663 = vxor.u32 %v3450, 2147483648
    %v3664 = vxor.u32 %v3502, 2147483648
    %v3665 = vxor.u32 %v3554, 2147483648
    %v3666 = vxor.u32 %v3606, 2147483648
    %v3667 = vxor.u32 %v3658, 2147483648
    %v3668 = vmul.f32 %v3661, 1.442695
    %v3669 = vpow.pop %v3668
    %v3670 = vmul.f32 %v3662, 1.442695
    %v3671 = vpow.pop %v3670
    %v3672 = vmul.f32 %v3663, 1.442695
    %v3673 = vpow.pop %v3672
    %v3674 = vmul.f32 %v3664, 1.442695
    %v3675 = vpow.pop %v3674
    %v3676 = vmul.f32 %v3665, 1.442695
    %v3677 = vpow.pop %v3676
    %v3678 = vmul.f32 %v3666, 1.442695
    %v3679 = vpow.pop %v3678
    %v3680 = vmul.f32 %v3667, 1.442695
    %v3681 = vpow.pop %v3680
    %v3682 = vadd.f32 %v3669, 1.0
    %v3683 = vadd.f32 %v3671, 1.0
    %v3684 = vadd.f32 %v3673, 1.0
    %v3685 = vadd.f32 %v3675, 1.0
    %v3686 = vadd.f32 %v3677, 1.0
    %v3687 = vadd.f32 %v3679, 1.0
    %v3688 = vadd.f32 %v3681, 1.0
    %v3689 = vrcp.pop %v3682
    %v3690 = vmul.f32 %v3682, %v3689
    %v3691 = vsub.f32 1.0, %v3690
    %v3692 = vmul.f32 %v3689, %v3691
    %v3693 = vadd.f32 %v3689, %v3692
    %vm3694 = vweird.f32 %v3682
    %vm3695 = vweird.f32 %v3689
    %vm3696 = vmor %vm3694, %vm3695
    %v3697 = vsel %vm3696, %v3689, %v3693
    %v3698 = vand.u32 2147483647, %v3682
    %vm3699 = vcmp.eq.f32.partialorder %v3698, 8.507059e+37
    %v3700 = vand.u32 %v3682, 2147483648
    %v3701 = vor.u32 1.1754944e-38, %v3700
    %v3702 = vsel %vm3699, %v3701, %v3697
    %v3703 = vmul.f32 1.0, %v3702
    %v3704 = vrcp.pop %v3683
    %v3705 = vmul.f32 %v3683, %v3704
    %v3706 = vsub.f32 1.0, %v3705
    %v3707 = vmul.f32 %v3704, %v3706
    %v3708 = vadd.f32 %v3704, %v3707
    %vm3709 = vweird.f32 %v3683
    %vm3710 = vweird.f32 %v3704
    %vm3711 = vmor %vm3709, %vm3710
    %v3712 = vsel %vm3711, %v3704, %v3708
    %v3713 = vand.u32 2147483647, %v3683
    %vm3714 = vcmp.eq.f32.partialorder %v3713, 8.507059e+37
    %v3715 = vand.u32 %v3683, 2147483648
    %v3716 = vor.u32 1.1754944e-38, %v3715
    %v3717 = vsel %vm3714, %v3716, %v3712
    %v3718 = vmul.f32 1.0, %v3717
    %v3719 = vrcp.pop %v3684
    %v3720 = vmul.f32 %v3684, %v3719
    %v3721 = vsub.f32 1.0, %v3720
    %v3722 = vmul.f32 %v3719, %v3721
    %v3723 = vadd.f32 %v3719, %v3722
    %vm3724 = vweird.f32 %v3684
    %vm3725 = vweird.f32 %v3719
    %vm3726 = vmor %vm3724, %vm3725
    %v3727 = vsel %vm3726, %v3719, %v3723
    %v3728 = vand.u32 2147483647, %v3684
    %vm3729 = vcmp.eq.f32.partialorder %v3728, 8.507059e+37
    %v3730 = vand.u32 %v3684, 2147483648
    %v3731 = vor.u32 1.1754944e-38, %v3730
    %v3732 = vsel %vm3729, %v3731, %v3727
    %v3733 = vmul.f32 1.0, %v3732
    %v3734 = vrcp.pop %v3685
    %v3735 = vmul.f32 %v3685, %v3734
    %v3736 = vsub.f32 1.0, %v3735
    %v3737 = vmul.f32 %v3734, %v3736
    %v3738 = vadd.f32 %v3734, %v3737
    %vm3739 = vweird.f32 %v3685
    %vm3740 = vweird.f32 %v3734
    %vm3741 = vmor %vm3739, %vm3740
    %v3742 = vsel %vm3741, %v3734, %v3738
    %v3743 = vand.u32 2147483647, %v3685
    %vm3744 = vcmp.eq.f32.partialorder %v3743, 8.507059e+37
    %v3745 = vand.u32 %v3685, 2147483648
    %v3746 = vor.u32 1.1754944e-38, %v3745
    %v3747 = vsel %vm3744, %v3746, %v3742
    %v3748 = vmul.f32 1.0, %v3747
    %v3749 = vrcp.pop %v3686
    %v3750 = vmul.f32 %v3686, %v3749
    %v3751 = vsub.f32 1.0, %v3750
    %v3752 = vmul.f32 %v3749, %v3751
    %v3753 = vadd.f32 %v3749, %v3752
    %vm3754 = vweird.f32 %v3686
    %vm3755 = vweird.f32 %v3749
    %vm3756 = vmor %vm3754, %vm3755
    %v3757 = vsel %vm3756, %v3749, %v3753
    %v3758 = vand.u32 2147483647, %v3686
    %vm3759 = vcmp.eq.f32.partialorder %v3758, 8.507059e+37
    %v3760 = vand.u32 %v3686, 2147483648
    %v3761 = vor.u32 1.1754944e-38, %v3760
    %v3762 = vsel %vm3759, %v3761, %v3757
    %v3763 = vmul.f32 1.0, %v3762
    %v3764 = vrcp.pop %v3687
    %v3765 = vmul.f32 %v3687, %v3764
    %v3766 = vsub.f32 1.0, %v3765
    %v3767 = vmul.f32 %v3764, %v3766
    %v3768 = vadd.f32 %v3764, %v3767
    %vm3769 = vweird.f32 %v3687
    %vm3770 = vweird.f32 %v3764
    %vm3771 = vmor %vm3769, %vm3770
    %v3772 = vsel %vm3771, %v3764, %v3768
    %v3773 = vand.u32 2147483647, %v3687
    %vm3774 = vcmp.eq.f32.partialorder %v3773, 8.507059e+37
    %v3775 = vand.u32 %v3687, 2147483648
    %v3776 = vor.u32 1.1754944e-38, %v3775
    %v3777 = vsel %vm3774, %v3776, %v3772
    %v3778 = vmul.f32 1.0, %v3777
    %v3779 = vrcp.pop %v3688
    %v3780 = vmul.f32 %v3688, %v3779
    %v3781 = vsub.f32 1.0, %v3780
    %v3782 = vmul.f32 %v3779, %v3781
    %v3783 = vadd.f32 %v3779, %v3782
    %vm3784 = vweird.f32 %v3688
    %vm3785 = vweird.f32 %v3779
    %vm3786 = vmor %vm3784, %vm3785
    %v3787 = vsel %vm3786, %v3779, %v3783
    %v3788 = vand.u32 2147483647, %v3688
    %vm3789 = vcmp.eq.f32.partialorder %v3788, 8.507059e+37
    %v3790 = vand.u32 %v3688, 2147483648
    %v3791 = vor.u32 1.1754944e-38, %v3790
    %v3792 = vsel %vm3789, %v3791, %v3787
    %v3793 = vmul.f32 1.0, %v3792
    %v3801 = vrot.slane %v3718, 6
    %v3802 = vrot.slane %v3733, 4
    %v3803 = vrot.slane %v3748, 2
    %v3804 = vrot.slane %v3778, 6
    %v3805 = vrot.slane %v3793, 4
    %v3806 = vsel %vm2045, %v3703, %v3801
    %vm3807 = vcmask 1045508
    %v3808 = vsel %vm3807, %v3802, %v3803
    %vm3809 = vcmask 1043456
    %v3810 = vsel %vm3809, %v3806, %v3808
    %v3811 = vsel %vm2045, %v3763, %v3804
    %v3812 = vsel %vm3809, %v3811, %v3805
    %3815 = vst [vmem:[#allocation2] sm:$0xff] %v3810
    %vm3816 = vcmask 1043458
    %vm3817 = vmor %vm3816, %vm2045
    %vm3818 = vcmask 128004
    %vm3819 = vmor %vm3818, %vm3817
    %3820 = vst.msk [vmem:[#allocation2 + $0x8] sm:$0x3f] %vm3819, %v3812
    // Predicated region
    $region42: #{vae_forward.1} parent=1 // pred_check
      _
    $region43: #{vae_forward.1} parent=1 // pred_check_branch
      %3822 = sbr.rel (0) target = $region45
    $region44: #{vae_forward.1} parent=1 // pred_region
      %3824 = vsyncadd [#allocation3], 0
      %s3826 = sshll.u32 [#allocation2], 4
      %s3827 = int_to_ptr.vmem [resolvable:$true] %s3826
      %s3828 = sshll.u32 %s10, 4
      %s3829 = int_to_ptr.hbm [resolvable:$true] %s3828
      %3831 = dma.vmem_to_hbm [thread:$0]  %s3827, 224, %s3829, [#allocation3]
    $region45: #{vae_forward.1} parent=1 // pred_fallthru
      _
    // Predicated region
    $region46: #{vae_forward.1} parent=1 // pred_check
      _
    $region47: #{vae_forward.1} parent=1 // pred_check_branch
      %3833 = sbr.rel (0) target = $region49
    $region48: #{vae_forward.1} parent=1 // pred_region
      _
    $region49: #{vae_forward.1} parent=1 // pred_fallthru
      _
    // Predicated region
    $region50: #{vae_forward.1} parent=1 // pred_check
      _
    $region51: #{vae_forward.1} parent=1 // pred_check_branch
      %3835 = sbr.rel (0) target = $region53
    $region52: #{vae_forward.1} parent=1 // pred_region
      %3837 = dma.done [#allocation3], 224
    $region53: #{vae_forward.1} parent=1 // pred_fallthru
      _
    // Predicated region
    $region54: #{vae_forward.1} parent=1 // pred_check
      _
    $region55: #{vae_forward.1} parent=1 // pred_check_branch
      %3839 = sbr.rel (0) target = $region57
    $region56: #{vae_forward.1} parent=1 // pred_region
      _
    $region57: #{vae_forward.1} parent=1 // pred_fallthru
      _
    %3840 = vsyncpa [#allocation3], 1

</llo_original>
